<compile_context>
chip_gen: v7x
topology: tpu7x:2x2x1
jax: 0.10.0
libtpu: 0.0.40
codegen_flags: <defaults>
</compile_context>

<pallas_src>
import jax
import jax.numpy as jnp
from jax.experimental import pallas as pl
from jax.experimental.pallas import tpu as pltpu

_EPS = 1e-5    # torch.nn.InstanceNorm2d default eps
_LANES = 128   # channel axis padded to a multiple of the lane width


def _conv3x3_instnorm(flat, w_ref, masks):
    """3x3 reflect-padded conv + InstanceNorm(affine=False) for one sample.

    flat : (H*W, C) float32 activations, row-major over (H, W).
    w_ref: (3, 3, C, C) bfloat16 HWIO conv-weight Ref.
    masks: (at_h0, at_hL, at_w0, at_wL, W) edge masks / row width.
    Returns (H*W, C) float32 normalized conv output. The conv bias is omitted
    on purpose: a per-channel constant cancels exactly in the instance norm.
    """
    at_h0, at_hL, at_w0, at_wL, W = masks
    HW, C = flat.shape

    # Vertical (h +/- 1) taps via XLU rotates; the wrapped rows are only wrong
    # at h==0 / h==H-1 where reflection wants the *other* rotate -> select.
    up = pltpu.roll(flat, W, 0)         # [h*W+w] -> x[h-1, w]  (wraps at h==0)
    dn = pltpu.roll(flat, HW - W, 0)    # [h*W+w] -> x[h+1, w]  (wraps at h==H-1)
    bands = (
        jnp.where(at_h0, dn, up),       # row h-1, reflected: x[1, w] at h==0
        flat,                           # row h
        jnp.where(at_hL, up, dn),       # row h+1, reflected: x[H-2, w] at h==H-1
    )

    acc = jnp.zeros((HW, C), jnp.float32)
    for dy in range(3):
        b = bands[dy]
        left = pltpu.roll(b, 1, 0)         # [..,w] -> b[..,w-1]  (wraps at w==0)
        right = pltpu.roll(b, HW - 1, 0)   # [..,w] -> b[..,w+1]  (wraps at w==W-1)
        taps = (
            jnp.where(at_w0, right, left),   # col w-1, reflected
            b,                               # col w
            jnp.where(at_wL, left, right),   # col w+1, reflected
        )
        for dx in range(3):
            acc += jnp.dot(taps[dx].astype(jnp.bfloat16), w_ref[dy, dx],
                           preferred_element_type=jnp.float32)

    # InstanceNorm2d(affine=False): single-pass f32 stats over H*W per channel.
    inv_hw = 1.0 / HW
    mean = jnp.sum(acc, axis=0, keepdims=True) * inv_hw
    var = jnp.sum(acc * acc, axis=0, keepdims=True) * inv_hw - mean * mean
    var = jnp.maximum(var, 0.0)
    return (acc - mean) * jax.lax.rsqrt(var + _EPS)


def _resnet_block_kernel(x_ref, w1_ref, w2_ref, o_ref):
    """Fused: out = x + IN(conv2(ReLU(IN(conv1(reflect_pad(x)))))), one sample."""
    _, H, W, C = x_ref.shape
    HW = H * W
    x = x_ref[0].reshape(HW, C).astype(jnp.float32)

    h_idx = jax.lax.broadcasted_iota(jnp.int32, (H, W, C), 0).reshape(HW, C)
    w_idx = jax.lax.broadcasted_iota(jnp.int32, (H, W, C), 1).reshape(HW, C)
    masks = (h_idx == 0, h_idx == H - 1, w_idx == 0, w_idx == W - 1, W)

    h = jnp.maximum(_conv3x3_instnorm(x, w1_ref, masks), 0.0)   # ReLU(True)
    # TODO(synk): use_dropout=True branch (Dropout(0.5)) not implemented;
    # CycleGAN's ResnetBlock default is use_dropout=False.
    y = _conv3x3_instnorm(h, w2_ref, masks)
    o_ref[...] = (x + y).reshape(1, H, W, C).astype(o_ref.dtype)


def _vmem_limit_bytes(default=32 * 1024 * 1024):
    """~3/4 of physical VMEM (128 MiB on v5e/v6e, 64 MiB on v7x); the scoped
    defaults (16/32 MiB) are too small to double-buffer whole-sample blocks."""
    try:
        cap = getattr(pltpu.get_tpu_info(), "vmem_capacity_bytes", None)
        if cap:
            return int(cap) * 3 // 4
    except Exception:
        pass
    return default


def _pad_channels(c):
    return -(-c // _LANES) * _LANES


def resnet_block_pallas(x_nhwc, w1, w2):
    """x_nhwc: (N,H,W,C) f32; w1, w2: (3,3,C,C) HWIO f32 -> (N,H,W,C) f32."""
    N, H, W, C = x_nhwc.shape
    assert H >= 2 and W >= 2, "reflection padding needs H, W >= 2"
    Cp = _pad_channels(C)
    pc = Cp - C
    # Lane-dense channel axis: zero-pad channels (exactly preserved, see header).
    xp = jnp.pad(x_nhwc, ((0, 0), (0, 0), (0, 0), (0, pc)))
    w1p = jnp.pad(w1, ((0, 0), (0, 0), (0, pc), (0, pc))).astype(jnp.bfloat16)
    w2p = jnp.pad(w2, ((0, 0), (0, 0), (0, pc), (0, pc))).astype(jnp.bfloat16)

    out = pl.pallas_call(
        _resnet_block_kernel,
        out_shape=jax.ShapeDtypeStruct((N, H, W, Cp), jnp.float32),
        grid=(N,),
        in_specs=[
            pl.BlockSpec((1, H, W, Cp), lambda n: (n, 0, 0, 0)),
            pl.BlockSpec((3, 3, Cp, Cp), lambda n: (0, 0, 0, 0)),
            pl.BlockSpec((3, 3, Cp, Cp), lambda n: (0, 0, 0, 0)),
        ],
        out_specs=pl.BlockSpec((1, H, W, Cp), lambda n: (n, 0, 0, 0)),
        compiler_params=pltpu.CompilerParams(
            dimension_semantics=("parallel",),
            vmem_limit_bytes=_vmem_limit_bytes(),
        ),
    )(xp, w1p, w2p)
    return out[..., :C]


@jax.jit
def resnet_block_forward(x_nchw, w1, b1, w2, b2):
    """PyTorch-equivalent forward: out = x + conv_block(x), NCHW in/out.

    b1/b2 are accepted (use_bias=True in the module) but unused by the kernel:
    with InstanceNorm2d(affine=False) a per-channel bias cancels exactly.
    """
    del b1, b2
    x_nhwc = jnp.transpose(x_nchw, (0, 2, 3, 1))
    out_nhwc = resnet_block_pallas(x_nhwc, w1, w2)
    return jnp.transpose(out_nhwc, (0, 3, 1, 2))


def init_resnet_block_params(key, dim):
    """Deterministic synthetic parameters. Conv weights in HWIO (3,3,Cin,Cout)."""
    k1, k2, k3, k4 = jax.random.split(key, 4)
    scale = 0.2
    w1 = scale * jax.random.normal(k1, (3, 3, dim, dim), jnp.float32)
    b1 = scale * jax.random.normal(k2, (dim,), jnp.float32)
    w2 = scale * jax.random.normal(k3, (3, 3, dim, dim), jnp.float32)
    b2 = scale * jax.random.normal(k4, (dim,), jnp.float32)
    return w1, b1, w2, b2


def _reference_forward(x_nchw, w1, b1, w2, b2, operand_dtype=jnp.float32):
    """Pure-JAX reference (includes the conv bias, so it also validates the
    bias-cancellation). operand_dtype=bfloat16 mirrors the kernel's MXU
    precision (bf16 operands, f32 accumulation / f32 statistics)."""
    x = jnp.transpose(x_nchw, (0, 2, 3, 1)).astype(jnp.float32)

    def conv(v, w, b):
        vp = jnp.pad(v, ((0, 0), (1, 1), (1, 1), (0, 0)), mode="reflect")
        vp = vp.astype(operand_dtype).astype(jnp.float32)
        wc = w.astype(operand_dtype).astype(jnp.float32)
        y = jax.lax.conv_general_dilated(
            vp, wc, (1, 1), "VALID",
            dimension_numbers=("NHWC", "HWIO", "NHWC"),
            preferred_element_type=jnp.float32)
        return y + b.reshape(1, 1, 1, -1)

    def inorm(y):
        m = jnp.mean(y, axis=(1, 2), keepdims=True)
        v = jnp.mean((y - m) ** 2, axis=(1, 2), keepdims=True)
        return (y - m) * jax.lax.rsqrt(v + _EPS)

    h = jnp.maximum(inorm(conv(x, w1, b1)), 0.0)
    out = x + inorm(conv(h, w2, b2))
    return jnp.transpose(out, (0, 3, 1, 2))


if __name__ == "__main__":
    key = jax.random.PRNGKey(0)
    kx, kp = jax.random.split(key)

    N, C, H, W = 2, 4, 16, 16   # NCHW, dim=4 (small test shapes)
    x = jax.random.normal(kx, (N, C, H, W), jnp.float32)
    w1, b1, w2, b2 = init_resnet_block_params(kp, C)

    out = jax.block_until_ready(resnet_block_forward(x, w1, b1, w2, b2))
    assert out.shape == (N, C, H, W), out.shape

    # Reference with matched MXU operand precision (bf16 in, f32 accumulate).
    ref = _reference_forward(x, w1, b1, w2, b2, operand_dtype=jnp.bfloat16)
    max_err = float(jnp.max(jnp.abs(out - ref)))
    assert jnp.allclose(out, ref, rtol=1e-2, atol=1e-2), max_err

    print("KERNEL_OK")
</pallas_src>

<mosaic_0001>
module attributes {stable_mosaic.version = 11 : i64} {
  func.func @_resnet_block_kernel(%arg0: i32, %arg1: memref<1x16x16x128xf32, #tpu.memory_space<vmem>>, %arg2: memref<3x3x128x128xbf16, #tpu.memory_space<vmem>>, %arg3: memref<3x3x128x128xbf16, #tpu.memory_space<vmem>>, %arg4: memref<1x16x16x128xf32, #tpu.memory_space<vmem>>) attributes {dimension_semantics = [#tpu.dimension_semantics<parallel>], iteration_bounds = array<i64: 2>, scalar_prefetch = 0 : i64, scratch_operands = 0 : i64, tpu.core_type = #tpu.core_type<tc>, window_params = [{transform_indices = @transform_0, window_bounds = array<i64: 1, 16, 16, 128>}, {pipeline_mode = #tpu.pipeline_mode<synchronous>, transform_indices = @transform_1, window_bounds = array<i64: 3, 3, 128, 128>}, {pipeline_mode = #tpu.pipeline_mode<synchronous>, transform_indices = @transform_2, window_bounds = array<i64: 3, 3, 128, 128>}, {transform_indices = @transform_3, window_bounds = array<i64: 1, 16, 16, 128>}]} {
    %c0 = arith.constant 0 : index
    %c0_0 = arith.constant 0 : index
    %c0_1 = arith.constant 0 : index
    %c0_2 = arith.constant 0 : index
    %0 = vector.load %arg1[%c0, %c0_0, %c0_1, %c0_2] : memref<1x16x16x128xf32, #tpu.memory_space<vmem>>, vector<1x16x16x128xf32>
    %1 = vector.shape_cast %0 : vector<1x16x16x128xf32> to vector<16x16x128xf32>
    %2 = vector.shape_cast %1 : vector<16x16x128xf32> to vector<256x128xf32>
    %3 = tpu.iota {dimensions = array<i32: 0>} : vector<16x16x128xi32>
    %4 = vector.shape_cast %3 : vector<16x16x128xi32> to vector<256x128xi32>
    %5 = tpu.iota {dimensions = array<i32: 1>} : vector<16x16x128xi32>
    %6 = vector.shape_cast %5 : vector<16x16x128xi32> to vector<256x128xi32>
    %c0_i32 = arith.constant 0 : i32
    %7 = vector.broadcast %c0_i32 : i32 to vector<256x128xi32>
    %8 = arith.cmpi eq, %4, %7 : vector<256x128xi32>
    %c15_i32 = arith.constant 15 : i32
    %9 = vector.broadcast %c15_i32 : i32 to vector<256x128xi32>
    %10 = arith.cmpi eq, %4, %9 : vector<256x128xi32>
    %c0_i32_3 = arith.constant 0 : i32
    %11 = vector.broadcast %c0_i32_3 : i32 to vector<256x128xi32>
    %12 = arith.cmpi eq, %6, %11 : vector<256x128xi32>
    %c15_i32_4 = arith.constant 15 : i32
    %13 = vector.broadcast %c15_i32_4 : i32 to vector<256x128xi32>
    %14 = arith.cmpi eq, %6, %13 : vector<256x128xi32>
    %c16_i32 = arith.constant 16 : i32
    %15 = tpu.dynamic_rotate %2 by %c16_i32 dim 0 : vector<256x128xf32>, i32 -> vector<256x128xf32>
    %c240_i32 = arith.constant 240 : i32
    %16 = tpu.dynamic_rotate %2 by %c240_i32 dim 0 : vector<256x128xf32>, i32 -> vector<256x128xf32>
    %17 = arith.select %8, %16, %15 : vector<256x128xi1>, vector<256x128xf32>
    %18 = arith.select %10, %15, %16 : vector<256x128xi1>, vector<256x128xf32>
    %cst = arith.constant 0.000000e+00 : f32
    %19 = vector.broadcast %cst : f32 to vector<256x128xf32>
    %c1_i32 = arith.constant 1 : i32
    %20 = tpu.dynamic_rotate %17 by %c1_i32 dim 0 : vector<256x128xf32>, i32 -> vector<256x128xf32>
    %c255_i32 = arith.constant 255 : i32
    %21 = tpu.dynamic_rotate %17 by %c255_i32 dim 0 : vector<256x128xf32>, i32 -> vector<256x128xf32>
    %22 = arith.select %12, %21, %20 : vector<256x128xi1>, vector<256x128xf32>
    %23 = arith.select %14, %20, %21 : vector<256x128xi1>, vector<256x128xf32>
    %24 = arith.truncf %22 : vector<256x128xf32> to vector<256x128xbf16>
    %c0_5 = arith.constant 0 : index
    %c0_6 = arith.constant 0 : index
    %c0_7 = arith.constant 0 : index
    %c0_8 = arith.constant 0 : index
    %25 = vector.load %arg2[%c0_5, %c0_6, %c0_7, %c0_8] : memref<3x3x128x128xbf16, #tpu.memory_space<vmem>>, vector<1x1x128x128xbf16>
    %26 = vector.shape_cast %25 : vector<1x1x128x128xbf16> to vector<128x128xbf16>
    %cst_9 = arith.constant dense<0.000000e+00> : vector<256x128xf32>
    %27 = tpu.matmul %24, %26, %cst_9 {dimension_numbers = #tpu.dot_dimension_numbers<[1], [0], [0], [1], [0, 0, 1, 1], [], []>} : vector<256x128xbf16>, vector<128x128xbf16>, vector<256x128xf32> -> vector<256x128xf32>
    %28 = arith.addf %19, %27 : vector<256x128xf32>
    %29 = arith.truncf %17 : vector<256x128xf32> to vector<256x128xbf16>
    %c0_10 = arith.constant 0 : index
    %c1 = arith.constant 1 : index
    %c0_11 = arith.constant 0 : index
    %c0_12 = arith.constant 0 : index
    %30 = vector.load %arg2[%c0_10, %c1, %c0_11, %c0_12] : memref<3x3x128x128xbf16, #tpu.memory_space<vmem>>, vector<1x1x128x128xbf16>
    %31 = vector.shape_cast %30 : vector<1x1x128x128xbf16> to vector<128x128xbf16>
    %cst_13 = arith.constant dense<0.000000e+00> : vector<256x128xf32>
    %32 = tpu.matmul %29, %31, %cst_13 {dimension_numbers = #tpu.dot_dimension_numbers<[1], [0], [0], [1], [0, 0, 1, 1], [], []>} : vector<256x128xbf16>, vector<128x128xbf16>, vector<256x128xf32> -> vector<256x128xf32>
    %33 = arith.addf %28, %32 : vector<256x128xf32>
    %34 = arith.truncf %23 : vector<256x128xf32> to vector<256x128xbf16>
    %c0_14 = arith.constant 0 : index
    %c2 = arith.constant 2 : index
    %c0_15 = arith.constant 0 : index
    %c0_16 = arith.constant 0 : index
    %35 = vector.load %arg2[%c0_14, %c2, %c0_15, %c0_16] : memref<3x3x128x128xbf16, #tpu.memory_space<vmem>>, vector<1x1x128x128xbf16>
    %36 = vector.shape_cast %35 : vector<1x1x128x128xbf16> to vector<128x128xbf16>
    %cst_17 = arith.constant dense<0.000000e+00> : vector<256x128xf32>
    %37 = tpu.matmul %34, %36, %cst_17 {dimension_numbers = #tpu.dot_dimension_numbers<[1], [0], [0], [1], [0, 0, 1, 1], [], []>} : vector<256x128xbf16>, vector<128x128xbf16>, vector<256x128xf32> -> vector<256x128xf32>
    %38 = arith.addf %33, %37 : vector<256x128xf32>
    %c1_i32_18 = arith.constant 1 : i32
    %39 = tpu.dynamic_rotate %2 by %c1_i32_18 dim 0 : vector<256x128xf32>, i32 -> vector<256x128xf32>
    %c255_i32_19 = arith.constant 255 : i32
    %40 = tpu.dynamic_rotate %2 by %c255_i32_19 dim 0 : vector<256x128xf32>, i32 -> vector<256x128xf32>
    %41 = arith.select %12, %40, %39 : vector<256x128xi1>, vector<256x128xf32>
    %42 = arith.select %14, %39, %40 : vector<256x128xi1>, vector<256x128xf32>
    %43 = arith.truncf %41 : vector<256x128xf32> to vector<256x128xbf16>
    %c1_20 = arith.constant 1 : index
    %c0_21 = arith.constant 0 : index
    %c0_22 = arith.constant 0 : index
    %c0_23 = arith.constant 0 : index
    %44 = vector.load %arg2[%c1_20, %c0_21, %c0_22, %c0_23] : memref<3x3x128x128xbf16, #tpu.memory_space<vmem>>, vector<1x1x128x128xbf16>
    %45 = vector.shape_cast %44 : vector<1x1x128x128xbf16> to vector<128x128xbf16>
    %cst_24 = arith.constant dense<0.000000e+00> : vector<256x128xf32>
    %46 = tpu.matmul %43, %45, %cst_24 {dimension_numbers = #tpu.dot_dimension_numbers<[1], [0], [0], [1], [0, 0, 1, 1], [], []>} : vector<256x128xbf16>, vector<128x128xbf16>, vector<256x128xf32> -> vector<256x128xf32>
    %47 = arith.addf %38, %46 : vector<256x128xf32>
    %48 = arith.truncf %2 : vector<256x128xf32> to vector<256x128xbf16>
    %c1_25 = arith.constant 1 : index
    %c1_26 = arith.constant 1 : index
    %c0_27 = arith.constant 0 : index
    %c0_28 = arith.constant 0 : index
    %49 = vector.load %arg2[%c1_25, %c1_26, %c0_27, %c0_28] : memref<3x3x128x128xbf16, #tpu.memory_space<vmem>>, vector<1x1x128x128xbf16>
    %50 = vector.shape_cast %49 : vector<1x1x128x128xbf16> to vector<128x128xbf16>
    %cst_29 = arith.constant dense<0.000000e+00> : vector<256x128xf32>
    %51 = tpu.matmul %48, %50, %cst_29 {dimension_numbers = #tpu.dot_dimension_numbers<[1], [0], [0], [1], [0, 0, 1, 1], [], []>} : vector<256x128xbf16>, vector<128x128xbf16>, vector<256x128xf32> -> vector<256x128xf32>
    %52 = arith.addf %47, %51 : vector<256x128xf32>
    %53 = arith.truncf %42 : vector<256x128xf32> to vector<256x128xbf16>
    %c1_30 = arith.constant 1 : index
    %c2_31 = arith.constant 2 : index
    %c0_32 = arith.constant 0 : index
    %c0_33 = arith.constant 0 : index
    %54 = vector.load %arg2[%c1_30, %c2_31, %c0_32, %c0_33] : memref<3x3x128x128xbf16, #tpu.memory_space<vmem>>, vector<1x1x128x128xbf16>
    %55 = vector.shape_cast %54 : vector<1x1x128x128xbf16> to vector<128x128xbf16>
    %cst_34 = arith.constant dense<0.000000e+00> : vector<256x128xf32>
    %56 = tpu.matmul %53, %55, %cst_34 {dimension_numbers = #tpu.dot_dimension_numbers<[1], [0], [0], [1], [0, 0, 1, 1], [], []>} : vector<256x128xbf16>, vector<128x128xbf16>, vector<256x128xf32> -> vector<256x128xf32>
    %57 = arith.addf %52, %56 : vector<256x128xf32>
    %c1_i32_35 = arith.constant 1 : i32
    %58 = tpu.dynamic_rotate %18 by %c1_i32_35 dim 0 : vector<256x128xf32>, i32 -> vector<256x128xf32>
    %c255_i32_36 = arith.constant 255 : i32
    %59 = tpu.dynamic_rotate %18 by %c255_i32_36 dim 0 : vector<256x128xf32>, i32 -> vector<256x128xf32>
    %60 = arith.select %12, %59, %58 : vector<256x128xi1>, vector<256x128xf32>
    %61 = arith.select %14, %58, %59 : vector<256x128xi1>, vector<256x128xf32>
    %62 = arith.truncf %60 : vector<256x128xf32> to vector<256x128xbf16>
    %c2_37 = arith.constant 2 : index
    %c0_38 = arith.constant 0 : index
    %c0_39 = arith.constant 0 : index
    %c0_40 = arith.constant 0 : index
    %63 = vector.load %arg2[%c2_37, %c0_38, %c0_39, %c0_40] : memref<3x3x128x128xbf16, #tpu.memory_space<vmem>>, vector<1x1x128x128xbf16>
    %64 = vector.shape_cast %63 : vector<1x1x128x128xbf16> to vector<128x128xbf16>
    %cst_41 = arith.constant dense<0.000000e+00> : vector<256x128xf32>
    %65 = tpu.matmul %62, %64, %cst_41 {dimension_numbers = #tpu.dot_dimension_numbers<[1], [0], [0], [1], [0, 0, 1, 1], [], []>} : vector<256x128xbf16>, vector<128x128xbf16>, vector<256x128xf32> -> vector<256x128xf32>
    %66 = arith.addf %57, %65 : vector<256x128xf32>
    %67 = arith.truncf %18 : vector<256x128xf32> to vector<256x128xbf16>
    %c2_42 = arith.constant 2 : index
    %c1_43 = arith.constant 1 : index
    %c0_44 = arith.constant 0 : index
    %c0_45 = arith.constant 0 : index
    %68 = vector.load %arg2[%c2_42, %c1_43, %c0_44, %c0_45] : memref<3x3x128x128xbf16, #tpu.memory_space<vmem>>, vector<1x1x128x128xbf16>
    %69 = vector.shape_cast %68 : vector<1x1x128x128xbf16> to vector<128x128xbf16>
    %cst_46 = arith.constant dense<0.000000e+00> : vector<256x128xf32>
    %70 = tpu.matmul %67, %69, %cst_46 {dimension_numbers = #tpu.dot_dimension_numbers<[1], [0], [0], [1], [0, 0, 1, 1], [], []>} : vector<256x128xbf16>, vector<128x128xbf16>, vector<256x128xf32> -> vector<256x128xf32>
    %71 = arith.addf %66, %70 : vector<256x128xf32>
    %72 = arith.truncf %61 : vector<256x128xf32> to vector<256x128xbf16>
    %c2_47 = arith.constant 2 : index
    %c2_48 = arith.constant 2 : index
    %c0_49 = arith.constant 0 : index
    %c0_50 = arith.constant 0 : index
    %73 = vector.load %arg2[%c2_47, %c2_48, %c0_49, %c0_50] : memref<3x3x128x128xbf16, #tpu.memory_space<vmem>>, vector<1x1x128x128xbf16>
    %74 = vector.shape_cast %73 : vector<1x1x128x128xbf16> to vector<128x128xbf16>
    %cst_51 = arith.constant dense<0.000000e+00> : vector<256x128xf32>
    %75 = tpu.matmul %72, %74, %cst_51 {dimension_numbers = #tpu.dot_dimension_numbers<[1], [0], [0], [1], [0, 0, 1, 1], [], []>} : vector<256x128xbf16>, vector<128x128xbf16>, vector<256x128xf32> -> vector<256x128xf32>
    %76 = arith.addf %71, %75 : vector<256x128xf32>
    %cst_52 = arith.constant dense<0.000000e+00> : vector<128xf32>
    %77 = vector.multi_reduction <add>, %76, %cst_52 [0] : vector<256x128xf32> to vector<128xf32>
    %78 = vector.shape_cast %77 : vector<128xf32> to vector<1x128xf32>
    %cst_53 = arith.constant 3.906250e-03 : f32
    %79 = vector.broadcast %cst_53 : f32 to vector<1x128xf32>
    %80 = arith.mulf %78, %79 : vector<1x128xf32>
    %81 = arith.mulf %76, %76 : vector<256x128xf32>
    %cst_54 = arith.constant dense<0.000000e+00> : vector<128xf32>
    %82 = vector.multi_reduction <add>, %81, %cst_54 [0] : vector<256x128xf32> to vector<128xf32>
    %83 = vector.shape_cast %82 : vector<128xf32> to vector<1x128xf32>
    %cst_55 = arith.constant 3.906250e-03 : f32
    %84 = vector.broadcast %cst_55 : f32 to vector<1x128xf32>
    %85 = arith.mulf %83, %84 : vector<1x128xf32>
    %86 = arith.mulf %80, %80 : vector<1x128xf32>
    %87 = arith.subf %85, %86 : vector<1x128xf32>
    %cst_56 = arith.constant 0.000000e+00 : f32
    %88 = vector.broadcast %cst_56 : f32 to vector<1x128xf32>
    %89 = arith.maximumf %87, %88 : vector<1x128xf32>
    %90 = vector.broadcast %80 : vector<1x128xf32> to vector<256x128xf32>
    %91 = arith.subf %76, %90 : vector<256x128xf32>
    %cst_57 = arith.constant 9.99999974E-6 : f32
    %92 = vector.broadcast %cst_57 : f32 to vector<1x128xf32>
    %93 = arith.addf %89, %92 : vector<1x128xf32>
    %94 = math.rsqrt %93 : vector<1x128xf32>
    %95 = vector.broadcast %94 : vector<1x128xf32> to vector<256x128xf32>
    %96 = arith.mulf %91, %95 : vector<256x128xf32>
    %cst_58 = arith.constant 0.000000e+00 : f32
    %97 = vector.broadcast %cst_58 : f32 to vector<256x128xf32>
    %98 = arith.maximumf %96, %97 : vector<256x128xf32>
    %c16_i32_59 = arith.constant 16 : i32
    %99 = tpu.dynamic_rotate %98 by %c16_i32_59 dim 0 : vector<256x128xf32>, i32 -> vector<256x128xf32>
    %c240_i32_60 = arith.constant 240 : i32
    %100 = tpu.dynamic_rotate %98 by %c240_i32_60 dim 0 : vector<256x128xf32>, i32 -> vector<256x128xf32>
    %101 = arith.select %8, %100, %99 : vector<256x128xi1>, vector<256x128xf32>
    %102 = arith.select %10, %99, %100 : vector<256x128xi1>, vector<256x128xf32>
    %cst_61 = arith.constant 0.000000e+00 : f32
    %103 = vector.broadcast %cst_61 : f32 to vector<256x128xf32>
    %c1_i32_62 = arith.constant 1 : i32
    %104 = tpu.dynamic_rotate %101 by %c1_i32_62 dim 0 : vector<256x128xf32>, i32 -> vector<256x128xf32>
    %c255_i32_63 = arith.constant 255 : i32
    %105 = tpu.dynamic_rotate %101 by %c255_i32_63 dim 0 : vector<256x128xf32>, i32 -> vector<256x128xf32>
    %106 = arith.select %12, %105, %104 : vector<256x128xi1>, vector<256x128xf32>
    %107 = arith.select %14, %104, %105 : vector<256x128xi1>, vector<256x128xf32>
    %108 = arith.truncf %106 : vector<256x128xf32> to vector<256x128xbf16>
    %c0_64 = arith.constant 0 : index
    %c0_65 = arith.constant 0 : index
    %c0_66 = arith.constant 0 : index
    %c0_67 = arith.constant 0 : index
    %109 = vector.load %arg3[%c0_64, %c0_65, %c0_66, %c0_67] : memref<3x3x128x128xbf16, #tpu.memory_space<vmem>>, vector<1x1x128x128xbf16>
    %110 = vector.shape_cast %109 : vector<1x1x128x128xbf16> to vector<128x128xbf16>
    %cst_68 = arith.constant dense<0.000000e+00> : vector<256x128xf32>
    %111 = tpu.matmul %108, %110, %cst_68 {dimension_numbers = #tpu.dot_dimension_numbers<[1], [0], [0], [1], [0, 0, 1, 1], [], []>} : vector<256x128xbf16>, vector<128x128xbf16>, vector<256x128xf32> -> vector<256x128xf32>
    %112 = arith.addf %103, %111 : vector<256x128xf32>
    %113 = arith.truncf %101 : vector<256x128xf32> to vector<256x128xbf16>
    %c0_69 = arith.constant 0 : index
    %c1_70 = arith.constant 1 : index
    %c0_71 = arith.constant 0 : index
    %c0_72 = arith.constant 0 : index
    %114 = vector.load %arg3[%c0_69, %c1_70, %c0_71, %c0_72] : memref<3x3x128x128xbf16, #tpu.memory_space<vmem>>, vector<1x1x128x128xbf16>
    %115 = vector.shape_cast %114 : vector<1x1x128x128xbf16> to vector<128x128xbf16>
    %cst_73 = arith.constant dense<0.000000e+00> : vector<256x128xf32>
    %116 = tpu.matmul %113, %115, %cst_73 {dimension_numbers = #tpu.dot_dimension_numbers<[1], [0], [0], [1], [0, 0, 1, 1], [], []>} : vector<256x128xbf16>, vector<128x128xbf16>, vector<256x128xf32> -> vector<256x128xf32>
    %117 = arith.addf %112, %116 : vector<256x128xf32>
    %118 = arith.truncf %107 : vector<256x128xf32> to vector<256x128xbf16>
    %c0_74 = arith.constant 0 : index
    %c2_75 = arith.constant 2 : index
    %c0_76 = arith.constant 0 : index
    %c0_77 = arith.constant 0 : index
    %119 = vector.load %arg3[%c0_74, %c2_75, %c0_76, %c0_77] : memref<3x3x128x128xbf16, #tpu.memory_space<vmem>>, vector<1x1x128x128xbf16>
    %120 = vector.shape_cast %119 : vector<1x1x128x128xbf16> to vector<128x128xbf16>
    %cst_78 = arith.constant dense<0.000000e+00> : vector<256x128xf32>
    %121 = tpu.matmul %118, %120, %cst_78 {dimension_numbers = #tpu.dot_dimension_numbers<[1], [0], [0], [1], [0, 0, 1, 1], [], []>} : vector<256x128xbf16>, vector<128x128xbf16>, vector<256x128xf32> -> vector<256x128xf32>
    %122 = arith.addf %117, %121 : vector<256x128xf32>
    %c1_i32_79 = arith.constant 1 : i32
    %123 = tpu.dynamic_rotate %98 by %c1_i32_79 dim 0 : vector<256x128xf32>, i32 -> vector<256x128xf32>
    %c255_i32_80 = arith.constant 255 : i32
    %124 = tpu.dynamic_rotate %98 by %c255_i32_80 dim 0 : vector<256x128xf32>, i32 -> vector<256x128xf32>
    %125 = arith.select %12, %124, %123 : vector<256x128xi1>, vector<256x128xf32>
    %126 = arith.select %14, %123, %124 : vector<256x128xi1>, vector<256x128xf32>
    %127 = arith.truncf %125 : vector<256x128xf32> to vector<256x128xbf16>
    %c1_81 = arith.constant 1 : index
    %c0_82 = arith.constant 0 : index
    %c0_83 = arith.constant 0 : index
    %c0_84 = arith.constant 0 : index
    %128 = vector.load %arg3[%c1_81, %c0_82, %c0_83, %c0_84] : memref<3x3x128x128xbf16, #tpu.memory_space<vmem>>, vector<1x1x128x128xbf16>
    %129 = vector.shape_cast %128 : vector<1x1x128x128xbf16> to vector<128x128xbf16>
    %cst_85 = arith.constant dense<0.000000e+00> : vector<256x128xf32>
    %130 = tpu.matmul %127, %129, %cst_85 {dimension_numbers = #tpu.dot_dimension_numbers<[1], [0], [0], [1], [0, 0, 1, 1], [], []>} : vector<256x128xbf16>, vector<128x128xbf16>, vector<256x128xf32> -> vector<256x128xf32>
    %131 = arith.addf %122, %130 : vector<256x128xf32>
    %132 = arith.truncf %98 : vector<256x128xf32> to vector<256x128xbf16>
    %c1_86 = arith.constant 1 : index
    %c1_87 = arith.constant 1 : index
    %c0_88 = arith.constant 0 : index
    %c0_89 = arith.constant 0 : index
    %133 = vector.load %arg3[%c1_86, %c1_87, %c0_88, %c0_89] : memref<3x3x128x128xbf16, #tpu.memory_space<vmem>>, vector<1x1x128x128xbf16>
    %134 = vector.shape_cast %133 : vector<1x1x128x128xbf16> to vector<128x128xbf16>
    %cst_90 = arith.constant dense<0.000000e+00> : vector<256x128xf32>
    %135 = tpu.matmul %132, %134, %cst_90 {dimension_numbers = #tpu.dot_dimension_numbers<[1], [0], [0], [1], [0, 0, 1, 1], [], []>} : vector<256x128xbf16>, vector<128x128xbf16>, vector<256x128xf32> -> vector<256x128xf32>
    %136 = arith.addf %131, %135 : vector<256x128xf32>
    %137 = arith.truncf %126 : vector<256x128xf32> to vector<256x128xbf16>
    %c1_91 = arith.constant 1 : index
    %c2_92 = arith.constant 2 : index
    %c0_93 = arith.constant 0 : index
    %c0_94 = arith.constant 0 : index
    %138 = vector.load %arg3[%c1_91, %c2_92, %c0_93, %c0_94] : memref<3x3x128x128xbf16, #tpu.memory_space<vmem>>, vector<1x1x128x128xbf16>
    %139 = vector.shape_cast %138 : vector<1x1x128x128xbf16> to vector<128x128xbf16>
    %cst_95 = arith.constant dense<0.000000e+00> : vector<256x128xf32>
    %140 = tpu.matmul %137, %139, %cst_95 {dimension_numbers = #tpu.dot_dimension_numbers<[1], [0], [0], [1], [0, 0, 1, 1], [], []>} : vector<256x128xbf16>, vector<128x128xbf16>, vector<256x128xf32> -> vector<256x128xf32>
    %141 = arith.addf %136, %140 : vector<256x128xf32>
    %c1_i32_96 = arith.constant 1 : i32
    %142 = tpu.dynamic_rotate %102 by %c1_i32_96 dim 0 : vector<256x128xf32>, i32 -> vector<256x128xf32>
    %c255_i32_97 = arith.constant 255 : i32
    %143 = tpu.dynamic_rotate %102 by %c255_i32_97 dim 0 : vector<256x128xf32>, i32 -> vector<256x128xf32>
    %144 = arith.select %12, %143, %142 : vector<256x128xi1>, vector<256x128xf32>
    %145 = arith.select %14, %142, %143 : vector<256x128xi1>, vector<256x128xf32>
    %146 = arith.truncf %144 : vector<256x128xf32> to vector<256x128xbf16>
    %c2_98 = arith.constant 2 : index
    %c0_99 = arith.constant 0 : index
    %c0_100 = arith.constant 0 : index
    %c0_101 = arith.constant 0 : index
    %147 = vector.load %arg3[%c2_98, %c0_99, %c0_100, %c0_101] : memref<3x3x128x128xbf16, #tpu.memory_space<vmem>>, vector<1x1x128x128xbf16>
    %148 = vector.shape_cast %147 : vector<1x1x128x128xbf16> to vector<128x128xbf16>
    %cst_102 = arith.constant dense<0.000000e+00> : vector<256x128xf32>
    %149 = tpu.matmul %146, %148, %cst_102 {dimension_numbers = #tpu.dot_dimension_numbers<[1], [0], [0], [1], [0, 0, 1, 1], [], []>} : vector<256x128xbf16>, vector<128x128xbf16>, vector<256x128xf32> -> vector<256x128xf32>
    %150 = arith.addf %141, %149 : vector<256x128xf32>
    %151 = arith.truncf %102 : vector<256x128xf32> to vector<256x128xbf16>
    %c2_103 = arith.constant 2 : index
    %c1_104 = arith.constant 1 : index
    %c0_105 = arith.constant 0 : index
    %c0_106 = arith.constant 0 : index
    %152 = vector.load %arg3[%c2_103, %c1_104, %c0_105, %c0_106] : memref<3x3x128x128xbf16, #tpu.memory_space<vmem>>, vector<1x1x128x128xbf16>
    %153 = vector.shape_cast %152 : vector<1x1x128x128xbf16> to vector<128x128xbf16>
    %cst_107 = arith.constant dense<0.000000e+00> : vector<256x128xf32>
    %154 = tpu.matmul %151, %153, %cst_107 {dimension_numbers = #tpu.dot_dimension_numbers<[1], [0], [0], [1], [0, 0, 1, 1], [], []>} : vector<256x128xbf16>, vector<128x128xbf16>, vector<256x128xf32> -> vector<256x128xf32>
    %155 = arith.addf %150, %154 : vector<256x128xf32>
    %156 = arith.truncf %145 : vector<256x128xf32> to vector<256x128xbf16>
    %c2_108 = arith.constant 2 : index
    %c2_109 = arith.constant 2 : index
    %c0_110 = arith.constant 0 : index
    %c0_111 = arith.constant 0 : index
    %157 = vector.load %arg3[%c2_108, %c2_109, %c0_110, %c0_111] : memref<3x3x128x128xbf16, #tpu.memory_space<vmem>>, vector<1x1x128x128xbf16>
    %158 = vector.shape_cast %157 : vector<1x1x128x128xbf16> to vector<128x128xbf16>
    %cst_112 = arith.constant dense<0.000000e+00> : vector<256x128xf32>
    %159 = tpu.matmul %156, %158, %cst_112 {dimension_numbers = #tpu.dot_dimension_numbers<[1], [0], [0], [1], [0, 0, 1, 1], [], []>} : vector<256x128xbf16>, vector<128x128xbf16>, vector<256x128xf32> -> vector<256x128xf32>
    %160 = arith.addf %155, %159 : vector<256x128xf32>
    %cst_113 = arith.constant dense<0.000000e+00> : vector<128xf32>
    %161 = vector.multi_reduction <add>, %160, %cst_113 [0] : vector<256x128xf32> to vector<128xf32>
    %162 = vector.shape_cast %161 : vector<128xf32> to vector<1x128xf32>
    %cst_114 = arith.constant 3.906250e-03 : f32
    %163 = vector.broadcast %cst_114 : f32 to vector<1x128xf32>
    %164 = arith.mulf %162, %163 : vector<1x128xf32>
    %165 = arith.mulf %160, %160 : vector<256x128xf32>
    %cst_115 = arith.constant dense<0.000000e+00> : vector<128xf32>
    %166 = vector.multi_reduction <add>, %165, %cst_115 [0] : vector<256x128xf32> to vector<128xf32>
    %167 = vector.shape_cast %166 : vector<128xf32> to vector<1x128xf32>
    %cst_116 = arith.constant 3.906250e-03 : f32
    %168 = vector.broadcast %cst_116 : f32 to vector<1x128xf32>
    %169 = arith.mulf %167, %168 : vector<1x128xf32>
    %170 = arith.mulf %164, %164 : vector<1x128xf32>
    %171 = arith.subf %169, %170 : vector<1x128xf32>
    %cst_117 = arith.constant 0.000000e+00 : f32
    %172 = vector.broadcast %cst_117 : f32 to vector<1x128xf32>
    %173 = arith.maximumf %171, %172 : vector<1x128xf32>
    %174 = vector.broadcast %164 : vector<1x128xf32> to vector<256x128xf32>
    %175 = arith.subf %160, %174 : vector<256x128xf32>
    %cst_118 = arith.constant 9.99999974E-6 : f32
    %176 = vector.broadcast %cst_118 : f32 to vector<1x128xf32>
    %177 = arith.addf %173, %176 : vector<1x128xf32>
    %178 = math.rsqrt %177 : vector<1x128xf32>
    %179 = vector.broadcast %178 : vector<1x128xf32> to vector<256x128xf32>
    %180 = arith.mulf %175, %179 : vector<256x128xf32>
    %181 = arith.addf %2, %180 : vector<256x128xf32>
    %182 = vector.shape_cast %181 : vector<256x128xf32> to vector<1x16x16x128xf32>
    %c0_119 = arith.constant 0 : index
    %c0_120 = arith.constant 0 : index
    %c0_121 = arith.constant 0 : index
    %c0_122 = arith.constant 0 : index
    %183 = vector.load %arg4[%c0_119, %c0_120, %c0_121, %c0_122] : memref<1x16x16x128xf32, #tpu.memory_space<vmem>>, vector<1x16x16x128xf32>
    tpu.vector_store %arg4[%c0_119, %c0_120, %c0_121, %c0_122], %182 {strides = array<i32>} : memref<1x16x16x128xf32, #tpu.memory_space<vmem>>, vector<1x16x16x128xf32>,
    return
  }
  func.func @transform_0(%arg0: i32) -> (i32, i32, i32, i32) {
    %c0_i32 = arith.constant 0 : i32
    %c0_i32_0 = arith.constant 0 : i32
    %c0_i32_1 = arith.constant 0 : i32
    %c0_i32_2 = arith.constant 0 : i32
    return %arg0, %c0_i32, %c0_i32_0, %c0_i32_1 : i32, i32, i32, i32
  }
  func.func @transform_1(%arg0: i32) -> (i32, i32, i32, i32) {
    %c0_i32 = arith.constant 0 : i32
    %c0_i32_0 = arith.constant 0 : i32
    %c0_i32_1 = arith.constant 0 : i32
    %c0_i32_2 = arith.constant 0 : i32
    %c0_i32_3 = arith.constant 0 : i32
    return %c0_i32, %c0_i32_0, %c0_i32_1, %c0_i32_2 : i32, i32, i32, i32
  }
  func.func @transform_2(%arg0: i32) -> (i32, i32, i32, i32) {
    %c0_i32 = arith.constant 0 : i32
    %c0_i32_0 = arith.constant 0 : i32
    %c0_i32_1 = arith.constant 0 : i32
    %c0_i32_2 = arith.constant 0 : i32
    %c0_i32_3 = arith.constant 0 : i32
    return %c0_i32, %c0_i32_0, %c0_i32_1, %c0_i32_2 : i32, i32, i32, i32
  }
  func.func @transform_3(%arg0: i32) -> (i32, i32, i32, i32) {
    %c0_i32 = arith.constant 0 : i32
    %c0_i32_0 = arith.constant 0 : i32
    %c0_i32_1 = arith.constant 0 : i32
    %c0_i32_2 = arith.constant 0 : i32
    return %arg0, %c0_i32, %c0_i32_0, %c0_i32_1 : i32, i32, i32, i32
  }
}

</mosaic_0001>

<llo_original>
// kernel: resnet_block_forward.1
$region0: #{resnet_block_forward.1}
  #allocation0 [shape = 'u32[]', space=smem, size = 0x4, offset = 0x4, fixed_abs, tag = 'smem constant byte address 0x4 - core index']
  #allocation1 [shape = 'u32[144,128]{1,0:T(1,128)}', space=vmem, size = 0x12000, scoped, tag = 'internal scratch']
  %s0 = inlined_call_operand.vmem [shape: f32[2,16,16,128], index: 0, kind: input, shape index: {}]
  %s1 = inlined_call_operand.vmem [shape: bf16[3,3,128,128], index: 1, kind: input, shape index: {}]
  %s2 = inlined_call_operand.vmem [shape: bf16[3,3,128,128], index: 2, kind: input, shape index: {}]
  %s3 = inlined_call_operand.vmem [shape: f32[2,16,16,128], index: 3, kind: output, shape index: {}]
  %s4 = sld [smem:[#allocation0]]
  $region45: #{resnet_block_forward.1} parent=0
    _
  %s6 = ssub.s32 1, %s4
  %s7 = scalar_select 0, %s6, %s4
  loop: start=0, step=1, limit=4
  $region2: #{resnet_block_forward.1} parent=0 // loop_pre_header
    _
  $region3: #{resnet_block_forward.1} parent=0 // loop_header
    %s9 = sphi 0, %s13
    %p10 = scmp.ge.s32.totalorder %s9, 4
    %s19 = sphi 0, %s21
    %s22 = sphi 0, %s19
    %s23 = sphi 0, %s22
    %s39 = sphi 0, %s23
    %s43 = sphi 0, %s43
    %s45 = sphi 0, %s43
    %s46 = sphi 0, %s45
    %s60 = sphi 0, %s46
    %s64 = sphi 0, %s64
    %s66 = sphi 0, %s64
    %s67 = sphi 0, %s66
    %s81 = sphi 0, %s67
    %s87 = sphi 0, %s89
    %s90 = sphi 0, %s87
    %s91 = sphi 0, %s90
    %s107 = sphi 0, %s91
  $region4: #{resnet_block_forward.1} parent=0 // loop_header_branch
    %12 = sbr.rel (%p10) target = $region8
  $region5: #{resnet_block_forward.1} parent=0 // loop_body
    %s14 = ssub.s32 %s9, 1
    %s15 = ssub.s32 %s9, 2
    %s16 = sadd.s32 %s9, 1
    %s17 = ssub.s32 %s9, %s16
    %p18 = scmp.eq.s32.totalorder %s17, 0
    %s20 = sadd.s32 %s19, 1
    %s21 = scalar_select %p18, %s19, %s20
    %p24 = pneg %p18
    %p25 = scmp.eq.s32.totalorder %s9, 1
    %p26 = por %p24, %p25
    %p27 = scmp.ne.s32.totalorder %s19, %s22
    %p28 = scmp.eq.s32.totalorder %s9, 0
    %p29 = por %p27, %p28
    %p30 = scmp.ne.s32.totalorder %s19, %s22
    %p31 = scmp.eq.s32.totalorder %s14, 1
    %p32 = por %p30, %p31
    %p33 = scmp.ne.s32.totalorder %s22, %s23
    %p34 = scmp.eq.s32.totalorder %s14, 0
    %p35 = por %p33, %p34
    %p36 = scmp.ne.s32.totalorder %s22, %s23
    %p37 = scmp.eq.s32.totalorder %s15, 1
    %p38 = por %p36, %p37
    %p40 = scmp.ne.s32.totalorder %s23, %s39
    %p41 = scmp.eq.s32.totalorder %s15, 0
    %p42 = por %p40, %p41
    %s44 = sadd.s32 %s43, 1
    %p47 = scmp.eq.s32.totalorder %s9, 1
    %p48 = scmp.ne.s32.totalorder %s43, %s45
    %p49 = scmp.eq.s32.totalorder %s9, 0
    %p50 = por %p48, %p49
    %p51 = scmp.ne.s32.totalorder %s43, %s45
    %p52 = scmp.eq.s32.totalorder %s14, 1
    %p53 = por %p51, %p52
    %p54 = scmp.ne.s32.totalorder %s45, %s46
    %p55 = scmp.eq.s32.totalorder %s14, 0
    %p56 = por %p54, %p55
    %p57 = scmp.ne.s32.totalorder %s45, %s46
    %p58 = scmp.eq.s32.totalorder %s15, 1
    %p59 = por %p57, %p58
    %p61 = scmp.ne.s32.totalorder %s46, %s60
    %p62 = scmp.eq.s32.totalorder %s15, 0
    %p63 = por %p61, %p62
    %s65 = sadd.s32 %s64, 1
    %p68 = scmp.eq.s32.totalorder %s9, 1
    %p69 = scmp.ne.s32.totalorder %s64, %s66
    %p70 = scmp.eq.s32.totalorder %s9, 0
    %p71 = por %p69, %p70
    %p72 = scmp.ne.s32.totalorder %s64, %s66
    %p73 = scmp.eq.s32.totalorder %s14, 1
    %p74 = por %p72, %p73
    %p75 = scmp.ne.s32.totalorder %s66, %s67
    %p76 = scmp.eq.s32.totalorder %s14, 0
    %p77 = por %p75, %p76
    %p78 = scmp.ne.s32.totalorder %s66, %s67
    %p79 = scmp.eq.s32.totalorder %s15, 1
    %p80 = por %p78, %p79
    %p82 = scmp.ne.s32.totalorder %s67, %s81
    %p83 = scmp.eq.s32.totalorder %s15, 0
    %p84 = por %p82, %p83
    %s85 = ssub.s32 %s9, %s16
    %p86 = scmp.eq.s32.totalorder %s85, 0
    %s88 = sadd.s32 %s87, 1
    %s89 = scalar_select %p86, %s87, %s88
    %p92 = pneg %p86
    %p93 = scmp.eq.s32.totalorder %s9, 1
    %p94 = por %p92, %p93
    %p95 = scmp.ne.s32.totalorder %s87, %s90
    %p96 = scmp.eq.s32.totalorder %s9, 0
    %p97 = por %p95, %p96
    %p98 = scmp.ne.s32.totalorder %s87, %s90
    %p99 = scmp.eq.s32.totalorder %s14, 1
    %p100 = por %p98, %p99
    %p101 = scmp.ne.s32.totalorder %s90, %s91
    %p102 = scmp.eq.s32.totalorder %s14, 0
    %p103 = por %p101, %p102
    %p104 = scmp.ne.s32.totalorder %s90, %s91
    %p105 = scmp.eq.s32.totalorder %s15, 1
    %p106 = por %p104, %p105
    %p108 = scmp.ne.s32.totalorder %s91, %s107
    %p109 = scmp.eq.s32.totalorder %s15, 0
    %p110 = por %p108, %p109
    %p111 = scmp.le.s32.totalorder 1, %s9
    %p112 = scmp.lt.s32.totalorder %s9, 3
    %p113 = pnand %p111, %p112
    %p114 = pneg %p113
    // Predicated region
    $region9: #{resnet_block_forward.1} parent=5 // pred_check
      _
    $region10: #{resnet_block_forward.1} parent=5 // pred_check_branch
      %116 = sbr.rel (%p113) target = $region12
    $region11: #{resnet_block_forward.1} parent=5 // pred_region
      %s117 = ssub.s32 %s9, 1
      // Predicated region
      $region13: #{resnet_block_forward.1} parent=11 // pred_check
        %p118 = pneg %p56
      $region14: #{resnet_block_forward.1} parent=11 // pred_check_branch
        %120 = sbr.rel (%p118) target = $region16
      $region15: #{resnet_block_forward.1} parent=11 // pred_region
        _
      $region16: #{resnet_block_forward.1} parent=11 // pred_fallthru
        _
      // Predicated region
      $region17: #{resnet_block_forward.1} parent=11 // pred_check
        %p121 = pneg %p77
      $region18: #{resnet_block_forward.1} parent=11 // pred_check_branch
        %123 = sbr.rel (%p121) target = $region20
      $region19: #{resnet_block_forward.1} parent=11 // pred_region
        _
      $region20: #{resnet_block_forward.1} parent=11 // pred_fallthru
        _
    $region12: #{resnet_block_forward.1} parent=5 // pred_fallthru
      _
    %p124 = scmp.lt.s32.totalorder %s9, 2
    // Predicated region
    $region21: #{resnet_block_forward.1} parent=5 // pred_check
      %p125 = pneg %p124
    $region22: #{resnet_block_forward.1} parent=5 // pred_check_branch
      %127 = sbr.rel (%p125) target = $region24
    $region23: #{resnet_block_forward.1} parent=5 // pred_region
      // Predicated region
      $region25: #{resnet_block_forward.1} parent=23 // pred_check
        %p128 = pneg %p29
      $region26: #{resnet_block_forward.1} parent=23 // pred_check_branch
        %130 = sbr.rel (%p128) target = $region28
      $region27: #{resnet_block_forward.1} parent=23 // pred_region
        %p131 = scmp.lt.s32.totalorder %s9, 1
        %s132 = scalar_select %p131, %s9, 1
        %s133 = smul.addr %s132, 32
        %s134 = smul.addr %s133, 8
        %s135 = scalar_lea.vmem %s0, %s134
      $region28: #{resnet_block_forward.1} parent=23 // pred_fallthru
        _
    $region24: #{resnet_block_forward.1} parent=5 // pred_fallthru
      _
    %p136 = scmp.le.s32.totalorder 1, %s9
    %p137 = scmp.lt.s32.totalorder %s9, 3
    %p138 = pnand %p136, %p137
    %p139 = pneg %p138
    // Predicated region
    $region29: #{resnet_block_forward.1} parent=5 // pred_check
      _
    $region30: #{resnet_block_forward.1} parent=5 // pred_check_branch
      %141 = sbr.rel (%p138) target = $region32
    $region31: #{resnet_block_forward.1} parent=5 // pred_region
      %s142 = ssub.s32 %s9, 1
      %p143 = scmp.lt.s32.totalorder %s14, 1
      %s144 = scalar_select %p143, %s14, 1
      %s145 = smul.addr %s144, 32
      %s146 = smul.addr %s145, 8
      %s147 = scalar_lea.vmem %s0, %s146
      %p148 = pneg %p35
      %p149 = pneg %p32
      %p150 = pneg %p56
      %p151 = pneg %p53
      %p152 = pneg %p77
      %p153 = pneg %p74
      %p154 = pneg %p103
      %p155 = pneg %p100
      %p156 = scmp.lt.s32.totalorder %s14, 1
      %s157 = scalar_select %p156, %s14, 1
      %s158 = smul.addr %s157, 32
      %s159 = smul.addr %s158, 8
      %s160 = scalar_lea.vmem %s3, %s159
      %p161 = scmp.lt.s32.totalorder %s14, 1
      %s162 = scalar_select %p161, %s14, 1
      %s163 = smul.addr %s162, 32
      %s164 = smul.addr %s163, 8
      %s165 = scalar_lea.vmem %s0, %s164
      %p166 = scmp.lt.s32.totalorder %s14, 1
      %s167 = scalar_select %p166, %s14, 1
      %s168 = smul.addr %s167, 32
      %s169 = smul.addr %s168, 8
      %s170 = scalar_lea.vmem %s3, %s169
      %v172 = vld [vmem:[%s165] sm:$0xff]
      %v173 = vld [vmem:[%s165 + $0x8] sm:$0xff]
      %v174 = vld [vmem:[%s165 + $0x10] sm:$0xff]
      %v175 = vld [vmem:[%s165 + $0x18] sm:$0xff]
      %v176 = vld [vmem:[%s165 + $0x20] sm:$0xff]
      %v177 = vld [vmem:[%s165 + $0x28] sm:$0xff]
      %v178 = vld [vmem:[%s165 + $0x30] sm:$0xff]
      %v179 = vld [vmem:[%s165 + $0x38] sm:$0xff]
      %v180 = vld [vmem:[%s165 + $0x40] sm:$0xff]
      %v181 = vld [vmem:[%s165 + $0x48] sm:$0xff]
      %v182 = vld [vmem:[%s165 + $0x50] sm:$0xff]
      %v183 = vld [vmem:[%s165 + $0x58] sm:$0xff]
      %v184 = vld [vmem:[%s165 + $0x60] sm:$0xff]
      %v185 = vld [vmem:[%s165 + $0x68] sm:$0xff]
      %v186 = vld [vmem:[%s165 + $0x70] sm:$0xff]
      %v187 = vld [vmem:[%s165 + $0x78] sm:$0xff]
      %v188 = vld [vmem:[%s165 + $0x80] sm:$0xff]
      %v189 = vld [vmem:[%s165 + $0x88] sm:$0xff]
      %v190 = vld [vmem:[%s165 + $0x90] sm:$0xff]
      %v191 = vld [vmem:[%s165 + $0x98] sm:$0xff]
      %v192 = vld [vmem:[%s165 + $0xa0] sm:$0xff]
      %v193 = vld [vmem:[%s165 + $0xa8] sm:$0xff]
      %v194 = vld [vmem:[%s165 + $0xb0] sm:$0xff]
      %v195 = vld [vmem:[%s165 + $0xb8] sm:$0xff]
      %v196 = vld [vmem:[%s165 + $0xc0] sm:$0xff]
      %v197 = vld [vmem:[%s165 + $0xc8] sm:$0xff]
      %v198 = vld [vmem:[%s165 + $0xd0] sm:$0xff]
      %v199 = vld [vmem:[%s165 + $0xd8] sm:$0xff]
      %v200 = vld [vmem:[%s165 + $0xe0] sm:$0xff]
      %v201 = vld [vmem:[%s165 + $0xe8] sm:$0xff]
      %v202 = vld [vmem:[%s165 + $0xf0] sm:$0xff]
      %v203 = vld [vmem:[%s165 + $0xf8] sm:$0xff]
      %v204 = vlaneseq
      %v205 = vshrl.u32 %v204, 7
      %v206 = vadd.s32 %v205, 8
      %vm207 = vcmp.eq.s32.totalorder %v205, 0
      %vm208 = vcmp.eq.s32.totalorder %v206, 0
      %vm209 = vcmp.eq.s32.totalorder %v205, 15
      %vm210 = vcmp.eq.s32.totalorder %v206, 15
      %v211 = vrot.slane %v174, 7
      %v212 = vrot.slane %v175, 7
      %v213 = vrot.slane %v172, 7
      %v214 = vrot.slane %v173, 7
      %v215 = vrot.slane %v176, 7
      %v216 = vrot.slane %v177, 7
      %v217 = vrot.slane %v178, 7
      %v218 = vrot.slane %v179, 7
      %v219 = vrot.slane %v180, 7
      %v220 = vrot.slane %v181, 7
      %v221 = vrot.slane %v182, 7
      %v222 = vrot.slane %v183, 7
      %v223 = vrot.slane %v184, 7
      %v224 = vrot.slane %v185, 7
      %v225 = vrot.slane %v186, 7
      %v226 = vrot.slane %v187, 7
      %v227 = vrot.slane %v188, 7
      %v228 = vrot.slane %v189, 7
      %v229 = vrot.slane %v190, 7
      %v230 = vrot.slane %v191, 7
      %v231 = vrot.slane %v192, 7
      %v232 = vrot.slane %v193, 7
      %v233 = vrot.slane %v194, 7
      %v234 = vrot.slane %v195, 7
      %v235 = vrot.slane %v196, 7
      %v236 = vrot.slane %v197, 7
      %v237 = vrot.slane %v198, 7
      %v238 = vrot.slane %v199, 7
      %v239 = vrot.slane %v200, 7
      %v240 = vrot.slane %v201, 7
      %vm241 = vcmp.lt.s32.totalorder %v205, 1
      %v242 = vsel %vm241, %v239, %v240
      %v243 = vsel %vm241, %v238, %v239
      %v244 = vsel %vm241, %v237, %v238
      %v245 = vsel %vm241, %v236, %v237
      %v246 = vsel %vm241, %v235, %v236
      %v247 = vsel %vm241, %v234, %v235
      %v248 = vsel %vm241, %v233, %v234
      %v249 = vsel %vm241, %v232, %v233
      %v250 = vsel %vm241, %v231, %v232
      %v251 = vsel %vm241, %v230, %v231
      %v252 = vsel %vm241, %v229, %v230
      %v253 = vsel %vm241, %v228, %v229
      %v254 = vsel %vm241, %v227, %v228
      %v255 = vsel %vm241, %v226, %v227
      %v256 = vsel %vm241, %v225, %v226
      %v257 = vsel %vm241, %v224, %v225
      %v258 = vsel %vm241, %v223, %v224
      %v259 = vsel %vm241, %v222, %v223
      %v260 = vsel %vm241, %v221, %v222
      %v261 = vsel %vm241, %v220, %v221
      %v262 = vsel %vm241, %v219, %v220
      %v263 = vsel %vm241, %v218, %v219
      %v264 = vsel %vm241, %v217, %v218
      %v265 = vsel %vm241, %v216, %v217
      %v266 = vsel %vm241, %v215, %v216
      %v267 = vsel %vm241, %v212, %v215
      %v268 = vsel %vm241, %v211, %v212
      %v269 = vsel %vm241, %v214, %v211
      %v270 = vsel %vm241, %v213, %v214
      %v271 = vsel %vm241, %v212, %v213
      %v272 = vsel %vm241, %v240, %v211
      %v273 = vrot.slane %v174, 1
      %v274 = vrot.slane %v175, 1
      %v275 = vrot.slane %v172, 1
      %v276 = vrot.slane %v173, 1
      %v277 = vrot.slane %v176, 1
      %v278 = vrot.slane %v177, 1
      %v279 = vrot.slane %v178, 1
      %v280 = vrot.slane %v179, 1
      %v281 = vrot.slane %v180, 1
      %v282 = vrot.slane %v181, 1
      %v283 = vrot.slane %v182, 1
      %v284 = vrot.slane %v183, 1
      %v285 = vrot.slane %v184, 1
      %v286 = vrot.slane %v185, 1
      %v287 = vrot.slane %v186, 1
      %v288 = vrot.slane %v187, 1
      %v289 = vrot.slane %v188, 1
      %v290 = vrot.slane %v189, 1
      %v291 = vrot.slane %v190, 1
      %v292 = vrot.slane %v191, 1
      %v293 = vrot.slane %v192, 1
      %v294 = vrot.slane %v193, 1
      %v295 = vrot.slane %v194, 1
      %v296 = vrot.slane %v195, 1
      %v297 = vrot.slane %v196, 1
      %v298 = vrot.slane %v197, 1
      %v299 = vrot.slane %v198, 1
      %v300 = vrot.slane %v199, 1
      %v301 = vrot.slane %v200, 1
      %v302 = vrot.slane %v201, 1
      %vm303 = vcmp.lt.s32.totalorder %v205, 7
      %v304 = vsel %vm303, %v301, %v302
      %v305 = vsel %vm303, %v300, %v301
      %v306 = vsel %vm303, %v299, %v300
      %v307 = vsel %vm303, %v298, %v299
      %v308 = vsel %vm303, %v297, %v298
      %v309 = vsel %vm303, %v296, %v297
      %v310 = vsel %vm303, %v295, %v296
      %v311 = vsel %vm303, %v294, %v295
      %v312 = vsel %vm303, %v293, %v294
      %v313 = vsel %vm303, %v292, %v293
      %v314 = vsel %vm303, %v291, %v292
      %v315 = vsel %vm303, %v290, %v291
      %v316 = vsel %vm303, %v289, %v290
      %v317 = vsel %vm303, %v288, %v289
      %v318 = vsel %vm303, %v287, %v288
      %v319 = vsel %vm303, %v286, %v287
      %v320 = vsel %vm303, %v285, %v286
      %v321 = vsel %vm303, %v284, %v285
      %v322 = vsel %vm303, %v283, %v284
      %v323 = vsel %vm303, %v282, %v283
      %v324 = vsel %vm303, %v281, %v282
      %v325 = vsel %vm303, %v280, %v281
      %v326 = vsel %vm303, %v279, %v280
      %v327 = vsel %vm303, %v278, %v279
      %v328 = vsel %vm303, %v277, %v278
      %v329 = vsel %vm303, %v274, %v277
      %v330 = vsel %vm303, %v273, %v274
      %v331 = vsel %vm303, %v276, %v273
      %v332 = vsel %vm303, %v275, %v276
      %v333 = vsel %vm303, %v274, %v275
      %v334 = vsel %vm303, %v302, %v273
      %v335 = vsel %vm207, %v330, %v272
      %v336 = vsel %vm208, %v333, %v268
      %v337 = vsel %vm207, %v332, %v271
      %v338 = vsel %vm208, %v331, %v270
      %v339 = vsel %vm207, %v330, %v269
      %v340 = vsel %vm208, %v329, %v268
      %v341 = vsel %vm207, %v328, %v267
      %v342 = vsel %vm208, %v327, %v266
      %v343 = vsel %vm207, %v326, %v265
      %v344 = vsel %vm208, %v325, %v264
      %v345 = vsel %vm207, %v324, %v263
      %v346 = vsel %vm208, %v323, %v262
      %v347 = vsel %vm207, %v322, %v261
      %v348 = vsel %vm208, %v321, %v260
      %v349 = vsel %vm207, %v320, %v259
      %v350 = vsel %vm208, %v319, %v258
      %v351 = vsel %vm207, %v318, %v257
      %v352 = vsel %vm208, %v317, %v256
      %v353 = vsel %vm207, %v316, %v255
      %v354 = vsel %vm208, %v315, %v254
      %v355 = vsel %vm207, %v314, %v253
      %v356 = vsel %vm208, %v313, %v252
      %v357 = vsel %vm207, %v312, %v251
      %v358 = vsel %vm208, %v311, %v250
      %v359 = vsel %vm207, %v310, %v249
      %v360 = vsel %vm208, %v309, %v248
      %v361 = vsel %vm207, %v308, %v247
      %v362 = vsel %vm208, %v307, %v246
      %v363 = vsel %vm207, %v306, %v245
      %v364 = vsel %vm208, %v305, %v244
      %v365 = vsel %vm207, %v304, %v243
      %v366 = vsel %vm208, %v334, %v242
      %v367 = vsel %vm209, %v272, %v330
      %v368 = vsel %vm210, %v268, %v333
      %v369 = vsel %vm209, %v271, %v332
      %v370 = vsel %vm210, %v270, %v331
      %v371 = vsel %vm209, %v269, %v330
      %v372 = vsel %vm210, %v268, %v329
      %v373 = vsel %vm209, %v267, %v328
      %v374 = vsel %vm210, %v266, %v327
      %v375 = vsel %vm209, %v265, %v326
      %v376 = vsel %vm210, %v264, %v325
      %v377 = vsel %vm209, %v263, %v324
      %v378 = vsel %vm210, %v262, %v323
      %v379 = vsel %vm209, %v261, %v322
      %v380 = vsel %vm210, %v260, %v321
      %v381 = vsel %vm209, %v259, %v320
      %v382 = vsel %vm210, %v258, %v319
      %v383 = vsel %vm209, %v257, %v318
      %v384 = vsel %vm210, %v256, %v317
      %v385 = vsel %vm209, %v255, %v316
      %v386 = vsel %vm210, %v254, %v315
      %v387 = vsel %vm209, %v253, %v314
      %v388 = vsel %vm210, %v252, %v313
      %v389 = vsel %vm209, %v251, %v312
      %v390 = vsel %vm210, %v250, %v311
      %v391 = vsel %vm209, %v249, %v310
      %v392 = vsel %vm210, %v248, %v309
      %v393 = vsel %vm209, %v247, %v308
      %v394 = vsel %vm210, %v246, %v307
      %v395 = vsel %vm209, %v245, %v306
      %v396 = vsel %vm210, %v244, %v305
      %v397 = vsel %vm209, %v243, %v304
      %v398 = vsel %vm210, %v242, %v334
      %v399 = vpack.c.bf16 %v336, %v335
      %v400 = vpack.c.bf16 %v338, %v337
      %v401 = vpack.c.bf16 %v340, %v339
      %v402 = vpack.c.bf16 %v342, %v341
      %v403 = vpack.c.bf16 %v344, %v343
      %v404 = vpack.c.bf16 %v346, %v345
      %v405 = vpack.c.bf16 %v348, %v347
      %v406 = vpack.c.bf16 %v350, %v349
      %v407 = vpack.c.bf16 %v352, %v351
      %v408 = vpack.c.bf16 %v354, %v353
      %v409 = vpack.c.bf16 %v356, %v355
      %v410 = vpack.c.bf16 %v358, %v357
      %v411 = vpack.c.bf16 %v360, %v359
      %v412 = vpack.c.bf16 %v362, %v361
      %v413 = vpack.c.bf16 %v364, %v363
      %v414 = vpack.c.bf16 %v366, %v365
      %v415 = vld [vmem:[%s1] sm:$0xf]
      %v416 = vld [vmem:[%s1 + $0x4] sm:$0xf]
      %v417 = vld [vmem:[%s1 + $0x8] sm:$0xf]
      %v418 = vld [vmem:[%s1 + $0xc] sm:$0xf]
      %v419 = vld [vmem:[%s1 + $0x10] sm:$0xf]
      %v420 = vld [vmem:[%s1 + $0x14] sm:$0xf]
      %v421 = vld [vmem:[%s1 + $0x18] sm:$0xf]
      %v422 = vld [vmem:[%s1 + $0x1c] sm:$0xf]
      %v423 = vld [vmem:[%s1 + $0x20] sm:$0xf]
      %v424 = vld [vmem:[%s1 + $0x24] sm:$0xf]
      %v425 = vld [vmem:[%s1 + $0x28] sm:$0xf]
      %v426 = vld [vmem:[%s1 + $0x2c] sm:$0xf]
      %v427 = vld [vmem:[%s1 + $0x30] sm:$0xf]
      %v428 = vld [vmem:[%s1 + $0x34] sm:$0xf]
      %v429 = vld [vmem:[%s1 + $0x38] sm:$0xf]
      %v430 = vld [vmem:[%s1 + $0x3c] sm:$0xf]
      %v431 = vpack.c.bf16 %v175, %v174
      %v432 = vpack.c.bf16 %v173, %v172
      %v433 = vpack.c.bf16 %v177, %v176
      %v434 = vpack.c.bf16 %v179, %v178
      %v435 = vpack.c.bf16 %v181, %v180
      %v436 = vpack.c.bf16 %v183, %v182
      %v437 = vpack.c.bf16 %v185, %v184
      %v438 = vpack.c.bf16 %v187, %v186
      %v439 = vpack.c.bf16 %v189, %v188
      %v440 = vpack.c.bf16 %v191, %v190
      %v441 = vpack.c.bf16 %v193, %v192
      %v442 = vpack.c.bf16 %v195, %v194
      %v443 = vpack.c.bf16 %v197, %v196
      %v444 = vpack.c.bf16 %v199, %v198
      %v445 = vpack.c.bf16 %v201, %v200
      %s446 = scalar_lea.vmem %s1, 64
      %v447 = vld [vmem:[%s446] sm:$0xf]
      %v448 = vld [vmem:[%s446 + $0x4] sm:$0xf]
      %v449 = vld [vmem:[%s446 + $0x8] sm:$0xf]
      %v450 = vld [vmem:[%s446 + $0xc] sm:$0xf]
      %v451 = vld [vmem:[%s446 + $0x10] sm:$0xf]
      %v452 = vld [vmem:[%s446 + $0x14] sm:$0xf]
      %v453 = vld [vmem:[%s446 + $0x18] sm:$0xf]
      %v454 = vld [vmem:[%s446 + $0x1c] sm:$0xf]
      %v455 = vld [vmem:[%s446 + $0x20] sm:$0xf]
      %v456 = vld [vmem:[%s446 + $0x24] sm:$0xf]
      %v457 = vld [vmem:[%s446 + $0x28] sm:$0xf]
      %v458 = vld [vmem:[%s446 + $0x2c] sm:$0xf]
      %v459 = vld [vmem:[%s446 + $0x30] sm:$0xf]
      %v460 = vld [vmem:[%s446 + $0x34] sm:$0xf]
      %v461 = vld [vmem:[%s446 + $0x38] sm:$0xf]
      %v462 = vld [vmem:[%s446 + $0x3c] sm:$0xf]
      %v479 = vunpack.c.l.b16 %v447
      %v480 = vunpack.c.l.b16 %v448
      %v481 = vunpack.c.l.b16 %v449
      %v482 = vunpack.c.l.b16 %v450
      %v483 = vunpack.c.l.b16 %v451
      %v484 = vunpack.c.l.b16 %v452
      %v485 = vunpack.c.l.b16 %v453
      %v486 = vunpack.c.l.b16 %v454
      %v487 = vunpack.c.l.b16 %v455
      %v488 = vunpack.c.l.b16 %v456
      %v489 = vunpack.c.l.b16 %v457
      %v490 = vunpack.c.l.b16 %v458
      %v491 = vunpack.c.l.b16 %v459
      %v492 = vunpack.c.l.b16 %v460
      %v493 = vunpack.c.l.b16 %v461
      %v494 = vunpack.c.l.b16 %v462
      %v495 = vpack.c.b16 %v480, %v479
      %v496 = vpack.c.b16 %v482, %v481
      %v497 = vpack.c.b16 %v484, %v483
      %v498 = vpack.c.b16 %v486, %v485
      %v499 = vpack.c.b16 %v488, %v487
      %v500 = vpack.c.b16 %v490, %v489
      %v501 = vpack.c.b16 %v492, %v491
      %v502 = vpack.c.b16 %v494, %v493
      %511 = vmatprep.subr.bf16.mxu0 0
      %512 = vmatpush1.bf16.msra.mxu0 %v495
      %513 = vmatprep.subr.bf16.mxu0 0
      %514 = vmatpush1.bf16.msra.mxu0 %v496
      %515 = vmatprep.subr.bf16.mxu0 0
      %516 = vmatpush1.bf16.msra.mxu0 %v497
      %517 = vmatprep.subr.bf16.mxu0 0
      %518 = vmatpush1.bf16.msra.mxu0 %v498
      %519 = vmatprep.subr.bf16.mxu0 0
      %520 = vmatpush1.bf16.msra.mxu0 %v499
      %521 = vmatprep.subr.bf16.mxu0 0
      %522 = vmatpush1.bf16.msra.mxu0 %v500
      %523 = vmatprep.subr.bf16.mxu0 0
      %524 = vmatpush1.bf16.msra.mxu0 %v501
      %525 = vmatprep.subr.bf16.mxu0 0
      %526 = vmatpush1.bf16.msra.mxu0 %v502
      %527 = vmatprep.subr.bf16.mxu0 0
      %528 = vmatpush1.bf16.msra.mxu0 0
      %529 = vmatprep.subr.bf16.mxu0 0
      %530 = vmatpush1.bf16.msra.mxu0 0
      %531 = vmatprep.subr.bf16.mxu0 0
      %532 = vmatpush1.bf16.msra.mxu0 0
      %533 = vmatprep.subr.bf16.mxu0 0
      %534 = vmatpush1.bf16.msra.mxu0 0
      %535 = vmatprep.subr.bf16.mxu0 0
      %536 = vmatpush1.bf16.msra.mxu0 0
      %537 = vmatprep.subr.bf16.mxu0 0
      %538 = vmatpush1.bf16.msra.mxu0 0
      %539 = vmatprep.subr.bf16.mxu0 0
      %540 = vmatpush1.bf16.msra.mxu0 0
      %541 = vmatprep.subr.bf16.mxu0 0
      %542 = vmatpush1.bf16.msra.mxu0 0
      %543 = vmatprep.mubr.bf16.mxu0 0
      %544 = vmatmul.mubr.bf16.gmra.mrb[0].mxu0 %v431
      %v545 = vpop.f32.mrb[0].mxu0
      %v546 = vadd.f32 0.0, %v545
      %v547 = vpop.f32.mrb[0].mxu0
      %v548 = vpop.f32.mrb[0].mxu0
      %v549 = vadd.f32 0.0, %v548
      %v550 = vpop.f32.mrb[0].mxu0
      %551 = vmatprep.mubr.bf16.mxu0 0
      %552 = vmatmul.mubr.bf16.gmra.mrb[0].mxu0 %v432
      %v553 = vpop.f32.mrb[0].mxu0
      %v554 = vadd.f32 0.0, %v553
      %v555 = vpop.f32.mrb[0].mxu0
      %v556 = vpop.f32.mrb[0].mxu0
      %v557 = vadd.f32 0.0, %v556
      %v558 = vpop.f32.mrb[0].mxu0
      %559 = vmatprep.mubr.bf16.mxu0 0
      %560 = vmatmul.mubr.bf16.gmra.mrb[0].mxu0 %v431
      %v561 = vpop.f32.mrb[0].mxu0
      %v562 = vadd.f32 0.0, %v561
      %v563 = vpop.f32.mrb[0].mxu0
      %v564 = vpop.f32.mrb[0].mxu0
      %v565 = vadd.f32 0.0, %v564
      %v566 = vpop.f32.mrb[0].mxu0
      %567 = vmatprep.mubr.bf16.mxu0 0
      %568 = vmatmul.mubr.bf16.gmra.mrb[0].mxu0 %v433
      %v569 = vpop.f32.mrb[0].mxu0
      %v570 = vadd.f32 0.0, %v569
      %v571 = vpop.f32.mrb[0].mxu0
      %v572 = vpop.f32.mrb[0].mxu0
      %v573 = vadd.f32 0.0, %v572
      %v574 = vpop.f32.mrb[0].mxu0
      %575 = vmatprep.mubr.bf16.mxu0 0
      %576 = vmatmul.mubr.bf16.gmra.mrb[0].mxu0 %v434
      %v577 = vpop.f32.mrb[0].mxu0
      %v578 = vadd.f32 0.0, %v577
      %v579 = vpop.f32.mrb[0].mxu0
      %v580 = vpop.f32.mrb[0].mxu0
      %v581 = vadd.f32 0.0, %v580
      %v582 = vpop.f32.mrb[0].mxu0
      %583 = vmatprep.mubr.bf16.mxu0 0
      %584 = vmatmul.mubr.bf16.gmra.mrb[0].mxu0 %v435
      %v585 = vpop.f32.mrb[0].mxu0
      %v586 = vadd.f32 0.0, %v585
      %v587 = vpop.f32.mrb[0].mxu0
      %v588 = vpop.f32.mrb[0].mxu0
      %v589 = vadd.f32 0.0, %v588
      %v590 = vpop.f32.mrb[0].mxu0
      %591 = vmatprep.mubr.bf16.mxu0 0
      %592 = vmatmul.mubr.bf16.gmra.mrb[0].mxu0 %v436
      %v593 = vpop.f32.mrb[0].mxu0
      %v594 = vadd.f32 0.0, %v593
      %v595 = vpop.f32.mrb[0].mxu0
      %v596 = vpop.f32.mrb[0].mxu0
      %v597 = vadd.f32 0.0, %v596
      %v598 = vpop.f32.mrb[0].mxu0
      %599 = vmatprep.mubr.bf16.mxu0 0
      %600 = vmatmul.mubr.bf16.gmra.mrb[0].mxu0 %v437
      %v601 = vpop.f32.mrb[0].mxu0
      %v602 = vadd.f32 0.0, %v601
      %v603 = vpop.f32.mrb[0].mxu0
      %v604 = vpop.f32.mrb[0].mxu0
      %v605 = vadd.f32 0.0, %v604
      %v606 = vpop.f32.mrb[0].mxu0
      %607 = vmatprep.mubr.bf16.mxu0 0
      %608 = vmatmul.mubr.bf16.gmra.mrb[0].mxu0 %v438
      %v609 = vpop.f32.mrb[0].mxu0
      %v610 = vadd.f32 0.0, %v609
      %v611 = vpop.f32.mrb[0].mxu0
      %v612 = vpop.f32.mrb[0].mxu0
      %v613 = vadd.f32 0.0, %v612
      %v614 = vpop.f32.mrb[0].mxu0
      %615 = vmatprep.mubr.bf16.mxu0 0
      %616 = vmatmul.mubr.bf16.gmra.mrb[0].mxu0 %v439
      %v617 = vpop.f32.mrb[0].mxu0
      %v618 = vadd.f32 0.0, %v617
      %v619 = vpop.f32.mrb[0].mxu0
      %v620 = vpop.f32.mrb[0].mxu0
      %v621 = vadd.f32 0.0, %v620
      %v622 = vpop.f32.mrb[0].mxu0
      %623 = vmatprep.mubr.bf16.mxu0 0
      %624 = vmatmul.mubr.bf16.gmra.mrb[0].mxu0 %v440
      %v625 = vpop.f32.mrb[0].mxu0
      %v626 = vadd.f32 0.0, %v625
      %v627 = vpop.f32.mrb[0].mxu0
      %v628 = vpop.f32.mrb[0].mxu0
      %v629 = vadd.f32 0.0, %v628
      %v630 = vpop.f32.mrb[0].mxu0
      %631 = vmatprep.mubr.bf16.mxu0 0
      %632 = vmatmul.mubr.bf16.gmra.mrb[0].mxu0 %v441
      %v633 = vpop.f32.mrb[0].mxu0
      %v634 = vadd.f32 0.0, %v633
      %v635 = vpop.f32.mrb[0].mxu0
      %v636 = vpop.f32.mrb[0].mxu0
      %v637 = vadd.f32 0.0, %v636
      %v638 = vpop.f32.mrb[0].mxu0
      %639 = vmatprep.mubr.bf16.mxu0 0
      %640 = vmatmul.mubr.bf16.gmra.mrb[0].mxu0 %v442
      %v641 = vpop.f32.mrb[0].mxu0
      %v642 = vadd.f32 0.0, %v641
      %v643 = vpop.f32.mrb[0].mxu0
      %v644 = vpop.f32.mrb[0].mxu0
      %v645 = vadd.f32 0.0, %v644
      %v646 = vpop.f32.mrb[0].mxu0
      %647 = vmatprep.mubr.bf16.mxu0 0
      %648 = vmatmul.mubr.bf16.gmra.mrb[0].mxu0 %v443
      %v649 = vpop.f32.mrb[0].mxu0
      %v650 = vadd.f32 0.0, %v649
      %v651 = vpop.f32.mrb[0].mxu0
      %v652 = vpop.f32.mrb[0].mxu0
      %v653 = vadd.f32 0.0, %v652
      %v654 = vpop.f32.mrb[0].mxu0
      %655 = vmatprep.mubr.bf16.mxu0 0
      %656 = vmatmul.mubr.bf16.gmra.mrb[0].mxu0 %v444
      %v657 = vpop.f32.mrb[0].mxu0
      %v658 = vadd.f32 0.0, %v657
      %v659 = vpop.f32.mrb[0].mxu0
      %v660 = vpop.f32.mrb[0].mxu0
      %v661 = vadd.f32 0.0, %v660
      %v662 = vpop.f32.mrb[0].mxu0
      %663 = vmatprep.mubr.bf16.mxu0 0
      %664 = vmatmul.mubr.bf16.gmra.mrb[0].mxu0 %v445
      %v665 = vpop.f32.mrb[0].mxu0
      %v666 = vadd.f32 0.0, %v665
      %v667 = vpop.f32.mrb[0].mxu0
      %v668 = vpop.f32.mrb[0].mxu0
      %v669 = vadd.f32 0.0, %v668
      %v670 = vpop.f32.mrb[0].mxu0
      %671 = vdwg.mxu0
      %v688 = vunpack.c.l.b16 %v415
      %v689 = vunpack.c.l.b16 %v416
      %v690 = vunpack.c.l.b16 %v417
      %v691 = vunpack.c.l.b16 %v418
      %v692 = vunpack.c.l.b16 %v419
      %v693 = vunpack.c.l.b16 %v420
      %v694 = vunpack.c.l.b16 %v421
      %v695 = vunpack.c.l.b16 %v422
      %v696 = vunpack.c.l.b16 %v423
      %v697 = vunpack.c.l.b16 %v424
      %v698 = vunpack.c.l.b16 %v425
      %v699 = vunpack.c.l.b16 %v426
      %v700 = vunpack.c.l.b16 %v427
      %v701 = vunpack.c.l.b16 %v428
      %v702 = vunpack.c.l.b16 %v429
      %v703 = vunpack.c.l.b16 %v430
      %v704 = vpack.c.b16 %v689, %v688
      %v705 = vpack.c.b16 %v691, %v690
      %v706 = vpack.c.b16 %v693, %v692
      %v707 = vpack.c.b16 %v695, %v694
      %v708 = vpack.c.b16 %v697, %v696
      %v709 = vpack.c.b16 %v699, %v698
      %v710 = vpack.c.b16 %v701, %v700
      %v711 = vpack.c.b16 %v703, %v702
      %720 = vmatprep.subr.bf16.mxu0 0
      %721 = vmatpush1.bf16.msra.mxu0 %v704
      %722 = vmatprep.subr.bf16.mxu0 0
      %723 = vmatpush1.bf16.msra.mxu0 %v705
      %724 = vmatprep.subr.bf16.mxu0 0
      %725 = vmatpush1.bf16.msra.mxu0 %v706
      %726 = vmatprep.subr.bf16.mxu0 0
      %727 = vmatpush1.bf16.msra.mxu0 %v707
      %728 = vmatprep.subr.bf16.mxu0 0
      %729 = vmatpush1.bf16.msra.mxu0 %v708
      %730 = vmatprep.subr.bf16.mxu0 0
      %731 = vmatpush1.bf16.msra.mxu0 %v709
      %732 = vmatprep.subr.bf16.mxu0 0
      %733 = vmatpush1.bf16.msra.mxu0 %v710
      %734 = vmatprep.subr.bf16.mxu0 0
      %735 = vmatpush1.bf16.msra.mxu0 %v711
      %736 = vmatprep.subr.bf16.mxu0 0
      %737 = vmatpush1.bf16.msra.mxu0 0
      %738 = vmatprep.subr.bf16.mxu0 0
      %739 = vmatpush1.bf16.msra.mxu0 0
      %740 = vmatprep.subr.bf16.mxu0 0
      %741 = vmatpush1.bf16.msra.mxu0 0
      %742 = vmatprep.subr.bf16.mxu0 0
      %743 = vmatpush1.bf16.msra.mxu0 0
      %744 = vmatprep.subr.bf16.mxu0 0
      %745 = vmatpush1.bf16.msra.mxu0 0
      %746 = vmatprep.subr.bf16.mxu0 0
      %747 = vmatpush1.bf16.msra.mxu0 0
      %748 = vmatprep.subr.bf16.mxu0 0
      %749 = vmatpush1.bf16.msra.mxu0 0
      %750 = vmatprep.subr.bf16.mxu0 0
      %751 = vmatpush1.bf16.msra.mxu0 0
      %752 = vmatprep.mubr.bf16.mxu0 0
      %753 = vmatmul.mubr.bf16.gmra.mrb[0].mxu0 %v399
      %v754 = vpop.f32.mrb[0].mxu0
      %v755 = vadd.f32 %v546, %v754
      %v756 = vpop.f32.mrb[0].mxu0
      %v757 = vpop.f32.mrb[0].mxu0
      %v758 = vadd.f32 %v549, %v757
      %v759 = vpop.f32.mrb[0].mxu0
      %760 = vmatprep.mubr.bf16.mxu0 0
      %761 = vmatmul.mubr.bf16.gmra.mrb[0].mxu0 %v400
      %v762 = vpop.f32.mrb[0].mxu0
      %v763 = vadd.f32 %v554, %v762
      %v764 = vpop.f32.mrb[0].mxu0
      %v765 = vpop.f32.mrb[0].mxu0
      %v766 = vadd.f32 %v557, %v765
      %v767 = vpop.f32.mrb[0].mxu0
      %768 = vmatprep.mubr.bf16.mxu0 0
      %769 = vmatmul.mubr.bf16.gmra.mrb[0].mxu0 %v401
      %v770 = vpop.f32.mrb[0].mxu0
      %v771 = vadd.f32 %v562, %v770
      %v772 = vpop.f32.mrb[0].mxu0
      %v773 = vpop.f32.mrb[0].mxu0
      %v774 = vadd.f32 %v565, %v773
      %v775 = vpop.f32.mrb[0].mxu0
      %776 = vmatprep.mubr.bf16.mxu0 0
      %777 = vmatmul.mubr.bf16.gmra.mrb[0].mxu0 %v402
      %v778 = vpop.f32.mrb[0].mxu0
      %v779 = vadd.f32 %v570, %v778
      %v780 = vpop.f32.mrb[0].mxu0
      %v781 = vpop.f32.mrb[0].mxu0
      %v782 = vadd.f32 %v573, %v781
      %v783 = vpop.f32.mrb[0].mxu0
      %784 = vmatprep.mubr.bf16.mxu0 0
      %785 = vmatmul.mubr.bf16.gmra.mrb[0].mxu0 %v403
      %v786 = vpop.f32.mrb[0].mxu0
      %v787 = vadd.f32 %v578, %v786
      %v788 = vpop.f32.mrb[0].mxu0
      %v789 = vpop.f32.mrb[0].mxu0
      %v790 = vadd.f32 %v581, %v789
      %v791 = vpop.f32.mrb[0].mxu0
      %792 = vmatprep.mubr.bf16.mxu0 0
      %793 = vmatmul.mubr.bf16.gmra.mrb[0].mxu0 %v404
      %v794 = vpop.f32.mrb[0].mxu0
      %v795 = vadd.f32 %v586, %v794
      %v796 = vpop.f32.mrb[0].mxu0
      %v797 = vpop.f32.mrb[0].mxu0
      %v798 = vadd.f32 %v589, %v797
      %v799 = vpop.f32.mrb[0].mxu0
      %800 = vmatprep.mubr.bf16.mxu0 0
      %801 = vmatmul.mubr.bf16.gmra.mrb[0].mxu0 %v405
      %v802 = vpop.f32.mrb[0].mxu0
      %v803 = vadd.f32 %v594, %v802
      %v804 = vpop.f32.mrb[0].mxu0
      %v805 = vpop.f32.mrb[0].mxu0
      %v806 = vadd.f32 %v597, %v805
      %v807 = vpop.f32.mrb[0].mxu0
      %808 = vmatprep.mubr.bf16.mxu0 0
      %809 = vmatmul.mubr.bf16.gmra.mrb[0].mxu0 %v406
      %v810 = vpop.f32.mrb[0].mxu0
      %v811 = vadd.f32 %v602, %v810
      %v812 = vpop.f32.mrb[0].mxu0
      %v813 = vpop.f32.mrb[0].mxu0
      %v814 = vadd.f32 %v605, %v813
      %v815 = vpop.f32.mrb[0].mxu0
      %816 = vmatprep.mubr.bf16.mxu0 0
      %817 = vmatmul.mubr.bf16.gmra.mrb[0].mxu0 %v407
      %v818 = vpop.f32.mrb[0].mxu0
      %v819 = vadd.f32 %v610, %v818
      %v820 = vpop.f32.mrb[0].mxu0
      %v821 = vpop.f32.mrb[0].mxu0
      %v822 = vadd.f32 %v613, %v821
      %v823 = vpop.f32.mrb[0].mxu0
      %824 = vmatprep.mubr.bf16.mxu0 0
      %825 = vmatmul.mubr.bf16.gmra.mrb[0].mxu0 %v408
      %v826 = vpop.f32.mrb[0].mxu0
      %v827 = vadd.f32 %v618, %v826
      %v828 = vpop.f32.mrb[0].mxu0
      %v829 = vpop.f32.mrb[0].mxu0
      %v830 = vadd.f32 %v621, %v829
      %v831 = vpop.f32.mrb[0].mxu0
      %832 = vmatprep.mubr.bf16.mxu0 0
      %833 = vmatmul.mubr.bf16.gmra.mrb[0].mxu0 %v409
      %v834 = vpop.f32.mrb[0].mxu0
      %v835 = vadd.f32 %v626, %v834
      %v836 = vpop.f32.mrb[0].mxu0
      %v837 = vpop.f32.mrb[0].mxu0
      %v838 = vadd.f32 %v629, %v837
      %v839 = vpop.f32.mrb[0].mxu0
      %840 = vmatprep.mubr.bf16.mxu0 0
      %841 = vmatmul.mubr.bf16.gmra.mrb[0].mxu0 %v410
      %v842 = vpop.f32.mrb[0].mxu0
      %v843 = vadd.f32 %v634, %v842
      %v844 = vpop.f32.mrb[0].mxu0
      %v845 = vpop.f32.mrb[0].mxu0
      %v846 = vadd.f32 %v637, %v845
      %v847 = vpop.f32.mrb[0].mxu0
      %848 = vmatprep.mubr.bf16.mxu0 0
      %849 = vmatmul.mubr.bf16.gmra.mrb[0].mxu0 %v411
      %v850 = vpop.f32.mrb[0].mxu0
      %v851 = vadd.f32 %v642, %v850
      %v852 = vpop.f32.mrb[0].mxu0
      %v853 = vpop.f32.mrb[0].mxu0
      %v854 = vadd.f32 %v645, %v853
      %v855 = vpop.f32.mrb[0].mxu0
      %856 = vmatprep.mubr.bf16.mxu0 0
      %857 = vmatmul.mubr.bf16.gmra.mrb[0].mxu0 %v412
      %v858 = vpop.f32.mrb[0].mxu0
      %v859 = vadd.f32 %v650, %v858
      %v860 = vpop.f32.mrb[0].mxu0
      %v861 = vpop.f32.mrb[0].mxu0
      %v862 = vadd.f32 %v653, %v861
      %v863 = vpop.f32.mrb[0].mxu0
      %864 = vmatprep.mubr.bf16.mxu0 0
      %865 = vmatmul.mubr.bf16.gmra.mrb[0].mxu0 %v413
      %v866 = vpop.f32.mrb[0].mxu0
      %v867 = vadd.f32 %v658, %v866
      %v868 = vpop.f32.mrb[0].mxu0
      %v869 = vpop.f32.mrb[0].mxu0
      %v870 = vadd.f32 %v661, %v869
      %v871 = vpop.f32.mrb[0].mxu0
      %872 = vmatprep.mubr.bf16.mxu0 0
      %873 = vmatmul.mubr.bf16.gmra.mrb[0].mxu0 %v414
      %v874 = vpop.f32.mrb[0].mxu0
      %v875 = vadd.f32 %v666, %v874
      %v876 = vpop.f32.mrb[0].mxu0
      %v877 = vpop.f32.mrb[0].mxu0
      %v878 = vadd.f32 %v669, %v877
      %v879 = vpop.f32.mrb[0].mxu0
      %880 = vdwg.mxu0
      %v881 = vpack.c.bf16 %v368, %v367
      %v882 = vpack.c.bf16 %v370, %v369
      %v883 = vpack.c.bf16 %v372, %v371
      %v884 = vpack.c.bf16 %v374, %v373
      %v885 = vpack.c.bf16 %v376, %v375
      %v886 = vpack.c.bf16 %v378, %v377
      %v887 = vpack.c.bf16 %v380, %v379
      %v888 = vpack.c.bf16 %v382, %v381
      %v889 = vpack.c.bf16 %v384, %v383
      %v890 = vpack.c.bf16 %v386, %v385
      %v891 = vpack.c.bf16 %v388, %v387
      %v892 = vpack.c.bf16 %v390, %v389
      %v893 = vpack.c.bf16 %v392, %v391
      %v894 = vpack.c.bf16 %v394, %v393
      %v895 = vpack.c.bf16 %v396, %v395
      %v896 = vpack.c.bf16 %v398, %v397
      %s897 = scalar_lea.vmem %s1, 128
      %v898 = vld [vmem:[%s897] sm:$0xf]
      %v899 = vld [vmem:[%s897 + $0x4] sm:$0xf]
      %v900 = vld [vmem:[%s897 + $0x8] sm:$0xf]
      %v901 = vld [vmem:[%s897 + $0xc] sm:$0xf]
      %v902 = vld [vmem:[%s897 + $0x10] sm:$0xf]
      %v903 = vld [vmem:[%s897 + $0x14] sm:$0xf]
      %v904 = vld [vmem:[%s897 + $0x18] sm:$0xf]
      %v905 = vld [vmem:[%s897 + $0x1c] sm:$0xf]
      %v906 = vld [vmem:[%s897 + $0x20] sm:$0xf]
      %v907 = vld [vmem:[%s897 + $0x24] sm:$0xf]
      %v908 = vld [vmem:[%s897 + $0x28] sm:$0xf]
      %v909 = vld [vmem:[%s897 + $0x2c] sm:$0xf]
      %v910 = vld [vmem:[%s897 + $0x30] sm:$0xf]
      %v911 = vld [vmem:[%s897 + $0x34] sm:$0xf]
      %v912 = vld [vmem:[%s897 + $0x38] sm:$0xf]
      %v913 = vld [vmem:[%s897 + $0x3c] sm:$0xf]
      %v930 = vunpack.c.l.b16 %v898
      %v931 = vunpack.c.l.b16 %v899
      %v932 = vunpack.c.l.b16 %v900
      %v933 = vunpack.c.l.b16 %v901
      %v934 = vunpack.c.l.b16 %v902
      %v935 = vunpack.c.l.b16 %v903
      %v936 = vunpack.c.l.b16 %v904
      %v937 = vunpack.c.l.b16 %v905
      %v938 = vunpack.c.l.b16 %v906
      %v939 = vunpack.c.l.b16 %v907
      %v940 = vunpack.c.l.b16 %v908
      %v941 = vunpack.c.l.b16 %v909
      %v942 = vunpack.c.l.b16 %v910
      %v943 = vunpack.c.l.b16 %v911
      %v944 = vunpack.c.l.b16 %v912
      %v945 = vunpack.c.l.b16 %v913
      %v946 = vpack.c.b16 %v931, %v930
      %v947 = vpack.c.b16 %v933, %v932
      %v948 = vpack.c.b16 %v935, %v934
      %v949 = vpack.c.b16 %v937, %v936
      %v950 = vpack.c.b16 %v939, %v938
      %v951 = vpack.c.b16 %v941, %v940
      %v952 = vpack.c.b16 %v943, %v942
      %v953 = vpack.c.b16 %v945, %v944
      %962 = vmatprep.subr.bf16.mxu0 0
      %963 = vmatpush1.bf16.msra.mxu0 %v946
      %964 = vmatprep.subr.bf16.mxu0 0
      %965 = vmatpush1.bf16.msra.mxu0 %v947
      %966 = vmatprep.subr.bf16.mxu0 0
      %967 = vmatpush1.bf16.msra.mxu0 %v948
      %968 = vmatprep.subr.bf16.mxu0 0
      %969 = vmatpush1.bf16.msra.mxu0 %v949
      %970 = vmatprep.subr.bf16.mxu0 0
      %971 = vmatpush1.bf16.msra.mxu0 %v950
      %972 = vmatprep.subr.bf16.mxu0 0
      %973 = vmatpush1.bf16.msra.mxu0 %v951
      %974 = vmatprep.subr.bf16.mxu0 0
      %975 = vmatpush1.bf16.msra.mxu0 %v952
      %976 = vmatprep.subr.bf16.mxu0 0
      %977 = vmatpush1.bf16.msra.mxu0 %v953
      %978 = vmatprep.subr.bf16.mxu0 0
      %979 = vmatpush1.bf16.msra.mxu0 0
      %980 = vmatprep.subr.bf16.mxu0 0
      %981 = vmatpush1.bf16.msra.mxu0 0
      %982 = vmatprep.subr.bf16.mxu0 0
      %983 = vmatpush1.bf16.msra.mxu0 0
      %984 = vmatprep.subr.bf16.mxu0 0
      %985 = vmatpush1.bf16.msra.mxu0 0
      %986 = vmatprep.subr.bf16.mxu0 0
      %987 = vmatpush1.bf16.msra.mxu0 0
      %988 = vmatprep.subr.bf16.mxu0 0
      %989 = vmatpush1.bf16.msra.mxu0 0
      %990 = vmatprep.subr.bf16.mxu0 0
      %991 = vmatpush1.bf16.msra.mxu0 0
      %992 = vmatprep.subr.bf16.mxu0 0
      %993 = vmatpush1.bf16.msra.mxu0 0
      %994 = vmatprep.mubr.bf16.mxu0 0
      %995 = vmatmul.mubr.bf16.gmra.mrb[0].mxu0 %v881
      %v996 = vpop.f32.mrb[0].mxu0
      %v997 = vadd.f32 0.0, %v996
      %v998 = vpop.f32.mrb[0].mxu0
      %v999 = vpop.f32.mrb[0].mxu0
      %v1000 = vadd.f32 0.0, %v999
      %v1001 = vpop.f32.mrb[0].mxu0
      %1002 = vmatprep.mubr.bf16.mxu0 0
      %1003 = vmatmul.mubr.bf16.gmra.mrb[0].mxu0 %v882
      %v1004 = vpop.f32.mrb[0].mxu0
      %v1005 = vadd.f32 0.0, %v1004
      %v1006 = vpop.f32.mrb[0].mxu0
      %v1007 = vpop.f32.mrb[0].mxu0
      %v1008 = vadd.f32 0.0, %v1007
      %v1009 = vpop.f32.mrb[0].mxu0
      %1010 = vmatprep.mubr.bf16.mxu0 0
      %1011 = vmatmul.mubr.bf16.gmra.mrb[0].mxu0 %v883
      %v1012 = vpop.f32.mrb[0].mxu0
      %v1013 = vadd.f32 0.0, %v1012
      %v1014 = vpop.f32.mrb[0].mxu0
      %v1015 = vpop.f32.mrb[0].mxu0
      %v1016 = vadd.f32 0.0, %v1015
      %v1017 = vpop.f32.mrb[0].mxu0
      %1018 = vmatprep.mubr.bf16.mxu0 0
      %1019 = vmatmul.mubr.bf16.gmra.mrb[0].mxu0 %v884
      %v1020 = vpop.f32.mrb[0].mxu0
      %v1021 = vadd.f32 0.0, %v1020
      %v1022 = vpop.f32.mrb[0].mxu0
      %v1023 = vpop.f32.mrb[0].mxu0
      %v1024 = vadd.f32 0.0, %v1023
      %v1025 = vpop.f32.mrb[0].mxu0
      %1026 = vmatprep.mubr.bf16.mxu0 0
      %1027 = vmatmul.mubr.bf16.gmra.mrb[0].mxu0 %v885
      %v1028 = vpop.f32.mrb[0].mxu0
      %v1029 = vadd.f32 0.0, %v1028
      %v1030 = vpop.f32.mrb[0].mxu0
      %v1031 = vpop.f32.mrb[0].mxu0
      %v1032 = vadd.f32 0.0, %v1031
      %v1033 = vpop.f32.mrb[0].mxu0
      %1034 = vmatprep.mubr.bf16.mxu0 0
      %1035 = vmatmul.mubr.bf16.gmra.mrb[0].mxu0 %v886
      %v1036 = vpop.f32.mrb[0].mxu0
      %v1037 = vadd.f32 0.0, %v1036
      %v1038 = vpop.f32.mrb[0].mxu0
      %v1039 = vpop.f32.mrb[0].mxu0
      %v1040 = vadd.f32 0.0, %v1039
      %v1041 = vpop.f32.mrb[0].mxu0
      %1042 = vmatprep.mubr.bf16.mxu0 0
      %1043 = vmatmul.mubr.bf16.gmra.mrb[0].mxu0 %v887
      %v1044 = vpop.f32.mrb[0].mxu0
      %v1045 = vadd.f32 0.0, %v1044
      %v1046 = vpop.f32.mrb[0].mxu0
      %v1047 = vpop.f32.mrb[0].mxu0
      %v1048 = vadd.f32 0.0, %v1047
      %v1049 = vpop.f32.mrb[0].mxu0
      %1050 = vmatprep.mubr.bf16.mxu0 0
      %1051 = vmatmul.mubr.bf16.gmra.mrb[0].mxu0 %v888
      %v1052 = vpop.f32.mrb[0].mxu0
      %v1053 = vadd.f32 0.0, %v1052
      %v1054 = vpop.f32.mrb[0].mxu0
      %v1055 = vpop.f32.mrb[0].mxu0
      %v1056 = vadd.f32 0.0, %v1055
      %v1057 = vpop.f32.mrb[0].mxu0
      %1058 = vmatprep.mubr.bf16.mxu0 0
      %1059 = vmatmul.mubr.bf16.gmra.mrb[0].mxu0 %v889
      %v1060 = vpop.f32.mrb[0].mxu0
      %v1061 = vadd.f32 0.0, %v1060
      %v1062 = vpop.f32.mrb[0].mxu0
      %v1063 = vpop.f32.mrb[0].mxu0
      %v1064 = vadd.f32 0.0, %v1063
      %v1065 = vpop.f32.mrb[0].mxu0
      %1066 = vmatprep.mubr.bf16.mxu0 0
      %1067 = vmatmul.mubr.bf16.gmra.mrb[0].mxu0 %v890
      %v1068 = vpop.f32.mrb[0].mxu0
      %v1069 = vadd.f32 0.0, %v1068
      %v1070 = vpop.f32.mrb[0].mxu0
      %v1071 = vpop.f32.mrb[0].mxu0
      %v1072 = vadd.f32 0.0, %v1071
      %v1073 = vpop.f32.mrb[0].mxu0
      %1074 = vmatprep.mubr.bf16.mxu0 0
      %1075 = vmatmul.mubr.bf16.gmra.mrb[0].mxu0 %v891
      %v1076 = vpop.f32.mrb[0].mxu0
      %v1077 = vadd.f32 0.0, %v1076
      %v1078 = vpop.f32.mrb[0].mxu0
      %v1079 = vpop.f32.mrb[0].mxu0
      %v1080 = vadd.f32 0.0, %v1079
      %v1081 = vpop.f32.mrb[0].mxu0
      %1082 = vmatprep.mubr.bf16.mxu0 0
      %1083 = vmatmul.mubr.bf16.gmra.mrb[0].mxu0 %v892
      %v1084 = vpop.f32.mrb[0].mxu0
      %v1085 = vadd.f32 0.0, %v1084
      %v1086 = vpop.f32.mrb[0].mxu0
      %v1087 = vpop.f32.mrb[0].mxu0
      %v1088 = vadd.f32 0.0, %v1087
      %v1089 = vpop.f32.mrb[0].mxu0
      %1090 = vmatprep.mubr.bf16.mxu0 0
      %1091 = vmatmul.mubr.bf16.gmra.mrb[0].mxu0 %v893
      %v1092 = vpop.f32.mrb[0].mxu0
      %v1093 = vadd.f32 0.0, %v1092
      %v1094 = vpop.f32.mrb[0].mxu0
      %v1095 = vpop.f32.mrb[0].mxu0
      %v1096 = vadd.f32 0.0, %v1095
      %v1097 = vpop.f32.mrb[0].mxu0
      %1098 = vmatprep.mubr.bf16.mxu0 0
      %1099 = vmatmul.mubr.bf16.gmra.mrb[0].mxu0 %v894
      %v1100 = vpop.f32.mrb[0].mxu0
      %v1101 = vadd.f32 0.0, %v1100
      %v1102 = vpop.f32.mrb[0].mxu0
      %v1103 = vpop.f32.mrb[0].mxu0
      %v1104 = vadd.f32 0.0, %v1103
      %v1105 = vpop.f32.mrb[0].mxu0
      %1106 = vmatprep.mubr.bf16.mxu0 0
      %1107 = vmatmul.mubr.bf16.gmra.mrb[0].mxu0 %v895
      %v1108 = vpop.f32.mrb[0].mxu0
      %v1109 = vadd.f32 0.0, %v1108
      %v1110 = vpop.f32.mrb[0].mxu0
      %v1111 = vpop.f32.mrb[0].mxu0
      %v1112 = vadd.f32 0.0, %v1111
      %v1113 = vpop.f32.mrb[0].mxu0
      %1114 = vmatprep.mubr.bf16.mxu0 0
      %1115 = vmatmul.mubr.bf16.gmra.mrb[0].mxu0 %v896
      %v1116 = vpop.f32.mrb[0].mxu0
      %v1117 = vadd.f32 0.0, %v1116
      %v1118 = vpop.f32.mrb[0].mxu0
      %v1119 = vpop.f32.mrb[0].mxu0
      %v1120 = vadd.f32 0.0, %v1119
      %v1121 = vpop.f32.mrb[0].mxu0
      %1122 = vdwg.mxu0
      %v1123 = vadd.f32 %v755, %v997
      %v1124 = vadd.f32 %v758, %v1000
      %v1125 = vadd.f32 %v763, %v1005
      %v1126 = vadd.f32 %v766, %v1008
      %v1127 = vadd.f32 %v771, %v1013
      %v1128 = vadd.f32 %v774, %v1016
      %v1129 = vadd.f32 %v779, %v1021
      %v1130 = vadd.f32 %v782, %v1024
      %v1131 = vadd.f32 %v787, %v1029
      %v1132 = vadd.f32 %v790, %v1032
      %v1133 = vadd.f32 %v795, %v1037
      %v1134 = vadd.f32 %v798, %v1040
      %v1135 = vadd.f32 %v803, %v1045
      %v1136 = vadd.f32 %v806, %v1048
      %v1137 = vadd.f32 %v811, %v1053
      %v1138 = vadd.f32 %v814, %v1056
      %v1139 = vadd.f32 %v819, %v1061
      %v1140 = vadd.f32 %v822, %v1064
      %v1141 = vadd.f32 %v827, %v1069
      %v1142 = vadd.f32 %v830, %v1072
      %v1143 = vadd.f32 %v835, %v1077
      %v1144 = vadd.f32 %v838, %v1080
      %v1145 = vadd.f32 %v843, %v1085
      %v1146 = vadd.f32 %v846, %v1088
      %v1147 = vadd.f32 %v851, %v1093
      %v1148 = vadd.f32 %v854, %v1096
      %v1149 = vadd.f32 %v859, %v1101
      %v1150 = vadd.f32 %v862, %v1104
      %v1151 = vadd.f32 %v867, %v1109
      %v1152 = vadd.f32 %v870, %v1112
      %v1153 = vadd.f32 %v875, %v1117
      %v1154 = vadd.f32 %v878, %v1120
      %v1155 = vrot.slane %v202, 7
      %v1156 = vrot.slane %v203, 7
      %v1157 = vsel %vm241, %v1155, %v1156
      %v1158 = vsel %vm241, %v240, %v1155
      %v1159 = vsel %vm241, %v1156, %v213
      %v1160 = vrot.slane %v202, 1
      %v1161 = vrot.slane %v203, 1
      %v1162 = vsel %vm303, %v1160, %v1161
      %v1163 = vsel %vm303, %v302, %v1160
      %v1164 = vsel %vm303, %v1161, %v275
      %v1165 = vsel %vm207, %v332, %v1159
      %v1166 = vsel %vm208, %v1163, %v242
      %v1167 = vsel %vm207, %v1162, %v1158
      %v1168 = vsel %vm208, %v1164, %v1157
      %v1169 = vsel %vm209, %v1159, %v332
      %v1170 = vsel %vm210, %v242, %v1163
      %v1171 = vsel %vm209, %v1158, %v1162
      %v1172 = vsel %vm210, %v1157, %v1164
      %v1173 = vpack.c.bf16 %v338, %v1165
      %v1174 = vpack.c.bf16 %v1166, %v365
      %v1175 = vpack.c.bf16 %v1168, %v1167
      %s1176 = scalar_lea.vmem %s1, 192
      %v1177 = vld [vmem:[%s1176] sm:$0xf]
      %v1178 = vld [vmem:[%s1176 + $0x4] sm:$0xf]
      %v1179 = vld [vmem:[%s1176 + $0x8] sm:$0xf]
      %v1180 = vld [vmem:[%s1176 + $0xc] sm:$0xf]
      %v1181 = vld [vmem:[%s1176 + $0x10] sm:$0xf]
      %v1182 = vld [vmem:[%s1176 + $0x14] sm:$0xf]
      %v1183 = vld [vmem:[%s1176 + $0x18] sm:$0xf]
      %v1184 = vld [vmem:[%s1176 + $0x1c] sm:$0xf]
      %v1185 = vld [vmem:[%s1176 + $0x20] sm:$0xf]
      %v1186 = vld [vmem:[%s1176 + $0x24] sm:$0xf]
      %v1187 = vld [vmem:[%s1176 + $0x28] sm:$0xf]
      %v1188 = vld [vmem:[%s1176 + $0x2c] sm:$0xf]
      %v1189 = vld [vmem:[%s1176 + $0x30] sm:$0xf]
      %v1190 = vld [vmem:[%s1176 + $0x34] sm:$0xf]
      %v1191 = vld [vmem:[%s1176 + $0x38] sm:$0xf]
      %v1192 = vld [vmem:[%s1176 + $0x3c] sm:$0xf]
      %v1209 = vunpack.c.l.b16 %v1177
      %v1210 = vunpack.c.l.b16 %v1178
      %v1211 = vunpack.c.l.b16 %v1179
      %v1212 = vunpack.c.l.b16 %v1180
      %v1213 = vunpack.c.l.b16 %v1181
      %v1214 = vunpack.c.l.b16 %v1182
      %v1215 = vunpack.c.l.b16 %v1183
      %v1216 = vunpack.c.l.b16 %v1184
      %v1217 = vunpack.c.l.b16 %v1185
      %v1218 = vunpack.c.l.b16 %v1186
      %v1219 = vunpack.c.l.b16 %v1187
      %v1220 = vunpack.c.l.b16 %v1188
      %v1221 = vunpack.c.l.b16 %v1189
      %v1222 = vunpack.c.l.b16 %v1190
      %v1223 = vunpack.c.l.b16 %v1191
      %v1224 = vunpack.c.l.b16 %v1192
      %v1225 = vpack.c.b16 %v1210, %v1209
      %v1226 = vpack.c.b16 %v1212, %v1211
      %v1227 = vpack.c.b16 %v1214, %v1213
      %v1228 = vpack.c.b16 %v1216, %v1215
      %v1229 = vpack.c.b16 %v1218, %v1217
      %v1230 = vpack.c.b16 %v1220, %v1219
      %v1231 = vpack.c.b16 %v1222, %v1221
      %v1232 = vpack.c.b16 %v1224, %v1223
      %1241 = vmatprep.subr.bf16.mxu0 0
      %1242 = vmatpush1.bf16.msra.mxu0 %v1225
      %1243 = vmatprep.subr.bf16.mxu0 0
      %1244 = vmatpush1.bf16.msra.mxu0 %v1226
      %1245 = vmatprep.subr.bf16.mxu0 0
      %1246 = vmatpush1.bf16.msra.mxu0 %v1227
      %1247 = vmatprep.subr.bf16.mxu0 0
      %1248 = vmatpush1.bf16.msra.mxu0 %v1228
      %1249 = vmatprep.subr.bf16.mxu0 0
      %1250 = vmatpush1.bf16.msra.mxu0 %v1229
      %1251 = vmatprep.subr.bf16.mxu0 0
      %1252 = vmatpush1.bf16.msra.mxu0 %v1230
      %1253 = vmatprep.subr.bf16.mxu0 0
      %1254 = vmatpush1.bf16.msra.mxu0 %v1231
      %1255 = vmatprep.subr.bf16.mxu0 0
      %1256 = vmatpush1.bf16.msra.mxu0 %v1232
      %1257 = vmatprep.subr.bf16.mxu0 0
      %1258 = vmatpush1.bf16.msra.mxu0 0
      %1259 = vmatprep.subr.bf16.mxu0 0
      %1260 = vmatpush1.bf16.msra.mxu0 0
      %1261 = vmatprep.subr.bf16.mxu0 0
      %1262 = vmatpush1.bf16.msra.mxu0 0
      %1263 = vmatprep.subr.bf16.mxu0 0
      %1264 = vmatpush1.bf16.msra.mxu0 0
      %1265 = vmatprep.subr.bf16.mxu0 0
      %1266 = vmatpush1.bf16.msra.mxu0 0
      %1267 = vmatprep.subr.bf16.mxu0 0
      %1268 = vmatpush1.bf16.msra.mxu0 0
      %1269 = vmatprep.subr.bf16.mxu0 0
      %1270 = vmatpush1.bf16.msra.mxu0 0
      %1271 = vmatprep.subr.bf16.mxu0 0
      %1272 = vmatpush1.bf16.msra.mxu0 0
      %1273 = vmatprep.mubr.bf16.mxu0 0
      %1274 = vmatmul.mubr.bf16.gmra.mrb[0].mxu0 %v1173
      %v1275 = vpop.f32.mrb[0].mxu0
      %v1276 = vadd.f32 0.0, %v1275
      %v1277 = vpop.f32.mrb[0].mxu0
      %v1278 = vpop.f32.mrb[0].mxu0
      %v1279 = vadd.f32 0.0, %v1278
      %v1280 = vpop.f32.mrb[0].mxu0
      %1281 = vmatprep.mubr.bf16.mxu0 0
      %1282 = vmatmul.mubr.bf16.gmra.mrb[0].mxu0 %v401
      %v1283 = vpop.f32.mrb[0].mxu0
      %v1284 = vadd.f32 0.0, %v1283
      %v1285 = vpop.f32.mrb[0].mxu0
      %v1286 = vpop.f32.mrb[0].mxu0
      %v1287 = vadd.f32 0.0, %v1286
      %v1288 = vpop.f32.mrb[0].mxu0
      %1289 = vmatprep.mubr.bf16.mxu0 0
      %1290 = vmatmul.mubr.bf16.gmra.mrb[0].mxu0 %v402
      %v1291 = vpop.f32.mrb[0].mxu0
      %v1292 = vadd.f32 0.0, %v1291
      %v1293 = vpop.f32.mrb[0].mxu0
      %v1294 = vpop.f32.mrb[0].mxu0
      %v1295 = vadd.f32 0.0, %v1294
      %v1296 = vpop.f32.mrb[0].mxu0
      %1297 = vmatprep.mubr.bf16.mxu0 0
      %1298 = vmatmul.mubr.bf16.gmra.mrb[0].mxu0 %v403
      %v1299 = vpop.f32.mrb[0].mxu0
      %v1300 = vadd.f32 0.0, %v1299
      %v1301 = vpop.f32.mrb[0].mxu0
      %v1302 = vpop.f32.mrb[0].mxu0
      %v1303 = vadd.f32 0.0, %v1302
      %v1304 = vpop.f32.mrb[0].mxu0
      %1305 = vmatprep.mubr.bf16.mxu0 0
      %1306 = vmatmul.mubr.bf16.gmra.mrb[0].mxu0 %v404
      %v1307 = vpop.f32.mrb[0].mxu0
      %v1308 = vadd.f32 0.0, %v1307
      %v1309 = vpop.f32.mrb[0].mxu0
      %v1310 = vpop.f32.mrb[0].mxu0
      %v1311 = vadd.f32 0.0, %v1310
      %v1312 = vpop.f32.mrb[0].mxu0
      %1313 = vmatprep.mubr.bf16.mxu0 0
      %1314 = vmatmul.mubr.bf16.gmra.mrb[0].mxu0 %v405
      %v1315 = vpop.f32.mrb[0].mxu0
      %v1316 = vadd.f32 0.0, %v1315
      %v1317 = vpop.f32.mrb[0].mxu0
      %v1318 = vpop.f32.mrb[0].mxu0
      %v1319 = vadd.f32 0.0, %v1318
      %v1320 = vpop.f32.mrb[0].mxu0
      %1321 = vmatprep.mubr.bf16.mxu0 0
      %1322 = vmatmul.mubr.bf16.gmra.mrb[0].mxu0 %v406
      %v1323 = vpop.f32.mrb[0].mxu0
      %v1324 = vadd.f32 0.0, %v1323
      %v1325 = vpop.f32.mrb[0].mxu0
      %v1326 = vpop.f32.mrb[0].mxu0
      %v1327 = vadd.f32 0.0, %v1326
      %v1328 = vpop.f32.mrb[0].mxu0
      %1329 = vmatprep.mubr.bf16.mxu0 0
      %1330 = vmatmul.mubr.bf16.gmra.mrb[0].mxu0 %v407
      %v1331 = vpop.f32.mrb[0].mxu0
      %v1332 = vadd.f32 0.0, %v1331
      %v1333 = vpop.f32.mrb[0].mxu0
      %v1334 = vpop.f32.mrb[0].mxu0
      %v1335 = vadd.f32 0.0, %v1334
      %v1336 = vpop.f32.mrb[0].mxu0
      %1337 = vmatprep.mubr.bf16.mxu0 0
      %1338 = vmatmul.mubr.bf16.gmra.mrb[0].mxu0 %v408
      %v1339 = vpop.f32.mrb[0].mxu0
      %v1340 = vadd.f32 0.0, %v1339
      %v1341 = vpop.f32.mrb[0].mxu0
      %v1342 = vpop.f32.mrb[0].mxu0
      %v1343 = vadd.f32 0.0, %v1342
      %v1344 = vpop.f32.mrb[0].mxu0
      %1345 = vmatprep.mubr.bf16.mxu0 0
      %1346 = vmatmul.mubr.bf16.gmra.mrb[0].mxu0 %v409
      %v1347 = vpop.f32.mrb[0].mxu0
      %v1348 = vadd.f32 0.0, %v1347
      %v1349 = vpop.f32.mrb[0].mxu0
      %v1350 = vpop.f32.mrb[0].mxu0
      %v1351 = vadd.f32 0.0, %v1350
      %v1352 = vpop.f32.mrb[0].mxu0
      %1353 = vmatprep.mubr.bf16.mxu0 0
      %1354 = vmatmul.mubr.bf16.gmra.mrb[0].mxu0 %v410
      %v1355 = vpop.f32.mrb[0].mxu0
      %v1356 = vadd.f32 0.0, %v1355
      %v1357 = vpop.f32.mrb[0].mxu0
      %v1358 = vpop.f32.mrb[0].mxu0
      %v1359 = vadd.f32 0.0, %v1358
      %v1360 = vpop.f32.mrb[0].mxu0
      %1361 = vmatprep.mubr.bf16.mxu0 0
      %1362 = vmatmul.mubr.bf16.gmra.mrb[0].mxu0 %v411
      %v1363 = vpop.f32.mrb[0].mxu0
      %v1364 = vadd.f32 0.0, %v1363
      %v1365 = vpop.f32.mrb[0].mxu0
      %v1366 = vpop.f32.mrb[0].mxu0
      %v1367 = vadd.f32 0.0, %v1366
      %v1368 = vpop.f32.mrb[0].mxu0
      %1369 = vmatprep.mubr.bf16.mxu0 0
      %1370 = vmatmul.mubr.bf16.gmra.mrb[0].mxu0 %v412
      %v1371 = vpop.f32.mrb[0].mxu0
      %v1372 = vadd.f32 0.0, %v1371
      %v1373 = vpop.f32.mrb[0].mxu0
      %v1374 = vpop.f32.mrb[0].mxu0
      %v1375 = vadd.f32 0.0, %v1374
      %v1376 = vpop.f32.mrb[0].mxu0
      %1377 = vmatprep.mubr.bf16.mxu0 0
      %1378 = vmatmul.mubr.bf16.gmra.mrb[0].mxu0 %v413
      %v1379 = vpop.f32.mrb[0].mxu0
      %v1380 = vadd.f32 0.0, %v1379
      %v1381 = vpop.f32.mrb[0].mxu0
      %v1382 = vpop.f32.mrb[0].mxu0
      %v1383 = vadd.f32 0.0, %v1382
      %v1384 = vpop.f32.mrb[0].mxu0
      %1385 = vmatprep.mubr.bf16.mxu0 0
      %1386 = vmatmul.mubr.bf16.gmra.mrb[0].mxu0 %v1174
      %v1387 = vpop.f32.mrb[0].mxu0
      %v1388 = vadd.f32 0.0, %v1387
      %v1389 = vpop.f32.mrb[0].mxu0
      %v1390 = vpop.f32.mrb[0].mxu0
      %v1391 = vadd.f32 0.0, %v1390
      %v1392 = vpop.f32.mrb[0].mxu0
      %1393 = vmatprep.mubr.bf16.mxu0 0
      %1394 = vmatmul.mubr.bf16.gmra.mrb[0].mxu0 %v1175
      %v1395 = vpop.f32.mrb[0].mxu0
      %v1396 = vadd.f32 0.0, %v1395
      %v1397 = vpop.f32.mrb[0].mxu0
      %v1398 = vpop.f32.mrb[0].mxu0
      %v1399 = vadd.f32 0.0, %v1398
      %v1400 = vpop.f32.mrb[0].mxu0
      %1401 = vdwg.mxu0
      %v1402 = vadd.f32 %v1123, %v1276
      %v1403 = vadd.f32 %v1124, %v1279
      %v1404 = vadd.f32 %v1125, %v1284
      %v1405 = vadd.f32 %v1126, %v1287
      %v1406 = vadd.f32 %v1127, %v1292
      %v1407 = vadd.f32 %v1128, %v1295
      %v1408 = vadd.f32 %v1129, %v1300
      %v1409 = vadd.f32 %v1130, %v1303
      %v1410 = vadd.f32 %v1131, %v1308
      %v1411 = vadd.f32 %v1132, %v1311
      %v1412 = vadd.f32 %v1133, %v1316
      %v1413 = vadd.f32 %v1134, %v1319
      %v1414 = vadd.f32 %v1135, %v1324
      %v1415 = vadd.f32 %v1136, %v1327
      %v1416 = vadd.f32 %v1137, %v1332
      %v1417 = vadd.f32 %v1138, %v1335
      %v1418 = vadd.f32 %v1139, %v1340
      %v1419 = vadd.f32 %v1140, %v1343
      %v1420 = vadd.f32 %v1141, %v1348
      %v1421 = vadd.f32 %v1142, %v1351
      %v1422 = vadd.f32 %v1143, %v1356
      %v1423 = vadd.f32 %v1144, %v1359
      %v1424 = vadd.f32 %v1145, %v1364
      %v1425 = vadd.f32 %v1146, %v1367
      %v1426 = vadd.f32 %v1147, %v1372
      %v1427 = vadd.f32 %v1148, %v1375
      %v1428 = vadd.f32 %v1149, %v1380
      %v1429 = vadd.f32 %v1150, %v1383
      %v1430 = vadd.f32 %v1151, %v1388
      %v1431 = vadd.f32 %v1152, %v1391
      %v1432 = vadd.f32 %v1153, %v1396
      %v1433 = vadd.f32 %v1154, %v1399
      %v1434 = vpack.c.bf16 %v203, %v202
      %s1435 = scalar_lea.vmem %s1, 256
      %v1436 = vld [vmem:[%s1435] sm:$0xf]
      %v1437 = vld [vmem:[%s1435 + $0x4] sm:$0xf]
      %v1438 = vld [vmem:[%s1435 + $0x8] sm:$0xf]
      %v1439 = vld [vmem:[%s1435 + $0xc] sm:$0xf]
      %v1440 = vld [vmem:[%s1435 + $0x10] sm:$0xf]
      %v1441 = vld [vmem:[%s1435 + $0x14] sm:$0xf]
      %v1442 = vld [vmem:[%s1435 + $0x18] sm:$0xf]
      %v1443 = vld [vmem:[%s1435 + $0x1c] sm:$0xf]
      %v1444 = vld [vmem:[%s1435 + $0x20] sm:$0xf]
      %v1445 = vld [vmem:[%s1435 + $0x24] sm:$0xf]
      %v1446 = vld [vmem:[%s1435 + $0x28] sm:$0xf]
      %v1447 = vld [vmem:[%s1435 + $0x2c] sm:$0xf]
      %v1448 = vld [vmem:[%s1435 + $0x30] sm:$0xf]
      %v1449 = vld [vmem:[%s1435 + $0x34] sm:$0xf]
      %v1450 = vld [vmem:[%s1435 + $0x38] sm:$0xf]
      %v1451 = vld [vmem:[%s1435 + $0x3c] sm:$0xf]
      %v1468 = vunpack.c.l.b16 %v1436
      %v1469 = vunpack.c.l.b16 %v1437
      %v1470 = vunpack.c.l.b16 %v1438
      %v1471 = vunpack.c.l.b16 %v1439
      %v1472 = vunpack.c.l.b16 %v1440
      %v1473 = vunpack.c.l.b16 %v1441
      %v1474 = vunpack.c.l.b16 %v1442
      %v1475 = vunpack.c.l.b16 %v1443
      %v1476 = vunpack.c.l.b16 %v1444
      %v1477 = vunpack.c.l.b16 %v1445
      %v1478 = vunpack.c.l.b16 %v1446
      %v1479 = vunpack.c.l.b16 %v1447
      %v1480 = vunpack.c.l.b16 %v1448
      %v1481 = vunpack.c.l.b16 %v1449
      %v1482 = vunpack.c.l.b16 %v1450
      %v1483 = vunpack.c.l.b16 %v1451
      %v1484 = vpack.c.b16 %v1469, %v1468
      %v1485 = vpack.c.b16 %v1471, %v1470
      %v1486 = vpack.c.b16 %v1473, %v1472
      %v1487 = vpack.c.b16 %v1475, %v1474
      %v1488 = vpack.c.b16 %v1477, %v1476
      %v1489 = vpack.c.b16 %v1479, %v1478
      %v1490 = vpack.c.b16 %v1481, %v1480
      %v1491 = vpack.c.b16 %v1483, %v1482
      %1500 = vmatprep.subr.bf16.mxu0 0
      %1501 = vmatpush1.bf16.msra.mxu0 %v1484
      %1502 = vmatprep.subr.bf16.mxu0 0
      %1503 = vmatpush1.bf16.msra.mxu0 %v1485
      %1504 = vmatprep.subr.bf16.mxu0 0
      %1505 = vmatpush1.bf16.msra.mxu0 %v1486
      %1506 = vmatprep.subr.bf16.mxu0 0
      %1507 = vmatpush1.bf16.msra.mxu0 %v1487
      %1508 = vmatprep.subr.bf16.mxu0 0
      %1509 = vmatpush1.bf16.msra.mxu0 %v1488
      %1510 = vmatprep.subr.bf16.mxu0 0
      %1511 = vmatpush1.bf16.msra.mxu0 %v1489
      %1512 = vmatprep.subr.bf16.mxu0 0
      %1513 = vmatpush1.bf16.msra.mxu0 %v1490
      %1514 = vmatprep.subr.bf16.mxu0 0
      %1515 = vmatpush1.bf16.msra.mxu0 %v1491
      %1516 = vmatprep.subr.bf16.mxu0 0
      %1517 = vmatpush1.bf16.msra.mxu0 0
      %1518 = vmatprep.subr.bf16.mxu0 0
      %1519 = vmatpush1.bf16.msra.mxu0 0
      %1520 = vmatprep.subr.bf16.mxu0 0
      %1521 = vmatpush1.bf16.msra.mxu0 0
      %1522 = vmatprep.subr.bf16.mxu0 0
      %1523 = vmatpush1.bf16.msra.mxu0 0
      %1524 = vmatprep.subr.bf16.mxu0 0
      %1525 = vmatpush1.bf16.msra.mxu0 0
      %1526 = vmatprep.subr.bf16.mxu0 0
      %1527 = vmatpush1.bf16.msra.mxu0 0
      %1528 = vmatprep.subr.bf16.mxu0 0
      %1529 = vmatpush1.bf16.msra.mxu0 0
      %1530 = vmatprep.subr.bf16.mxu0 0
      %1531 = vmatpush1.bf16.msra.mxu0 0
      %1532 = vmatprep.mubr.bf16.mxu0 0
      %1533 = vmatmul.mubr.bf16.gmra.mrb[0].mxu0 %v432
      %v1534 = vpop.f32.mrb[0].mxu0
      %v1535 = vadd.f32 0.0, %v1534
      %v1536 = vpop.f32.mrb[0].mxu0
      %v1537 = vpop.f32.mrb[0].mxu0
      %v1538 = vadd.f32 0.0, %v1537
      %v1539 = vpop.f32.mrb[0].mxu0
      %1540 = vmatprep.mubr.bf16.mxu0 0
      %1541 = vmatmul.mubr.bf16.gmra.mrb[0].mxu0 %v431
      %v1542 = vpop.f32.mrb[0].mxu0
      %v1543 = vadd.f32 0.0, %v1542
      %v1544 = vpop.f32.mrb[0].mxu0
      %v1545 = vpop.f32.mrb[0].mxu0
      %v1546 = vadd.f32 0.0, %v1545
      %v1547 = vpop.f32.mrb[0].mxu0
      %1548 = vmatprep.mubr.bf16.mxu0 0
      %1549 = vmatmul.mubr.bf16.gmra.mrb[0].mxu0 %v433
      %v1550 = vpop.f32.mrb[0].mxu0
      %v1551 = vadd.f32 0.0, %v1550
      %v1552 = vpop.f32.mrb[0].mxu0
      %v1553 = vpop.f32.mrb[0].mxu0
      %v1554 = vadd.f32 0.0, %v1553
      %v1555 = vpop.f32.mrb[0].mxu0
      %1556 = vmatprep.mubr.bf16.mxu0 0
      %1557 = vmatmul.mubr.bf16.gmra.mrb[0].mxu0 %v434
      %v1558 = vpop.f32.mrb[0].mxu0
      %v1559 = vadd.f32 0.0, %v1558
      %v1560 = vpop.f32.mrb[0].mxu0
      %v1561 = vpop.f32.mrb[0].mxu0
      %v1562 = vadd.f32 0.0, %v1561
      %v1563 = vpop.f32.mrb[0].mxu0
      %1564 = vmatprep.mubr.bf16.mxu0 0
      %1565 = vmatmul.mubr.bf16.gmra.mrb[0].mxu0 %v435
      %v1566 = vpop.f32.mrb[0].mxu0
      %v1567 = vadd.f32 0.0, %v1566
      %v1568 = vpop.f32.mrb[0].mxu0
      %v1569 = vpop.f32.mrb[0].mxu0
      %v1570 = vadd.f32 0.0, %v1569
      %v1571 = vpop.f32.mrb[0].mxu0
      %1572 = vmatprep.mubr.bf16.mxu0 0
      %1573 = vmatmul.mubr.bf16.gmra.mrb[0].mxu0 %v436
      %v1574 = vpop.f32.mrb[0].mxu0
      %v1575 = vadd.f32 0.0, %v1574
      %v1576 = vpop.f32.mrb[0].mxu0
      %v1577 = vpop.f32.mrb[0].mxu0
      %v1578 = vadd.f32 0.0, %v1577
      %v1579 = vpop.f32.mrb[0].mxu0
      %1580 = vmatprep.mubr.bf16.mxu0 0
      %1581 = vmatmul.mubr.bf16.gmra.mrb[0].mxu0 %v437
      %v1582 = vpop.f32.mrb[0].mxu0
      %v1583 = vadd.f32 0.0, %v1582
      %v1584 = vpop.f32.mrb[0].mxu0
      %v1585 = vpop.f32.mrb[0].mxu0
      %v1586 = vadd.f32 0.0, %v1585
      %v1587 = vpop.f32.mrb[0].mxu0
      %1588 = vmatprep.mubr.bf16.mxu0 0
      %1589 = vmatmul.mubr.bf16.gmra.mrb[0].mxu0 %v438
      %v1590 = vpop.f32.mrb[0].mxu0
      %v1591 = vadd.f32 0.0, %v1590
      %v1592 = vpop.f32.mrb[0].mxu0
      %v1593 = vpop.f32.mrb[0].mxu0
      %v1594 = vadd.f32 0.0, %v1593
      %v1595 = vpop.f32.mrb[0].mxu0
      %1596 = vmatprep.mubr.bf16.mxu0 0
      %1597 = vmatmul.mubr.bf16.gmra.mrb[0].mxu0 %v439
      %v1598 = vpop.f32.mrb[0].mxu0
      %v1599 = vadd.f32 0.0, %v1598
      %v1600 = vpop.f32.mrb[0].mxu0
      %v1601 = vpop.f32.mrb[0].mxu0
      %v1602 = vadd.f32 0.0, %v1601
      %v1603 = vpop.f32.mrb[0].mxu0
      %1604 = vmatprep.mubr.bf16.mxu0 0
      %1605 = vmatmul.mubr.bf16.gmra.mrb[0].mxu0 %v440
      %v1606 = vpop.f32.mrb[0].mxu0
      %v1607 = vadd.f32 0.0, %v1606
      %v1608 = vpop.f32.mrb[0].mxu0
      %v1609 = vpop.f32.mrb[0].mxu0
      %v1610 = vadd.f32 0.0, %v1609
      %v1611 = vpop.f32.mrb[0].mxu0
      %1612 = vmatprep.mubr.bf16.mxu0 0
      %1613 = vmatmul.mubr.bf16.gmra.mrb[0].mxu0 %v441
      %v1614 = vpop.f32.mrb[0].mxu0
      %v1615 = vadd.f32 0.0, %v1614
      %v1616 = vpop.f32.mrb[0].mxu0
      %v1617 = vpop.f32.mrb[0].mxu0
      %v1618 = vadd.f32 0.0, %v1617
      %v1619 = vpop.f32.mrb[0].mxu0
      %1620 = vmatprep.mubr.bf16.mxu0 0
      %1621 = vmatmul.mubr.bf16.gmra.mrb[0].mxu0 %v442
      %v1622 = vpop.f32.mrb[0].mxu0
      %v1623 = vadd.f32 0.0, %v1622
      %v1624 = vpop.f32.mrb[0].mxu0
      %v1625 = vpop.f32.mrb[0].mxu0
      %v1626 = vadd.f32 0.0, %v1625
      %v1627 = vpop.f32.mrb[0].mxu0
      %1628 = vmatprep.mubr.bf16.mxu0 0
      %1629 = vmatmul.mubr.bf16.gmra.mrb[0].mxu0 %v443
      %v1630 = vpop.f32.mrb[0].mxu0
      %v1631 = vadd.f32 0.0, %v1630
      %v1632 = vpop.f32.mrb[0].mxu0
      %v1633 = vpop.f32.mrb[0].mxu0
      %v1634 = vadd.f32 0.0, %v1633
      %v1635 = vpop.f32.mrb[0].mxu0
      %1636 = vmatprep.mubr.bf16.mxu0 0
      %1637 = vmatmul.mubr.bf16.gmra.mrb[0].mxu0 %v444
      %v1638 = vpop.f32.mrb[0].mxu0
      %v1639 = vadd.f32 0.0, %v1638
      %v1640 = vpop.f32.mrb[0].mxu0
      %v1641 = vpop.f32.mrb[0].mxu0
      %v1642 = vadd.f32 0.0, %v1641
      %v1643 = vpop.f32.mrb[0].mxu0
      %1644 = vmatprep.mubr.bf16.mxu0 0
      %1645 = vmatmul.mubr.bf16.gmra.mrb[0].mxu0 %v445
      %v1646 = vpop.f32.mrb[0].mxu0
      %v1647 = vadd.f32 0.0, %v1646
      %v1648 = vpop.f32.mrb[0].mxu0
      %v1649 = vpop.f32.mrb[0].mxu0
      %v1650 = vadd.f32 0.0, %v1649
      %v1651 = vpop.f32.mrb[0].mxu0
      %1652 = vmatprep.mubr.bf16.mxu0 0
      %1653 = vmatmul.mubr.bf16.gmra.mrb[0].mxu0 %v1434
      %v1654 = vpop.f32.mrb[0].mxu0
      %v1655 = vadd.f32 0.0, %v1654
      %v1656 = vpop.f32.mrb[0].mxu0
      %v1657 = vpop.f32.mrb[0].mxu0
      %v1658 = vadd.f32 0.0, %v1657
      %v1659 = vpop.f32.mrb[0].mxu0
      %1660 = vdwg.mxu0
      %v1661 = vadd.f32 %v1402, %v1535
      %v1662 = vadd.f32 %v1403, %v1538
      %v1663 = vadd.f32 %v1404, %v1543
      %v1664 = vadd.f32 %v1405, %v1546
      %v1665 = vadd.f32 %v1406, %v1551
      %v1666 = vadd.f32 %v1407, %v1554
      %v1667 = vadd.f32 %v1408, %v1559
      %v1668 = vadd.f32 %v1409, %v1562
      %v1669 = vadd.f32 %v1410, %v1567
      %v1670 = vadd.f32 %v1411, %v1570
      %v1671 = vadd.f32 %v1412, %v1575
      %v1672 = vadd.f32 %v1413, %v1578
      %v1673 = vadd.f32 %v1414, %v1583
      %v1674 = vadd.f32 %v1415, %v1586
      %v1675 = vadd.f32 %v1416, %v1591
      %v1676 = vadd.f32 %v1417, %v1594
      %v1677 = vadd.f32 %v1418, %v1599
      %v1678 = vadd.f32 %v1419, %v1602
      %v1679 = vadd.f32 %v1420, %v1607
      %v1680 = vadd.f32 %v1421, %v1610
      %v1681 = vadd.f32 %v1422, %v1615
      %v1682 = vadd.f32 %v1423, %v1618
      %v1683 = vadd.f32 %v1424, %v1623
      %v1684 = vadd.f32 %v1425, %v1626
      %v1685 = vadd.f32 %v1426, %v1631
      %v1686 = vadd.f32 %v1427, %v1634
      %v1687 = vadd.f32 %v1428, %v1639
      %v1688 = vadd.f32 %v1429, %v1642
      %v1689 = vadd.f32 %v1430, %v1647
      %v1690 = vadd.f32 %v1431, %v1650
      %v1691 = vadd.f32 %v1432, %v1655
      %v1692 = vadd.f32 %v1433, %v1658
      %v1693 = vpack.c.bf16 %v370, %v1169
      %v1694 = vpack.c.bf16 %v1170, %v397
      %v1695 = vpack.c.bf16 %v1172, %v1171
      %s1696 = scalar_lea.vmem %s1, 320
      %v1697 = vld [vmem:[%s1696] sm:$0xf]
      %v1698 = vld [vmem:[%s1696 + $0x4] sm:$0xf]
      %v1699 = vld [vmem:[%s1696 + $0x8] sm:$0xf]
      %v1700 = vld [vmem:[%s1696 + $0xc] sm:$0xf]
      %v1701 = vld [vmem:[%s1696 + $0x10] sm:$0xf]
      %v1702 = vld [vmem:[%s1696 + $0x14] sm:$0xf]
      %v1703 = vld [vmem:[%s1696 + $0x18] sm:$0xf]
      %v1704 = vld [vmem:[%s1696 + $0x1c] sm:$0xf]
      %v1705 = vld [vmem:[%s1696 + $0x20] sm:$0xf]
      %v1706 = vld [vmem:[%s1696 + $0x24] sm:$0xf]
      %v1707 = vld [vmem:[%s1696 + $0x28] sm:$0xf]
      %v1708 = vld [vmem:[%s1696 + $0x2c] sm:$0xf]
      %v1709 = vld [vmem:[%s1696 + $0x30] sm:$0xf]
      %v1710 = vld [vmem:[%s1696 + $0x34] sm:$0xf]
      %v1711 = vld [vmem:[%s1696 + $0x38] sm:$0xf]
      %v1712 = vld [vmem:[%s1696 + $0x3c] sm:$0xf]
      %v1729 = vunpack.c.l.b16 %v1697
      %v1730 = vunpack.c.l.b16 %v1698
      %v1731 = vunpack.c.l.b16 %v1699
      %v1732 = vunpack.c.l.b16 %v1700
      %v1733 = vunpack.c.l.b16 %v1701
      %v1734 = vunpack.c.l.b16 %v1702
      %v1735 = vunpack.c.l.b16 %v1703
      %v1736 = vunpack.c.l.b16 %v1704
      %v1737 = vunpack.c.l.b16 %v1705
      %v1738 = vunpack.c.l.b16 %v1706
      %v1739 = vunpack.c.l.b16 %v1707
      %v1740 = vunpack.c.l.b16 %v1708
      %v1741 = vunpack.c.l.b16 %v1709
      %v1742 = vunpack.c.l.b16 %v1710
      %v1743 = vunpack.c.l.b16 %v1711
      %v1744 = vunpack.c.l.b16 %v1712
      %v1745 = vpack.c.b16 %v1730, %v1729
      %v1746 = vpack.c.b16 %v1732, %v1731
      %v1747 = vpack.c.b16 %v1734, %v1733
      %v1748 = vpack.c.b16 %v1736, %v1735
      %v1749 = vpack.c.b16 %v1738, %v1737
      %v1750 = vpack.c.b16 %v1740, %v1739
      %v1751 = vpack.c.b16 %v1742, %v1741
      %v1752 = vpack.c.b16 %v1744, %v1743
      %1761 = vmatprep.subr.bf16.mxu0 0
      %1762 = vmatpush1.bf16.msra.mxu0 %v1745
      %1763 = vmatprep.subr.bf16.mxu0 0
      %1764 = vmatpush1.bf16.msra.mxu0 %v1746
      %1765 = vmatprep.subr.bf16.mxu0 0
      %1766 = vmatpush1.bf16.msra.mxu0 %v1747
      %1767 = vmatprep.subr.bf16.mxu0 0
      %1768 = vmatpush1.bf16.msra.mxu0 %v1748
      %1769 = vmatprep.subr.bf16.mxu0 0
      %1770 = vmatpush1.bf16.msra.mxu0 %v1749
      %1771 = vmatprep.subr.bf16.mxu0 0
      %1772 = vmatpush1.bf16.msra.mxu0 %v1750
      %1773 = vmatprep.subr.bf16.mxu0 0
      %1774 = vmatpush1.bf16.msra.mxu0 %v1751
      %1775 = vmatprep.subr.bf16.mxu0 0
      %1776 = vmatpush1.bf16.msra.mxu0 %v1752
      %1777 = vmatprep.subr.bf16.mxu0 0
      %1778 = vmatpush1.bf16.msra.mxu0 0
      %1779 = vmatprep.subr.bf16.mxu0 0
      %1780 = vmatpush1.bf16.msra.mxu0 0
      %1781 = vmatprep.subr.bf16.mxu0 0
      %1782 = vmatpush1.bf16.msra.mxu0 0
      %1783 = vmatprep.subr.bf16.mxu0 0
      %1784 = vmatpush1.bf16.msra.mxu0 0
      %1785 = vmatprep.subr.bf16.mxu0 0
      %1786 = vmatpush1.bf16.msra.mxu0 0
      %1787 = vmatprep.subr.bf16.mxu0 0
      %1788 = vmatpush1.bf16.msra.mxu0 0
      %1789 = vmatprep.subr.bf16.mxu0 0
      %1790 = vmatpush1.bf16.msra.mxu0 0
      %1791 = vmatprep.subr.bf16.mxu0 0
      %1792 = vmatpush1.bf16.msra.mxu0 0
      %1793 = vmatprep.mubr.bf16.mxu0 0
      %1794 = vmatmul.mubr.bf16.gmra.mrb[0].mxu0 %v1693
      %v1795 = vpop.f32.mrb[0].mxu0
      %v1796 = vadd.f32 0.0, %v1795
      %v1797 = vpop.f32.mrb[0].mxu0
      %v1798 = vpop.f32.mrb[0].mxu0
      %v1799 = vadd.f32 0.0, %v1798
      %v1800 = vpop.f32.mrb[0].mxu0
      %1801 = vmatprep.mubr.bf16.mxu0 0
      %1802 = vmatmul.mubr.bf16.gmra.mrb[0].mxu0 %v883
      %v1803 = vpop.f32.mrb[0].mxu0
      %v1804 = vadd.f32 0.0, %v1803
      %v1805 = vpop.f32.mrb[0].mxu0
      %v1806 = vpop.f32.mrb[0].mxu0
      %v1807 = vadd.f32 0.0, %v1806
      %v1808 = vpop.f32.mrb[0].mxu0
      %1809 = vmatprep.mubr.bf16.mxu0 0
      %1810 = vmatmul.mubr.bf16.gmra.mrb[0].mxu0 %v884
      %v1811 = vpop.f32.mrb[0].mxu0
      %v1812 = vadd.f32 0.0, %v1811
      %v1813 = vpop.f32.mrb[0].mxu0
      %v1814 = vpop.f32.mrb[0].mxu0
      %v1815 = vadd.f32 0.0, %v1814
      %v1816 = vpop.f32.mrb[0].mxu0
      %1817 = vmatprep.mubr.bf16.mxu0 0
      %1818 = vmatmul.mubr.bf16.gmra.mrb[0].mxu0 %v885
      %v1819 = vpop.f32.mrb[0].mxu0
      %v1820 = vadd.f32 0.0, %v1819
      %v1821 = vpop.f32.mrb[0].mxu0
      %v1822 = vpop.f32.mrb[0].mxu0
      %v1823 = vadd.f32 0.0, %v1822
      %v1824 = vpop.f32.mrb[0].mxu0
      %1825 = vmatprep.mubr.bf16.mxu0 0
      %1826 = vmatmul.mubr.bf16.gmra.mrb[0].mxu0 %v886
      %v1827 = vpop.f32.mrb[0].mxu0
      %v1828 = vadd.f32 0.0, %v1827
      %v1829 = vpop.f32.mrb[0].mxu0
      %v1830 = vpop.f32.mrb[0].mxu0
      %v1831 = vadd.f32 0.0, %v1830
      %v1832 = vpop.f32.mrb[0].mxu0
      %1833 = vmatprep.mubr.bf16.mxu0 0
      %1834 = vmatmul.mubr.bf16.gmra.mrb[0].mxu0 %v887
      %v1835 = vpop.f32.mrb[0].mxu0
      %v1836 = vadd.f32 0.0, %v1835
      %v1837 = vpop.f32.mrb[0].mxu0
      %v1838 = vpop.f32.mrb[0].mxu0
      %v1839 = vadd.f32 0.0, %v1838
      %v1840 = vpop.f32.mrb[0].mxu0
      %1841 = vmatprep.mubr.bf16.mxu0 0
      %1842 = vmatmul.mubr.bf16.gmra.mrb[0].mxu0 %v888
      %v1843 = vpop.f32.mrb[0].mxu0
      %v1844 = vadd.f32 0.0, %v1843
      %v1845 = vpop.f32.mrb[0].mxu0
      %v1846 = vpop.f32.mrb[0].mxu0
      %v1847 = vadd.f32 0.0, %v1846
      %v1848 = vpop.f32.mrb[0].mxu0
      %1849 = vmatprep.mubr.bf16.mxu0 0
      %1850 = vmatmul.mubr.bf16.gmra.mrb[0].mxu0 %v889
      %v1851 = vpop.f32.mrb[0].mxu0
      %v1852 = vadd.f32 0.0, %v1851
      %v1853 = vpop.f32.mrb[0].mxu0
      %v1854 = vpop.f32.mrb[0].mxu0
      %v1855 = vadd.f32 0.0, %v1854
      %v1856 = vpop.f32.mrb[0].mxu0
      %1857 = vmatprep.mubr.bf16.mxu0 0
      %1858 = vmatmul.mubr.bf16.gmra.mrb[0].mxu0 %v890
      %v1859 = vpop.f32.mrb[0].mxu0
      %v1860 = vadd.f32 0.0, %v1859
      %v1861 = vpop.f32.mrb[0].mxu0
      %v1862 = vpop.f32.mrb[0].mxu0
      %v1863 = vadd.f32 0.0, %v1862
      %v1864 = vpop.f32.mrb[0].mxu0
      %1865 = vmatprep.mubr.bf16.mxu0 0
      %1866 = vmatmul.mubr.bf16.gmra.mrb[0].mxu0 %v891
      %v1867 = vpop.f32.mrb[0].mxu0
      %v1868 = vadd.f32 0.0, %v1867
      %v1869 = vpop.f32.mrb[0].mxu0
      %v1870 = vpop.f32.mrb[0].mxu0
      %v1871 = vadd.f32 0.0, %v1870
      %v1872 = vpop.f32.mrb[0].mxu0
      %1873 = vmatprep.mubr.bf16.mxu0 0
      %1874 = vmatmul.mubr.bf16.gmra.mrb[0].mxu0 %v892
      %v1875 = vpop.f32.mrb[0].mxu0
      %v1876 = vadd.f32 0.0, %v1875
      %v1877 = vpop.f32.mrb[0].mxu0
      %v1878 = vpop.f32.mrb[0].mxu0
      %v1879 = vadd.f32 0.0, %v1878
      %v1880 = vpop.f32.mrb[0].mxu0
      %1881 = vmatprep.mubr.bf16.mxu0 0
      %1882 = vmatmul.mubr.bf16.gmra.mrb[0].mxu0 %v893
      %v1883 = vpop.f32.mrb[0].mxu0
      %v1884 = vadd.f32 0.0, %v1883
      %v1885 = vpop.f32.mrb[0].mxu0
      %v1886 = vpop.f32.mrb[0].mxu0
      %v1887 = vadd.f32 0.0, %v1886
      %v1888 = vpop.f32.mrb[0].mxu0
      %1889 = vmatprep.mubr.bf16.mxu0 0
      %1890 = vmatmul.mubr.bf16.gmra.mrb[0].mxu0 %v894
      %v1891 = vpop.f32.mrb[0].mxu0
      %v1892 = vadd.f32 0.0, %v1891
      %v1893 = vpop.f32.mrb[0].mxu0
      %v1894 = vpop.f32.mrb[0].mxu0
      %v1895 = vadd.f32 0.0, %v1894
      %v1896 = vpop.f32.mrb[0].mxu0
      %1897 = vmatprep.mubr.bf16.mxu0 0
      %1898 = vmatmul.mubr.bf16.gmra.mrb[0].mxu0 %v895
      %v1899 = vpop.f32.mrb[0].mxu0
      %v1900 = vadd.f32 0.0, %v1899
      %v1901 = vpop.f32.mrb[0].mxu0
      %v1902 = vpop.f32.mrb[0].mxu0
      %v1903 = vadd.f32 0.0, %v1902
      %v1904 = vpop.f32.mrb[0].mxu0
      %1905 = vmatprep.mubr.bf16.mxu0 0
      %1906 = vmatmul.mubr.bf16.gmra.mrb[0].mxu0 %v1694
      %v1907 = vpop.f32.mrb[0].mxu0
      %v1908 = vadd.f32 0.0, %v1907
      %v1909 = vpop.f32.mrb[0].mxu0
      %v1910 = vpop.f32.mrb[0].mxu0
      %v1911 = vadd.f32 0.0, %v1910
      %v1912 = vpop.f32.mrb[0].mxu0
      %1913 = vmatprep.mubr.bf16.mxu0 0
      %1914 = vmatmul.mubr.bf16.gmra.mrb[0].mxu0 %v1695
      %v1915 = vpop.f32.mrb[0].mxu0
      %v1916 = vadd.f32 0.0, %v1915
      %v1917 = vpop.f32.mrb[0].mxu0
      %v1918 = vpop.f32.mrb[0].mxu0
      %v1919 = vadd.f32 0.0, %v1918
      %v1920 = vpop.f32.mrb[0].mxu0
      %1921 = vdwg.mxu0
      %v1922 = vadd.f32 %v1661, %v1796
      %v1923 = vadd.f32 %v1662, %v1799
      %v1924 = vadd.f32 %v1663, %v1804
      %v1925 = vadd.f32 %v1664, %v1807
      %v1926 = vadd.f32 %v1665, %v1812
      %v1927 = vadd.f32 %v1666, %v1815
      %v1928 = vadd.f32 %v1667, %v1820
      %v1929 = vadd.f32 %v1668, %v1823
      %v1930 = vadd.f32 %v1669, %v1828
      %v1931 = vadd.f32 %v1670, %v1831
      %v1932 = vadd.f32 %v1671, %v1836
      %v1933 = vadd.f32 %v1672, %v1839
      %v1934 = vadd.f32 %v1673, %v1844
      %v1935 = vadd.f32 %v1674, %v1847
      %v1936 = vadd.f32 %v1675, %v1852
      %v1937 = vadd.f32 %v1676, %v1855
      %v1938 = vadd.f32 %v1677, %v1860
      %v1939 = vadd.f32 %v1678, %v1863
      %v1940 = vadd.f32 %v1679, %v1868
      %v1941 = vadd.f32 %v1680, %v1871
      %v1942 = vadd.f32 %v1681, %v1876
      %v1943 = vadd.f32 %v1682, %v1879
      %v1944 = vadd.f32 %v1683, %v1884
      %v1945 = vadd.f32 %v1684, %v1887
      %v1946 = vadd.f32 %v1685, %v1892
      %v1947 = vadd.f32 %v1686, %v1895
      %v1948 = vadd.f32 %v1687, %v1900
      %v1949 = vadd.f32 %v1688, %v1903
      %v1950 = vadd.f32 %v1689, %v1908
      %v1951 = vadd.f32 %v1690, %v1911
      %v1952 = vadd.f32 %v1691, %v1916
      %v1953 = vadd.f32 %v1692, %v1919
      %v1954 = vsel %vm241, %v1156, %v239
      %v1955 = vsel %vm303, %v1161, %v301
      %v1956 = vsel %vm208, %v1955, %v1157
      %v1957 = vsel %vm207, %v304, %v1954
      %v1958 = vsel %vm210, %v1157, %v1955
      %v1959 = vsel %vm209, %v1954, %v304
      %v1960 = vpack.c.bf16 %v340, %v335
      %v1961 = vpack.c.bf16 %v1956, %v1167
      %v1962 = vpack.c.bf16 %v366, %v1957
      %s1963 = scalar_lea.vmem %s1, 384
      %v1964 = vld [vmem:[%s1963] sm:$0xf]
      %v1965 = vld [vmem:[%s1963 + $0x4] sm:$0xf]
      %v1966 = vld [vmem:[%s1963 + $0x8] sm:$0xf]
      %v1967 = vld [vmem:[%s1963 + $0xc] sm:$0xf]
      %v1968 = vld [vmem:[%s1963 + $0x10] sm:$0xf]
      %v1969 = vld [vmem:[%s1963 + $0x14] sm:$0xf]
      %v1970 = vld [vmem:[%s1963 + $0x18] sm:$0xf]
      %v1971 = vld [vmem:[%s1963 + $0x1c] sm:$0xf]
      %v1972 = vld [vmem:[%s1963 + $0x20] sm:$0xf]
      %v1973 = vld [vmem:[%s1963 + $0x24] sm:$0xf]
      %v1974 = vld [vmem:[%s1963 + $0x28] sm:$0xf]
      %v1975 = vld [vmem:[%s1963 + $0x2c] sm:$0xf]
      %v1976 = vld [vmem:[%s1963 + $0x30] sm:$0xf]
      %v1977 = vld [vmem:[%s1963 + $0x34] sm:$0xf]
      %v1978 = vld [vmem:[%s1963 + $0x38] sm:$0xf]
      %v1979 = vld [vmem:[%s1963 + $0x3c] sm:$0xf]
      %v1996 = vunpack.c.l.b16 %v1964
      %v1997 = vunpack.c.l.b16 %v1965
      %v1998 = vunpack.c.l.b16 %v1966
      %v1999 = vunpack.c.l.b16 %v1967
      %v2000 = vunpack.c.l.b16 %v1968
      %v2001 = vunpack.c.l.b16 %v1969
      %v2002 = vunpack.c.l.b16 %v1970
      %v2003 = vunpack.c.l.b16 %v1971
      %v2004 = vunpack.c.l.b16 %v1972
      %v2005 = vunpack.c.l.b16 %v1973
      %v2006 = vunpack.c.l.b16 %v1974
      %v2007 = vunpack.c.l.b16 %v1975
      %v2008 = vunpack.c.l.b16 %v1976
      %v2009 = vunpack.c.l.b16 %v1977
      %v2010 = vunpack.c.l.b16 %v1978
      %v2011 = vunpack.c.l.b16 %v1979
      %v2012 = vpack.c.b16 %v1997, %v1996
      %v2013 = vpack.c.b16 %v1999, %v1998
      %v2014 = vpack.c.b16 %v2001, %v2000
      %v2015 = vpack.c.b16 %v2003, %v2002
      %v2016 = vpack.c.b16 %v2005, %v2004
      %v2017 = vpack.c.b16 %v2007, %v2006
      %v2018 = vpack.c.b16 %v2009, %v2008
      %v2019 = vpack.c.b16 %v2011, %v2010
      %2028 = vmatprep.subr.bf16.mxu0 0
      %2029 = vmatpush1.bf16.msra.mxu0 %v2012
      %2030 = vmatprep.subr.bf16.mxu0 0
      %2031 = vmatpush1.bf16.msra.mxu0 %v2013
      %2032 = vmatprep.subr.bf16.mxu0 0
      %2033 = vmatpush1.bf16.msra.mxu0 %v2014
      %2034 = vmatprep.subr.bf16.mxu0 0
      %2035 = vmatpush1.bf16.msra.mxu0 %v2015
      %2036 = vmatprep.subr.bf16.mxu0 0
      %2037 = vmatpush1.bf16.msra.mxu0 %v2016
      %2038 = vmatprep.subr.bf16.mxu0 0
      %2039 = vmatpush1.bf16.msra.mxu0 %v2017
      %2040 = vmatprep.subr.bf16.mxu0 0
      %2041 = vmatpush1.bf16.msra.mxu0 %v2018
      %2042 = vmatprep.subr.bf16.mxu0 0
      %2043 = vmatpush1.bf16.msra.mxu0 %v2019
      %2044 = vmatprep.subr.bf16.mxu0 0
      %2045 = vmatpush1.bf16.msra.mxu0 0
      %2046 = vmatprep.subr.bf16.mxu0 0
      %2047 = vmatpush1.bf16.msra.mxu0 0
      %2048 = vmatprep.subr.bf16.mxu0 0
      %2049 = vmatpush1.bf16.msra.mxu0 0
      %2050 = vmatprep.subr.bf16.mxu0 0
      %2051 = vmatpush1.bf16.msra.mxu0 0
      %2052 = vmatprep.subr.bf16.mxu0 0
      %2053 = vmatpush1.bf16.msra.mxu0 0
      %2054 = vmatprep.subr.bf16.mxu0 0
      %2055 = vmatpush1.bf16.msra.mxu0 0
      %2056 = vmatprep.subr.bf16.mxu0 0
      %2057 = vmatpush1.bf16.msra.mxu0 0
      %2058 = vmatprep.subr.bf16.mxu0 0
      %2059 = vmatpush1.bf16.msra.mxu0 0
      %2060 = vmatprep.mubr.bf16.mxu0 0
      %2061 = vmatmul.mubr.bf16.gmra.mrb[0].mxu0 %v1960
      %v2062 = vpop.f32.mrb[0].mxu0
      %v2063 = vadd.f32 0.0, %v2062
      %v2064 = vpop.f32.mrb[0].mxu0
      %v2065 = vpop.f32.mrb[0].mxu0
      %v2066 = vadd.f32 0.0, %v2065
      %v2067 = vpop.f32.mrb[0].mxu0
      %2068 = vmatprep.mubr.bf16.mxu0 0
      %2069 = vmatmul.mubr.bf16.gmra.mrb[0].mxu0 %v402
      %v2070 = vpop.f32.mrb[0].mxu0
      %v2071 = vadd.f32 0.0, %v2070
      %v2072 = vpop.f32.mrb[0].mxu0
      %v2073 = vpop.f32.mrb[0].mxu0
      %v2074 = vadd.f32 0.0, %v2073
      %v2075 = vpop.f32.mrb[0].mxu0
      %2076 = vmatprep.mubr.bf16.mxu0 0
      %2077 = vmatmul.mubr.bf16.gmra.mrb[0].mxu0 %v403
      %v2078 = vpop.f32.mrb[0].mxu0
      %v2079 = vadd.f32 0.0, %v2078
      %v2080 = vpop.f32.mrb[0].mxu0
      %v2081 = vpop.f32.mrb[0].mxu0
      %v2082 = vadd.f32 0.0, %v2081
      %v2083 = vpop.f32.mrb[0].mxu0
      %2084 = vmatprep.mubr.bf16.mxu0 0
      %2085 = vmatmul.mubr.bf16.gmra.mrb[0].mxu0 %v404
      %v2086 = vpop.f32.mrb[0].mxu0
      %v2087 = vadd.f32 0.0, %v2086
      %v2088 = vpop.f32.mrb[0].mxu0
      %v2089 = vpop.f32.mrb[0].mxu0
      %v2090 = vadd.f32 0.0, %v2089
      %v2091 = vpop.f32.mrb[0].mxu0
      %2092 = vmatprep.mubr.bf16.mxu0 0
      %2093 = vmatmul.mubr.bf16.gmra.mrb[0].mxu0 %v405
      %v2094 = vpop.f32.mrb[0].mxu0
      %v2095 = vadd.f32 0.0, %v2094
      %v2096 = vpop.f32.mrb[0].mxu0
      %v2097 = vpop.f32.mrb[0].mxu0
      %v2098 = vadd.f32 0.0, %v2097
      %v2099 = vpop.f32.mrb[0].mxu0
      %2100 = vmatprep.mubr.bf16.mxu0 0
      %2101 = vmatmul.mubr.bf16.gmra.mrb[0].mxu0 %v406
      %v2102 = vpop.f32.mrb[0].mxu0
      %v2103 = vadd.f32 0.0, %v2102
      %v2104 = vpop.f32.mrb[0].mxu0
      %v2105 = vpop.f32.mrb[0].mxu0
      %v2106 = vadd.f32 0.0, %v2105
      %v2107 = vpop.f32.mrb[0].mxu0
      %2108 = vmatprep.mubr.bf16.mxu0 0
      %2109 = vmatmul.mubr.bf16.gmra.mrb[0].mxu0 %v407
      %v2110 = vpop.f32.mrb[0].mxu0
      %v2111 = vadd.f32 0.0, %v2110
      %v2112 = vpop.f32.mrb[0].mxu0
      %v2113 = vpop.f32.mrb[0].mxu0
      %v2114 = vadd.f32 0.0, %v2113
      %v2115 = vpop.f32.mrb[0].mxu0
      %2116 = vmatprep.mubr.bf16.mxu0 0
      %2117 = vmatmul.mubr.bf16.gmra.mrb[0].mxu0 %v408
      %v2118 = vpop.f32.mrb[0].mxu0
      %v2119 = vadd.f32 0.0, %v2118
      %v2120 = vpop.f32.mrb[0].mxu0
      %v2121 = vpop.f32.mrb[0].mxu0
      %v2122 = vadd.f32 0.0, %v2121
      %v2123 = vpop.f32.mrb[0].mxu0
      %2124 = vmatprep.mubr.bf16.mxu0 0
      %2125 = vmatmul.mubr.bf16.gmra.mrb[0].mxu0 %v409
      %v2126 = vpop.f32.mrb[0].mxu0
      %v2127 = vadd.f32 0.0, %v2126
      %v2128 = vpop.f32.mrb[0].mxu0
      %v2129 = vpop.f32.mrb[0].mxu0
      %v2130 = vadd.f32 0.0, %v2129
      %v2131 = vpop.f32.mrb[0].mxu0
      %2132 = vmatprep.mubr.bf16.mxu0 0
      %2133 = vmatmul.mubr.bf16.gmra.mrb[0].mxu0 %v410
      %v2134 = vpop.f32.mrb[0].mxu0
      %v2135 = vadd.f32 0.0, %v2134
      %v2136 = vpop.f32.mrb[0].mxu0
      %v2137 = vpop.f32.mrb[0].mxu0
      %v2138 = vadd.f32 0.0, %v2137
      %v2139 = vpop.f32.mrb[0].mxu0
      %2140 = vmatprep.mubr.bf16.mxu0 0
      %2141 = vmatmul.mubr.bf16.gmra.mrb[0].mxu0 %v411
      %v2142 = vpop.f32.mrb[0].mxu0
      %v2143 = vadd.f32 0.0, %v2142
      %v2144 = vpop.f32.mrb[0].mxu0
      %v2145 = vpop.f32.mrb[0].mxu0
      %v2146 = vadd.f32 0.0, %v2145
      %v2147 = vpop.f32.mrb[0].mxu0
      %2148 = vmatprep.mubr.bf16.mxu0 0
      %2149 = vmatmul.mubr.bf16.gmra.mrb[0].mxu0 %v412
      %v2150 = vpop.f32.mrb[0].mxu0
      %v2151 = vadd.f32 0.0, %v2150
      %v2152 = vpop.f32.mrb[0].mxu0
      %v2153 = vpop.f32.mrb[0].mxu0
      %v2154 = vadd.f32 0.0, %v2153
      %v2155 = vpop.f32.mrb[0].mxu0
      %2156 = vmatprep.mubr.bf16.mxu0 0
      %2157 = vmatmul.mubr.bf16.gmra.mrb[0].mxu0 %v413
      %v2158 = vpop.f32.mrb[0].mxu0
      %v2159 = vadd.f32 0.0, %v2158
      %v2160 = vpop.f32.mrb[0].mxu0
      %v2161 = vpop.f32.mrb[0].mxu0
      %v2162 = vadd.f32 0.0, %v2161
      %v2163 = vpop.f32.mrb[0].mxu0
      %2164 = vmatprep.mubr.bf16.mxu0 0
      %2165 = vmatmul.mubr.bf16.gmra.mrb[0].mxu0 %v1174
      %v2166 = vpop.f32.mrb[0].mxu0
      %v2167 = vadd.f32 0.0, %v2166
      %v2168 = vpop.f32.mrb[0].mxu0
      %v2169 = vpop.f32.mrb[0].mxu0
      %v2170 = vadd.f32 0.0, %v2169
      %v2171 = vpop.f32.mrb[0].mxu0
      %2172 = vmatprep.mubr.bf16.mxu0 0
      %2173 = vmatmul.mubr.bf16.gmra.mrb[0].mxu0 %v1961
      %v2174 = vpop.f32.mrb[0].mxu0
      %v2175 = vadd.f32 0.0, %v2174
      %v2176 = vpop.f32.mrb[0].mxu0
      %v2177 = vpop.f32.mrb[0].mxu0
      %v2178 = vadd.f32 0.0, %v2177
      %v2179 = vpop.f32.mrb[0].mxu0
      %2180 = vmatprep.mubr.bf16.mxu0 0
      %2181 = vmatmul.mubr.bf16.gmra.mrb[0].mxu0 %v1962
      %v2182 = vpop.f32.mrb[0].mxu0
      %v2183 = vadd.f32 0.0, %v2182
      %v2184 = vpop.f32.mrb[0].mxu0
      %v2185 = vpop.f32.mrb[0].mxu0
      %v2186 = vadd.f32 0.0, %v2185
      %v2187 = vpop.f32.mrb[0].mxu0
      %2188 = vdwg.mxu0
      %v2189 = vadd.f32 %v1922, %v2063
      %v2190 = vadd.f32 %v1923, %v2066
      %v2191 = vadd.f32 %v1924, %v2071
      %v2192 = vadd.f32 %v1925, %v2074
      %v2193 = vadd.f32 %v1926, %v2079
      %v2194 = vadd.f32 %v1927, %v2082
      %v2195 = vadd.f32 %v1928, %v2087
      %v2196 = vadd.f32 %v1929, %v2090
      %v2197 = vadd.f32 %v1930, %v2095
      %v2198 = vadd.f32 %v1931, %v2098
      %v2199 = vadd.f32 %v1932, %v2103
      %v2200 = vadd.f32 %v1933, %v2106
      %v2201 = vadd.f32 %v1934, %v2111
      %v2202 = vadd.f32 %v1935, %v2114
      %v2203 = vadd.f32 %v1936, %v2119
      %v2204 = vadd.f32 %v1937, %v2122
      %v2205 = vadd.f32 %v1938, %v2127
      %v2206 = vadd.f32 %v1939, %v2130
      %v2207 = vadd.f32 %v1940, %v2135
      %v2208 = vadd.f32 %v1941, %v2138
      %v2209 = vadd.f32 %v1942, %v2143
      %v2210 = vadd.f32 %v1943, %v2146
      %v2211 = vadd.f32 %v1944, %v2151
      %v2212 = vadd.f32 %v1945, %v2154
      %v2213 = vadd.f32 %v1946, %v2159
      %v2214 = vadd.f32 %v1947, %v2162
      %v2215 = vadd.f32 %v1948, %v2167
      %v2216 = vadd.f32 %v1949, %v2170
      %v2217 = vadd.f32 %v1950, %v2175
      %v2218 = vadd.f32 %v1951, %v2178
      %v2219 = vadd.f32 %v1952, %v2183
      %v2220 = vadd.f32 %v1953, %v2186
      %s2221 = scalar_lea.vmem %s1, 448
      %v2222 = vld [vmem:[%s2221] sm:$0xf]
      %v2223 = vld [vmem:[%s2221 + $0x4] sm:$0xf]
      %v2224 = vld [vmem:[%s2221 + $0x8] sm:$0xf]
      %v2225 = vld [vmem:[%s2221 + $0xc] sm:$0xf]
      %v2226 = vld [vmem:[%s2221 + $0x10] sm:$0xf]
      %v2227 = vld [vmem:[%s2221 + $0x14] sm:$0xf]
      %v2228 = vld [vmem:[%s2221 + $0x18] sm:$0xf]
      %v2229 = vld [vmem:[%s2221 + $0x1c] sm:$0xf]
      %v2230 = vld [vmem:[%s2221 + $0x20] sm:$0xf]
      %v2231 = vld [vmem:[%s2221 + $0x24] sm:$0xf]
      %v2232 = vld [vmem:[%s2221 + $0x28] sm:$0xf]
      %v2233 = vld [vmem:[%s2221 + $0x2c] sm:$0xf]
      %v2234 = vld [vmem:[%s2221 + $0x30] sm:$0xf]
      %v2235 = vld [vmem:[%s2221 + $0x34] sm:$0xf]
      %v2236 = vld [vmem:[%s2221 + $0x38] sm:$0xf]
      %v2237 = vld [vmem:[%s2221 + $0x3c] sm:$0xf]
      %v2254 = vunpack.c.l.b16 %v2222
      %v2255 = vunpack.c.l.b16 %v2223
      %v2256 = vunpack.c.l.b16 %v2224
      %v2257 = vunpack.c.l.b16 %v2225
      %v2258 = vunpack.c.l.b16 %v2226
      %v2259 = vunpack.c.l.b16 %v2227
      %v2260 = vunpack.c.l.b16 %v2228
      %v2261 = vunpack.c.l.b16 %v2229
      %v2262 = vunpack.c.l.b16 %v2230
      %v2263 = vunpack.c.l.b16 %v2231
      %v2264 = vunpack.c.l.b16 %v2232
      %v2265 = vunpack.c.l.b16 %v2233
      %v2266 = vunpack.c.l.b16 %v2234
      %v2267 = vunpack.c.l.b16 %v2235
      %v2268 = vunpack.c.l.b16 %v2236
      %v2269 = vunpack.c.l.b16 %v2237
      %v2270 = vpack.c.b16 %v2255, %v2254
      %v2271 = vpack.c.b16 %v2257, %v2256
      %v2272 = vpack.c.b16 %v2259, %v2258
      %v2273 = vpack.c.b16 %v2261, %v2260
      %v2274 = vpack.c.b16 %v2263, %v2262
      %v2275 = vpack.c.b16 %v2265, %v2264
      %v2276 = vpack.c.b16 %v2267, %v2266
      %v2277 = vpack.c.b16 %v2269, %v2268
      %2286 = vmatprep.subr.bf16.mxu0 0
      %2287 = vmatpush1.bf16.msra.mxu0 %v2270
      %2288 = vmatprep.subr.bf16.mxu0 0
      %2289 = vmatpush1.bf16.msra.mxu0 %v2271
      %2290 = vmatprep.subr.bf16.mxu0 0
      %2291 = vmatpush1.bf16.msra.mxu0 %v2272
      %2292 = vmatprep.subr.bf16.mxu0 0
      %2293 = vmatpush1.bf16.msra.mxu0 %v2273
      %2294 = vmatprep.subr.bf16.mxu0 0
      %2295 = vmatpush1.bf16.msra.mxu0 %v2274
      %2296 = vmatprep.subr.bf16.mxu0 0
      %2297 = vmatpush1.bf16.msra.mxu0 %v2275
      %2298 = vmatprep.subr.bf16.mxu0 0
      %2299 = vmatpush1.bf16.msra.mxu0 %v2276
      %2300 = vmatprep.subr.bf16.mxu0 0
      %2301 = vmatpush1.bf16.msra.mxu0 %v2277
      %2302 = vmatprep.subr.bf16.mxu0 0
      %2303 = vmatpush1.bf16.msra.mxu0 0
      %2304 = vmatprep.subr.bf16.mxu0 0
      %2305 = vmatpush1.bf16.msra.mxu0 0
      %2306 = vmatprep.subr.bf16.mxu0 0
      %2307 = vmatpush1.bf16.msra.mxu0 0
      %2308 = vmatprep.subr.bf16.mxu0 0
      %2309 = vmatpush1.bf16.msra.mxu0 0
      %2310 = vmatprep.subr.bf16.mxu0 0
      %2311 = vmatpush1.bf16.msra.mxu0 0
      %2312 = vmatprep.subr.bf16.mxu0 0
      %2313 = vmatpush1.bf16.msra.mxu0 0
      %2314 = vmatprep.subr.bf16.mxu0 0
      %2315 = vmatpush1.bf16.msra.mxu0 0
      %2316 = vmatprep.subr.bf16.mxu0 0
      %2317 = vmatpush1.bf16.msra.mxu0 0
      %2318 = vmatprep.mubr.bf16.mxu0 0
      %2319 = vmatmul.mubr.bf16.gmra.mrb[0].mxu0 %v431
      %v2320 = vpop.f32.mrb[0].mxu0
      %v2321 = vadd.f32 0.0, %v2320
      %v2322 = vpop.f32.mrb[0].mxu0
      %v2323 = vpop.f32.mrb[0].mxu0
      %v2324 = vadd.f32 0.0, %v2323
      %v2325 = vpop.f32.mrb[0].mxu0
      %2326 = vmatprep.mubr.bf16.mxu0 0
      %2327 = vmatmul.mubr.bf16.gmra.mrb[0].mxu0 %v433
      %v2328 = vpop.f32.mrb[0].mxu0
      %v2329 = vadd.f32 0.0, %v2328
      %v2330 = vpop.f32.mrb[0].mxu0
      %v2331 = vpop.f32.mrb[0].mxu0
      %v2332 = vadd.f32 0.0, %v2331
      %v2333 = vpop.f32.mrb[0].mxu0
      %2334 = vmatprep.mubr.bf16.mxu0 0
      %2335 = vmatmul.mubr.bf16.gmra.mrb[0].mxu0 %v434
      %v2336 = vpop.f32.mrb[0].mxu0
      %v2337 = vadd.f32 0.0, %v2336
      %v2338 = vpop.f32.mrb[0].mxu0
      %v2339 = vpop.f32.mrb[0].mxu0
      %v2340 = vadd.f32 0.0, %v2339
      %v2341 = vpop.f32.mrb[0].mxu0
      %2342 = vmatprep.mubr.bf16.mxu0 0
      %2343 = vmatmul.mubr.bf16.gmra.mrb[0].mxu0 %v435
      %v2344 = vpop.f32.mrb[0].mxu0
      %v2345 = vadd.f32 0.0, %v2344
      %v2346 = vpop.f32.mrb[0].mxu0
      %v2347 = vpop.f32.mrb[0].mxu0
      %v2348 = vadd.f32 0.0, %v2347
      %v2349 = vpop.f32.mrb[0].mxu0
      %2350 = vmatprep.mubr.bf16.mxu0 0
      %2351 = vmatmul.mubr.bf16.gmra.mrb[0].mxu0 %v436
      %v2352 = vpop.f32.mrb[0].mxu0
      %v2353 = vadd.f32 0.0, %v2352
      %v2354 = vpop.f32.mrb[0].mxu0
      %v2355 = vpop.f32.mrb[0].mxu0
      %v2356 = vadd.f32 0.0, %v2355
      %v2357 = vpop.f32.mrb[0].mxu0
      %2358 = vmatprep.mubr.bf16.mxu0 0
      %2359 = vmatmul.mubr.bf16.gmra.mrb[0].mxu0 %v437
      %v2360 = vpop.f32.mrb[0].mxu0
      %v2361 = vadd.f32 0.0, %v2360
      %v2362 = vpop.f32.mrb[0].mxu0
      %v2363 = vpop.f32.mrb[0].mxu0
      %v2364 = vadd.f32 0.0, %v2363
      %v2365 = vpop.f32.mrb[0].mxu0
      %2366 = vmatprep.mubr.bf16.mxu0 0
      %2367 = vmatmul.mubr.bf16.gmra.mrb[0].mxu0 %v438
      %v2368 = vpop.f32.mrb[0].mxu0
      %v2369 = vadd.f32 0.0, %v2368
      %v2370 = vpop.f32.mrb[0].mxu0
      %v2371 = vpop.f32.mrb[0].mxu0
      %v2372 = vadd.f32 0.0, %v2371
      %v2373 = vpop.f32.mrb[0].mxu0
      %2374 = vmatprep.mubr.bf16.mxu0 0
      %2375 = vmatmul.mubr.bf16.gmra.mrb[0].mxu0 %v439
      %v2376 = vpop.f32.mrb[0].mxu0
      %v2377 = vadd.f32 0.0, %v2376
      %v2378 = vpop.f32.mrb[0].mxu0
      %v2379 = vpop.f32.mrb[0].mxu0
      %v2380 = vadd.f32 0.0, %v2379
      %v2381 = vpop.f32.mrb[0].mxu0
      %2382 = vmatprep.mubr.bf16.mxu0 0
      %2383 = vmatmul.mubr.bf16.gmra.mrb[0].mxu0 %v440
      %v2384 = vpop.f32.mrb[0].mxu0
      %v2385 = vadd.f32 0.0, %v2384
      %v2386 = vpop.f32.mrb[0].mxu0
      %v2387 = vpop.f32.mrb[0].mxu0
      %v2388 = vadd.f32 0.0, %v2387
      %v2389 = vpop.f32.mrb[0].mxu0
      %2390 = vmatprep.mubr.bf16.mxu0 0
      %2391 = vmatmul.mubr.bf16.gmra.mrb[0].mxu0 %v441
      %v2392 = vpop.f32.mrb[0].mxu0
      %v2393 = vadd.f32 0.0, %v2392
      %v2394 = vpop.f32.mrb[0].mxu0
      %v2395 = vpop.f32.mrb[0].mxu0
      %v2396 = vadd.f32 0.0, %v2395
      %v2397 = vpop.f32.mrb[0].mxu0
      %2398 = vmatprep.mubr.bf16.mxu0 0
      %2399 = vmatmul.mubr.bf16.gmra.mrb[0].mxu0 %v442
      %v2400 = vpop.f32.mrb[0].mxu0
      %v2401 = vadd.f32 0.0, %v2400
      %v2402 = vpop.f32.mrb[0].mxu0
      %v2403 = vpop.f32.mrb[0].mxu0
      %v2404 = vadd.f32 0.0, %v2403
      %v2405 = vpop.f32.mrb[0].mxu0
      %2406 = vmatprep.mubr.bf16.mxu0 0
      %2407 = vmatmul.mubr.bf16.gmra.mrb[0].mxu0 %v443
      %v2408 = vpop.f32.mrb[0].mxu0
      %v2409 = vadd.f32 0.0, %v2408
      %v2410 = vpop.f32.mrb[0].mxu0
      %v2411 = vpop.f32.mrb[0].mxu0
      %v2412 = vadd.f32 0.0, %v2411
      %v2413 = vpop.f32.mrb[0].mxu0
      %2414 = vmatprep.mubr.bf16.mxu0 0
      %2415 = vmatmul.mubr.bf16.gmra.mrb[0].mxu0 %v444
      %v2416 = vpop.f32.mrb[0].mxu0
      %v2417 = vadd.f32 0.0, %v2416
      %v2418 = vpop.f32.mrb[0].mxu0
      %v2419 = vpop.f32.mrb[0].mxu0
      %v2420 = vadd.f32 0.0, %v2419
      %v2421 = vpop.f32.mrb[0].mxu0
      %2422 = vmatprep.mubr.bf16.mxu0 0
      %2423 = vmatmul.mubr.bf16.gmra.mrb[0].mxu0 %v445
      %v2424 = vpop.f32.mrb[0].mxu0
      %v2425 = vadd.f32 0.0, %v2424
      %v2426 = vpop.f32.mrb[0].mxu0
      %v2427 = vpop.f32.mrb[0].mxu0
      %v2428 = vadd.f32 0.0, %v2427
      %v2429 = vpop.f32.mrb[0].mxu0
      %2430 = vmatprep.mubr.bf16.mxu0 0
      %2431 = vmatmul.mubr.bf16.gmra.mrb[0].mxu0 %v1434
      %v2432 = vpop.f32.mrb[0].mxu0
      %v2433 = vadd.f32 0.0, %v2432
      %v2434 = vpop.f32.mrb[0].mxu0
      %v2435 = vpop.f32.mrb[0].mxu0
      %v2436 = vadd.f32 0.0, %v2435
      %v2437 = vpop.f32.mrb[0].mxu0
      %2438 = vmatprep.mubr.bf16.mxu0 0
      %2439 = vmatmul.mubr.bf16.gmra.mrb[0].mxu0 %v445
      %v2440 = vpop.f32.mrb[0].mxu0
      %v2441 = vadd.f32 0.0, %v2440
      %v2442 = vpop.f32.mrb[0].mxu0
      %v2443 = vpop.f32.mrb[0].mxu0
      %v2444 = vadd.f32 0.0, %v2443
      %v2445 = vpop.f32.mrb[0].mxu0
      %2446 = vdwg.mxu0
      %v2447 = vadd.f32 %v2189, %v2321
      %v2448 = vadd.f32 %v2190, %v2324
      %v2449 = vadd.f32 %v2191, %v2329
      %v2450 = vadd.f32 %v2192, %v2332
      %v2451 = vadd.f32 %v2193, %v2337
      %v2452 = vadd.f32 %v2194, %v2340
      %v2453 = vadd.f32 %v2195, %v2345
      %v2454 = vadd.f32 %v2196, %v2348
      %v2455 = vadd.f32 %v2197, %v2353
      %v2456 = vadd.f32 %v2198, %v2356
      %v2457 = vadd.f32 %v2199, %v2361
      %v2458 = vadd.f32 %v2200, %v2364
      %v2459 = vadd.f32 %v2201, %v2369
      %v2460 = vadd.f32 %v2202, %v2372
      %v2461 = vadd.f32 %v2203, %v2377
      %v2462 = vadd.f32 %v2204, %v2380
      %v2463 = vadd.f32 %v2205, %v2385
      %v2464 = vadd.f32 %v2206, %v2388
      %v2465 = vadd.f32 %v2207, %v2393
      %v2466 = vadd.f32 %v2208, %v2396
      %v2467 = vadd.f32 %v2209, %v2401
      %v2468 = vadd.f32 %v2210, %v2404
      %v2469 = vadd.f32 %v2211, %v2409
      %v2470 = vadd.f32 %v2212, %v2412
      %v2471 = vadd.f32 %v2213, %v2417
      %v2472 = vadd.f32 %v2214, %v2420
      %v2473 = vadd.f32 %v2215, %v2425
      %v2474 = vadd.f32 %v2216, %v2428
      %v2475 = vadd.f32 %v2217, %v2433
      %v2476 = vadd.f32 %v2218, %v2436
      %v2477 = vadd.f32 %v2219, %v2441
      %v2478 = vadd.f32 %v2220, %v2444
      %v2479 = vpack.c.bf16 %v372, %v367
      %v2480 = vpack.c.bf16 %v1958, %v1171
      %v2481 = vpack.c.bf16 %v398, %v1959
      %s2482 = scalar_lea.vmem %s1, 512
      %v2483 = vld [vmem:[%s2482] sm:$0xf]
      %v2484 = vld [vmem:[%s2482 + $0x4] sm:$0xf]
      %v2485 = vld [vmem:[%s2482 + $0x8] sm:$0xf]
      %v2486 = vld [vmem:[%s2482 + $0xc] sm:$0xf]
      %v2487 = vld [vmem:[%s2482 + $0x10] sm:$0xf]
      %v2488 = vld [vmem:[%s2482 + $0x14] sm:$0xf]
      %v2489 = vld [vmem:[%s2482 + $0x18] sm:$0xf]
      %v2490 = vld [vmem:[%s2482 + $0x1c] sm:$0xf]
      %v2491 = vld [vmem:[%s2482 + $0x20] sm:$0xf]
      %v2492 = vld [vmem:[%s2482 + $0x24] sm:$0xf]
      %v2493 = vld [vmem:[%s2482 + $0x28] sm:$0xf]
      %v2494 = vld [vmem:[%s2482 + $0x2c] sm:$0xf]
      %v2495 = vld [vmem:[%s2482 + $0x30] sm:$0xf]
      %v2496 = vld [vmem:[%s2482 + $0x34] sm:$0xf]
      %v2497 = vld [vmem:[%s2482 + $0x38] sm:$0xf]
      %v2498 = vld [vmem:[%s2482 + $0x3c] sm:$0xf]
      %v2515 = vunpack.c.l.b16 %v2483
      %v2516 = vunpack.c.l.b16 %v2484
      %v2517 = vunpack.c.l.b16 %v2485
      %v2518 = vunpack.c.l.b16 %v2486
      %v2519 = vunpack.c.l.b16 %v2487
      %v2520 = vunpack.c.l.b16 %v2488
      %v2521 = vunpack.c.l.b16 %v2489
      %v2522 = vunpack.c.l.b16 %v2490
      %v2523 = vunpack.c.l.b16 %v2491
      %v2524 = vunpack.c.l.b16 %v2492
      %v2525 = vunpack.c.l.b16 %v2493
      %v2526 = vunpack.c.l.b16 %v2494
      %v2527 = vunpack.c.l.b16 %v2495
      %v2528 = vunpack.c.l.b16 %v2496
      %v2529 = vunpack.c.l.b16 %v2497
      %v2530 = vunpack.c.l.b16 %v2498
      %v2531 = vpack.c.b16 %v2516, %v2515
      %v2532 = vpack.c.b16 %v2518, %v2517
      %v2533 = vpack.c.b16 %v2520, %v2519
      %v2534 = vpack.c.b16 %v2522, %v2521
      %v2535 = vpack.c.b16 %v2524, %v2523
      %v2536 = vpack.c.b16 %v2526, %v2525
      %v2537 = vpack.c.b16 %v2528, %v2527
      %v2538 = vpack.c.b16 %v2530, %v2529
      %2547 = vmatprep.subr.bf16.mxu0 0
      %2548 = vmatpush1.bf16.msra.mxu0 %v2531
      %2549 = vmatprep.subr.bf16.mxu0 0
      %2550 = vmatpush1.bf16.msra.mxu0 %v2532
      %2551 = vmatprep.subr.bf16.mxu0 0
      %2552 = vmatpush1.bf16.msra.mxu0 %v2533
      %2553 = vmatprep.subr.bf16.mxu0 0
      %2554 = vmatpush1.bf16.msra.mxu0 %v2534
      %2555 = vmatprep.subr.bf16.mxu0 0
      %2556 = vmatpush1.bf16.msra.mxu0 %v2535
      %2557 = vmatprep.subr.bf16.mxu0 0
      %2558 = vmatpush1.bf16.msra.mxu0 %v2536
      %2559 = vmatprep.subr.bf16.mxu0 0
      %2560 = vmatpush1.bf16.msra.mxu0 %v2537
      %2561 = vmatprep.subr.bf16.mxu0 0
      %2562 = vmatpush1.bf16.msra.mxu0 %v2538
      %2563 = vmatprep.subr.bf16.mxu0 0
      %2564 = vmatpush1.bf16.msra.mxu0 0
      %2565 = vmatprep.subr.bf16.mxu0 0
      %2566 = vmatpush1.bf16.msra.mxu0 0
      %2567 = vmatprep.subr.bf16.mxu0 0
      %2568 = vmatpush1.bf16.msra.mxu0 0
      %2569 = vmatprep.subr.bf16.mxu0 0
      %2570 = vmatpush1.bf16.msra.mxu0 0
      %2571 = vmatprep.subr.bf16.mxu0 0
      %2572 = vmatpush1.bf16.msra.mxu0 0
      %2573 = vmatprep.subr.bf16.mxu0 0
      %2574 = vmatpush1.bf16.msra.mxu0 0
      %2575 = vmatprep.subr.bf16.mxu0 0
      %2576 = vmatpush1.bf16.msra.mxu0 0
      %2577 = vmatprep.subr.bf16.mxu0 0
      %2578 = vmatpush1.bf16.msra.mxu0 0
      %2579 = vmatprep.mubr.bf16.mxu0 0
      %2580 = vmatmul.mubr.bf16.gmra.mrb[0].mxu0 %v2479
      %v2581 = vpop.f32.mrb[0].mxu0
      %v2582 = vadd.f32 0.0, %v2581
      %v2583 = vpop.f32.mrb[0].mxu0
      %v2584 = vpop.f32.mrb[0].mxu0
      %v2585 = vadd.f32 0.0, %v2584
      %v2586 = vpop.f32.mrb[0].mxu0
      %2587 = vmatprep.mubr.bf16.mxu0 0
      %2588 = vmatmul.mubr.bf16.gmra.mrb[0].mxu0 %v884
      %v2589 = vpop.f32.mrb[0].mxu0
      %v2590 = vadd.f32 0.0, %v2589
      %v2591 = vpop.f32.mrb[0].mxu0
      %v2592 = vpop.f32.mrb[0].mxu0
      %v2593 = vadd.f32 0.0, %v2592
      %v2594 = vpop.f32.mrb[0].mxu0
      %2595 = vmatprep.mubr.bf16.mxu0 0
      %2596 = vmatmul.mubr.bf16.gmra.mrb[0].mxu0 %v885
      %v2597 = vpop.f32.mrb[0].mxu0
      %v2598 = vadd.f32 0.0, %v2597
      %v2599 = vpop.f32.mrb[0].mxu0
      %v2600 = vpop.f32.mrb[0].mxu0
      %v2601 = vadd.f32 0.0, %v2600
      %v2602 = vpop.f32.mrb[0].mxu0
      %2603 = vmatprep.mubr.bf16.mxu0 0
      %2604 = vmatmul.mubr.bf16.gmra.mrb[0].mxu0 %v886
      %v2605 = vpop.f32.mrb[0].mxu0
      %v2606 = vadd.f32 0.0, %v2605
      %v2607 = vpop.f32.mrb[0].mxu0
      %v2608 = vpop.f32.mrb[0].mxu0
      %v2609 = vadd.f32 0.0, %v2608
      %v2610 = vpop.f32.mrb[0].mxu0
      %2611 = vmatprep.mubr.bf16.mxu0 0
      %2612 = vmatmul.mubr.bf16.gmra.mrb[0].mxu0 %v887
      %v2613 = vpop.f32.mrb[0].mxu0
      %v2614 = vadd.f32 0.0, %v2613
      %v2615 = vpop.f32.mrb[0].mxu0
      %v2616 = vpop.f32.mrb[0].mxu0
      %v2617 = vadd.f32 0.0, %v2616
      %v2618 = vpop.f32.mrb[0].mxu0
      %2619 = vmatprep.mubr.bf16.mxu0 0
      %2620 = vmatmul.mubr.bf16.gmra.mrb[0].mxu0 %v888
      %v2621 = vpop.f32.mrb[0].mxu0
      %v2622 = vadd.f32 0.0, %v2621
      %v2623 = vpop.f32.mrb[0].mxu0
      %v2624 = vpop.f32.mrb[0].mxu0
      %v2625 = vadd.f32 0.0, %v2624
      %v2626 = vpop.f32.mrb[0].mxu0
      %2627 = vmatprep.mubr.bf16.mxu0 0
      %2628 = vmatmul.mubr.bf16.gmra.mrb[0].mxu0 %v889
      %v2629 = vpop.f32.mrb[0].mxu0
      %v2630 = vadd.f32 0.0, %v2629
      %v2631 = vpop.f32.mrb[0].mxu0
      %v2632 = vpop.f32.mrb[0].mxu0
      %v2633 = vadd.f32 0.0, %v2632
      %v2634 = vpop.f32.mrb[0].mxu0
      %2635 = vmatprep.mubr.bf16.mxu0 0
      %2636 = vmatmul.mubr.bf16.gmra.mrb[0].mxu0 %v890
      %v2637 = vpop.f32.mrb[0].mxu0
      %v2638 = vadd.f32 0.0, %v2637
      %v2639 = vpop.f32.mrb[0].mxu0
      %v2640 = vpop.f32.mrb[0].mxu0
      %v2641 = vadd.f32 0.0, %v2640
      %v2642 = vpop.f32.mrb[0].mxu0
      %2643 = vmatprep.mubr.bf16.mxu0 0
      %2644 = vmatmul.mubr.bf16.gmra.mrb[0].mxu0 %v891
      %v2645 = vpop.f32.mrb[0].mxu0
      %v2646 = vadd.f32 0.0, %v2645
      %v2647 = vpop.f32.mrb[0].mxu0
      %v2648 = vpop.f32.mrb[0].mxu0
      %v2649 = vadd.f32 0.0, %v2648
      %v2650 = vpop.f32.mrb[0].mxu0
      %2651 = vmatprep.mubr.bf16.mxu0 0
      %2652 = vmatmul.mubr.bf16.gmra.mrb[0].mxu0 %v892
      %v2653 = vpop.f32.mrb[0].mxu0
      %v2654 = vadd.f32 0.0, %v2653
      %v2655 = vpop.f32.mrb[0].mxu0
      %v2656 = vpop.f32.mrb[0].mxu0
      %v2657 = vadd.f32 0.0, %v2656
      %v2658 = vpop.f32.mrb[0].mxu0
      %2659 = vmatprep.mubr.bf16.mxu0 0
      %2660 = vmatmul.mubr.bf16.gmra.mrb[0].mxu0 %v893
      %v2661 = vpop.f32.mrb[0].mxu0
      %v2662 = vadd.f32 0.0, %v2661
      %v2663 = vpop.f32.mrb[0].mxu0
      %v2664 = vpop.f32.mrb[0].mxu0
      %v2665 = vadd.f32 0.0, %v2664
      %v2666 = vpop.f32.mrb[0].mxu0
      %2667 = vmatprep.mubr.bf16.mxu0 0
      %2668 = vmatmul.mubr.bf16.gmra.mrb[0].mxu0 %v894
      %v2669 = vpop.f32.mrb[0].mxu0
      %v2670 = vadd.f32 0.0, %v2669
      %v2671 = vpop.f32.mrb[0].mxu0
      %v2672 = vpop.f32.mrb[0].mxu0
      %v2673 = vadd.f32 0.0, %v2672
      %v2674 = vpop.f32.mrb[0].mxu0
      %2675 = vmatprep.mubr.bf16.mxu0 0
      %2676 = vmatmul.mubr.bf16.gmra.mrb[0].mxu0 %v895
      %v2677 = vpop.f32.mrb[0].mxu0
      %v2678 = vadd.f32 0.0, %v2677
      %v2679 = vpop.f32.mrb[0].mxu0
      %v2680 = vpop.f32.mrb[0].mxu0
      %v2681 = vadd.f32 0.0, %v2680
      %v2682 = vpop.f32.mrb[0].mxu0
      %2683 = vmatprep.mubr.bf16.mxu0 0
      %2684 = vmatmul.mubr.bf16.gmra.mrb[0].mxu0 %v1694
      %v2685 = vpop.f32.mrb[0].mxu0
      %v2686 = vadd.f32 0.0, %v2685
      %v2687 = vpop.f32.mrb[0].mxu0
      %v2688 = vpop.f32.mrb[0].mxu0
      %v2689 = vadd.f32 0.0, %v2688
      %v2690 = vpop.f32.mrb[0].mxu0
      %2691 = vmatprep.mubr.bf16.mxu0 0
      %2692 = vmatmul.mubr.bf16.gmra.mrb[0].mxu0 %v2480
      %v2693 = vpop.f32.mrb[0].mxu0
      %v2694 = vadd.f32 0.0, %v2693
      %v2695 = vpop.f32.mrb[0].mxu0
      %v2696 = vpop.f32.mrb[0].mxu0
      %v2697 = vadd.f32 0.0, %v2696
      %v2698 = vpop.f32.mrb[0].mxu0
      %2699 = vmatprep.mubr.bf16.mxu0 0
      %2700 = vmatmul.mubr.bf16.gmra.mrb[0].mxu0 %v2481
      %v2701 = vpop.f32.mrb[0].mxu0
      %v2702 = vadd.f32 0.0, %v2701
      %v2703 = vpop.f32.mrb[0].mxu0
      %v2704 = vpop.f32.mrb[0].mxu0
      %v2705 = vadd.f32 0.0, %v2704
      %v2706 = vpop.f32.mrb[0].mxu0
      %2707 = vdwg.mxu0
      %v2708 = vadd.f32 %v2447, %v2582
      %v2709 = vadd.f32 %v2448, %v2585
      %v2710 = vadd.f32 %v2449, %v2590
      %v2711 = vadd.f32 %v2450, %v2593
      %v2712 = vadd.f32 %v2451, %v2598
      %v2713 = vadd.f32 %v2452, %v2601
      %v2714 = vadd.f32 %v2453, %v2606
      %v2715 = vadd.f32 %v2454, %v2609
      %v2716 = vadd.f32 %v2455, %v2614
      %v2717 = vadd.f32 %v2456, %v2617
      %v2718 = vadd.f32 %v2457, %v2622
      %v2719 = vadd.f32 %v2458, %v2625
      %v2720 = vadd.f32 %v2459, %v2630
      %v2721 = vadd.f32 %v2460, %v2633
      %v2722 = vadd.f32 %v2461, %v2638
      %v2723 = vadd.f32 %v2462, %v2641
      %v2724 = vadd.f32 %v2463, %v2646
      %v2725 = vadd.f32 %v2464, %v2649
      %v2726 = vadd.f32 %v2465, %v2654
      %v2727 = vadd.f32 %v2466, %v2657
      %v2728 = vadd.f32 %v2467, %v2662
      %v2729 = vadd.f32 %v2468, %v2665
      %v2730 = vadd.f32 %v2469, %v2670
      %v2731 = vadd.f32 %v2470, %v2673
      %v2732 = vadd.f32 %v2471, %v2678
      %v2733 = vadd.f32 %v2472, %v2681
      %v2734 = vadd.f32 %v2473, %v2686
      %v2735 = vadd.f32 %v2474, %v2689
      %v2736 = vadd.f32 %v2475, %v2694
      %v2737 = vadd.f32 %v2476, %v2697
      %v2738 = vadd.f32 %v2477, %v2702
      %v2739 = vadd.f32 %v2478, %v2705
      %v2740 = vadd.f32 %v2708, %v2709
      %v2741 = vadd.f32 %v2740, %v2710
      %v2742 = vadd.f32 %v2741, %v2711
      %v2743 = vadd.f32 %v2742, %v2712
      %v2744 = vadd.f32 %v2743, %v2713
      %v2745 = vadd.f32 %v2744, %v2714
      %v2746 = vadd.f32 %v2745, %v2715
      %v2747 = vadd.f32 %v2746, %v2716
      %v2748 = vadd.f32 %v2747, %v2717
      %v2749 = vadd.f32 %v2748, %v2718
      %v2750 = vadd.f32 %v2749, %v2719
      %v2751 = vadd.f32 %v2750, %v2720
      %v2752 = vadd.f32 %v2751, %v2721
      %v2753 = vadd.f32 %v2752, %v2722
      %v2754 = vadd.f32 %v2753, %v2723
      %v2755 = vadd.f32 %v2754, %v2724
      %v2756 = vadd.f32 %v2755, %v2725
      %v2757 = vadd.f32 %v2756, %v2726
      %v2758 = vadd.f32 %v2757, %v2727
      %v2759 = vadd.f32 %v2758, %v2728
      %v2760 = vadd.f32 %v2759, %v2729
      %v2761 = vadd.f32 %v2760, %v2730
      %v2762 = vadd.f32 %v2761, %v2731
      %v2763 = vadd.f32 %v2762, %v2732
      %v2764 = vadd.f32 %v2763, %v2733
      %v2765 = vadd.f32 %v2764, %v2734
      %v2766 = vadd.f32 %v2765, %v2735
      %v2767 = vadd.f32 %v2766, %v2736
      %v2768 = vadd.f32 %v2767, %v2737
      %v2769 = vadd.f32 %v2768, %v2738
      %v2770 = vadd.f32 %v2769, %v2739
      %v2771 = vrot.slane %v2770, 4
      %v2772 = vadd.f32 %v2770, %v2771
      %v2773 = vrot.slane %v2772, 2
      %v2774 = vadd.f32 %v2772, %v2773
      %v2775 = vrot.slane %v2774, 1
      %v2776 = vadd.f32 %v2774, %v2775
      %v2777 = vmul.f32 %v2776, 0.00390625
      %v2778 = vmul.f32 %v2708, %v2708
      %v2779 = vmul.f32 %v2709, %v2709
      %v2780 = vmul.f32 %v2710, %v2710
      %v2781 = vmul.f32 %v2711, %v2711
      %v2782 = vmul.f32 %v2712, %v2712
      %v2783 = vmul.f32 %v2713, %v2713
      %v2784 = vmul.f32 %v2714, %v2714
      %v2785 = vmul.f32 %v2715, %v2715
      %v2786 = vmul.f32 %v2716, %v2716
      %v2787 = vmul.f32 %v2717, %v2717
      %v2788 = vmul.f32 %v2718, %v2718
      %v2789 = vmul.f32 %v2719, %v2719
      %v2790 = vmul.f32 %v2720, %v2720
      %v2791 = vmul.f32 %v2721, %v2721
      %v2792 = vmul.f32 %v2722, %v2722
      %v2793 = vmul.f32 %v2723, %v2723
      %v2794 = vmul.f32 %v2724, %v2724
      %v2795 = vmul.f32 %v2725, %v2725
      %v2796 = vmul.f32 %v2726, %v2726
      %v2797 = vmul.f32 %v2727, %v2727
      %v2798 = vmul.f32 %v2728, %v2728
      %v2799 = vmul.f32 %v2729, %v2729
      %v2800 = vmul.f32 %v2730, %v2730
      %v2801 = vmul.f32 %v2731, %v2731
      %v2802 = vmul.f32 %v2732, %v2732
      %v2803 = vmul.f32 %v2733, %v2733
      %v2804 = vmul.f32 %v2734, %v2734
      %v2805 = vmul.f32 %v2735, %v2735
      %v2806 = vmul.f32 %v2736, %v2736
      %v2807 = vmul.f32 %v2737, %v2737
      %v2808 = vmul.f32 %v2738, %v2738
      %v2809 = vmul.f32 %v2739, %v2739
      %v2810 = vadd.f32 %v2778, %v2779
      %v2811 = vadd.f32 %v2810, %v2780
      %v2812 = vadd.f32 %v2811, %v2781
      %v2813 = vadd.f32 %v2812, %v2782
      %v2814 = vadd.f32 %v2813, %v2783
      %v2815 = vadd.f32 %v2814, %v2784
      %v2816 = vadd.f32 %v2815, %v2785
      %v2817 = vadd.f32 %v2816, %v2786
      %v2818 = vadd.f32 %v2817, %v2787
      %v2819 = vadd.f32 %v2818, %v2788
      %v2820 = vadd.f32 %v2819, %v2789
      %v2821 = vadd.f32 %v2820, %v2790
      %v2822 = vadd.f32 %v2821, %v2791
      %v2823 = vadd.f32 %v2822, %v2792
      %v2824 = vadd.f32 %v2823, %v2793
      %v2825 = vadd.f32 %v2824, %v2794
      %v2826 = vadd.f32 %v2825, %v2795
      %v2827 = vadd.f32 %v2826, %v2796
      %v2828 = vadd.f32 %v2827, %v2797
      %v2829 = vadd.f32 %v2828, %v2798
      %v2830 = vadd.f32 %v2829, %v2799
      %v2831 = vadd.f32 %v2830, %v2800
      %v2832 = vadd.f32 %v2831, %v2801
      %v2833 = vadd.f32 %v2832, %v2802
      %v2834 = vadd.f32 %v2833, %v2803
      %v2835 = vadd.f32 %v2834, %v2804
      %v2836 = vadd.f32 %v2835, %v2805
      %v2837 = vadd.f32 %v2836, %v2806
      %v2838 = vadd.f32 %v2837, %v2807
      %v2839 = vadd.f32 %v2838, %v2808
      %v2840 = vadd.f32 %v2839, %v2809
      %v2841 = vrot.slane %v2840, 4
      %v2842 = vadd.f32 %v2840, %v2841
      %v2843 = vrot.slane %v2842, 2
      %v2844 = vadd.f32 %v2842, %v2843
      %v2845 = vrot.slane %v2844, 1
      %v2846 = vadd.f32 %v2844, %v2845
      %v2847 = vmul.f32 %v2846, 0.00390625
      %v2848 = vmul.f32 %v2777, %v2777
      %v2849 = vsub.f32 %v2847, %v2848
      %v2850 = vmax.f32 %v2849, 0.0
      %v2851 = vsub.f32 %v2708, %v2777
      %v2852 = vsub.f32 %v2709, %v2777
      %v2853 = vsub.f32 %v2710, %v2777
      %v2854 = vsub.f32 %v2711, %v2777
      %v2855 = vsub.f32 %v2712, %v2777
      %v2856 = vsub.f32 %v2713, %v2777
      %v2857 = vsub.f32 %v2714, %v2777
      %v2858 = vsub.f32 %v2715, %v2777
      %v2859 = vsub.f32 %v2716, %v2777
      %v2860 = vsub.f32 %v2717, %v2777
      %v2861 = vsub.f32 %v2718, %v2777
      %v2862 = vsub.f32 %v2719, %v2777
      %v2863 = vsub.f32 %v2720, %v2777
      %v2864 = vsub.f32 %v2721, %v2777
      %v2865 = vsub.f32 %v2722, %v2777
      %v2866 = vsub.f32 %v2723, %v2777
      %v2867 = vsub.f32 %v2724, %v2777
      %v2868 = vsub.f32 %v2725, %v2777
      %v2869 = vsub.f32 %v2726, %v2777
      %v2870 = vsub.f32 %v2727, %v2777
      %v2871 = vsub.f32 %v2728, %v2777
      %v2872 = vsub.f32 %v2729, %v2777
      %v2873 = vsub.f32 %v2730, %v2777
      %v2874 = vsub.f32 %v2731, %v2777
      %v2875 = vsub.f32 %v2732, %v2777
      %v2876 = vsub.f32 %v2733, %v2777
      %v2877 = vsub.f32 %v2734, %v2777
      %v2878 = vsub.f32 %v2735, %v2777
      %v2879 = vsub.f32 %v2736, %v2777
      %v2880 = vsub.f32 %v2737, %v2777
      %v2881 = vsub.f32 %v2738, %v2777
      %v2882 = vsub.f32 %v2739, %v2777
      %v2883 = vadd.f32 %v2850, 1e-05
      %v2884 = vrsqrt.pop %v2883
      %v2885 = vmul.f32 %v2851, %v2884
      %v2886 = vmul.f32 %v2852, %v2884
      %v2887 = vmul.f32 %v2853, %v2884
      %v2888 = vmul.f32 %v2854, %v2884
      %v2889 = vmul.f32 %v2855, %v2884
      %v2890 = vmul.f32 %v2856, %v2884
      %v2891 = vmul.f32 %v2857, %v2884
      %v2892 = vmul.f32 %v2858, %v2884
      %v2893 = vmul.f32 %v2859, %v2884
      %v2894 = vmul.f32 %v2860, %v2884
      %v2895 = vmul.f32 %v2861, %v2884
      %v2896 = vmul.f32 %v2862, %v2884
      %v2897 = vmul.f32 %v2863, %v2884
      %v2898 = vmul.f32 %v2864, %v2884
      %v2899 = vmul.f32 %v2865, %v2884
      %v2900 = vmul.f32 %v2866, %v2884
      %v2901 = vmul.f32 %v2867, %v2884
      %v2902 = vmul.f32 %v2868, %v2884
      %v2903 = vmul.f32 %v2869, %v2884
      %v2904 = vmul.f32 %v2870, %v2884
      %v2905 = vmul.f32 %v2871, %v2884
      %v2906 = vmul.f32 %v2872, %v2884
      %v2907 = vmul.f32 %v2873, %v2884
      %v2908 = vmul.f32 %v2874, %v2884
      %v2909 = vmul.f32 %v2875, %v2884
      %v2910 = vmul.f32 %v2876, %v2884
      %v2911 = vmul.f32 %v2877, %v2884
      %v2912 = vmul.f32 %v2878, %v2884
      %v2913 = vmul.f32 %v2879, %v2884
      %v2914 = vmul.f32 %v2880, %v2884
      %v2915 = vmul.f32 %v2881, %v2884
      %v2916 = vmul.f32 %v2882, %v2884
      %v2917 = vmax.f32 %v2885, 0.0
      %v2918 = vmax.f32 %v2886, 0.0
      %v2919 = vmax.f32 %v2887, 0.0
      %v2920 = vmax.f32 %v2888, 0.0
      %v2921 = vmax.f32 %v2889, 0.0
      %v2922 = vmax.f32 %v2890, 0.0
      %v2923 = vmax.f32 %v2891, 0.0
      %v2924 = vmax.f32 %v2892, 0.0
      %v2925 = vmax.f32 %v2893, 0.0
      %v2926 = vmax.f32 %v2894, 0.0
      %v2927 = vmax.f32 %v2895, 0.0
      %v2928 = vmax.f32 %v2896, 0.0
      %v2929 = vmax.f32 %v2897, 0.0
      %v2930 = vmax.f32 %v2898, 0.0
      %v2931 = vmax.f32 %v2899, 0.0
      %v2932 = vmax.f32 %v2900, 0.0
      %v2933 = vmax.f32 %v2901, 0.0
      %v2934 = vmax.f32 %v2902, 0.0
      %v2935 = vmax.f32 %v2903, 0.0
      %v2936 = vmax.f32 %v2904, 0.0
      %v2937 = vmax.f32 %v2905, 0.0
      %v2938 = vmax.f32 %v2906, 0.0
      %v2939 = vmax.f32 %v2907, 0.0
      %v2940 = vmax.f32 %v2908, 0.0
      %v2941 = vmax.f32 %v2909, 0.0
      %v2942 = vmax.f32 %v2910, 0.0
      %v2943 = vmax.f32 %v2911, 0.0
      %v2944 = vmax.f32 %v2912, 0.0
      %v2945 = vmax.f32 %v2913, 0.0
      %v2946 = vmax.f32 %v2914, 0.0
      %v2947 = vmax.f32 %v2915, 0.0
      %v2948 = vmax.f32 %v2916, 0.0
      %v2949 = vrot.slane %v2919, 7
      %v2950 = vrot.slane %v2920, 7
      %v2951 = vrot.slane %v2917, 7
      %v2952 = vrot.slane %v2918, 7
      %v2953 = vrot.slane %v2921, 7
      %v2954 = vrot.slane %v2922, 7
      %v2955 = vrot.slane %v2923, 7
      %v2956 = vrot.slane %v2924, 7
      %v2957 = vrot.slane %v2925, 7
      %v2958 = vrot.slane %v2926, 7
      %v2959 = vrot.slane %v2927, 7
      %v2960 = vrot.slane %v2928, 7
      %v2961 = vrot.slane %v2929, 7
      %v2962 = vrot.slane %v2930, 7
      %v2963 = vrot.slane %v2931, 7
      %v2964 = vrot.slane %v2932, 7
      %v2965 = vrot.slane %v2933, 7
      %v2966 = vrot.slane %v2934, 7
      %v2967 = vrot.slane %v2935, 7
      %v2968 = vrot.slane %v2936, 7
      %v2969 = vrot.slane %v2937, 7
      %v2970 = vrot.slane %v2938, 7
      %v2971 = vrot.slane %v2939, 7
      %v2972 = vrot.slane %v2940, 7
      %v2973 = vrot.slane %v2941, 7
      %v2974 = vrot.slane %v2942, 7
      %v2975 = vrot.slane %v2943, 7
      %v2976 = vrot.slane %v2944, 7
      %v2977 = vrot.slane %v2945, 7
      %v2978 = vrot.slane %v2946, 7
      %v2979 = vsel %vm241, %v2977, %v2978
      %v2980 = vsel %vm241, %v2976, %v2977
      %v2981 = vsel %vm241, %v2975, %v2976
      %v2982 = vsel %vm241, %v2974, %v2975
      %v2983 = vsel %vm241, %v2973, %v2974
      %v2984 = vsel %vm241, %v2972, %v2973
      %v2985 = vsel %vm241, %v2971, %v2972
      %v2986 = vsel %vm241, %v2970, %v2971
      %v2987 = vsel %vm241, %v2969, %v2970
      %v2988 = vsel %vm241, %v2968, %v2969
      %v2989 = vsel %vm241, %v2967, %v2968
      %v2990 = vsel %vm241, %v2966, %v2967
      %v2991 = vsel %vm241, %v2965, %v2966
      %v2992 = vsel %vm241, %v2964, %v2965
      %v2993 = vsel %vm241, %v2963, %v2964
      %v2994 = vsel %vm241, %v2962, %v2963
      %v2995 = vsel %vm241, %v2961, %v2962
      %v2996 = vsel %vm241, %v2960, %v2961
      %v2997 = vsel %vm241, %v2959, %v2960
      %v2998 = vsel %vm241, %v2958, %v2959
      %v2999 = vsel %vm241, %v2957, %v2958
      %v3000 = vsel %vm241, %v2956, %v2957
      %v3001 = vsel %vm241, %v2955, %v2956
      %v3002 = vsel %vm241, %v2954, %v2955
      %v3003 = vsel %vm241, %v2953, %v2954
      %v3004 = vsel %vm241, %v2950, %v2953
      %v3005 = vsel %vm241, %v2949, %v2950
      %v3006 = vsel %vm241, %v2952, %v2949
      %v3007 = vsel %vm241, %v2951, %v2952
      %v3008 = vsel %vm241, %v2950, %v2951
      %v3009 = vsel %vm241, %v2978, %v2949
      %v3010 = vrot.slane %v2919, 1
      %v3011 = vrot.slane %v2920, 1
      %v3012 = vrot.slane %v2917, 1
      %v3013 = vrot.slane %v2918, 1
      %v3014 = vrot.slane %v2921, 1
      %v3015 = vrot.slane %v2922, 1
      %v3016 = vrot.slane %v2923, 1
      %v3017 = vrot.slane %v2924, 1
      %v3018 = vrot.slane %v2925, 1
      %v3019 = vrot.slane %v2926, 1
      %v3020 = vrot.slane %v2927, 1
      %v3021 = vrot.slane %v2928, 1
      %v3022 = vrot.slane %v2929, 1
      %v3023 = vrot.slane %v2930, 1
      %v3024 = vrot.slane %v2931, 1
      %v3025 = vrot.slane %v2932, 1
      %v3026 = vrot.slane %v2933, 1
      %v3027 = vrot.slane %v2934, 1
      %v3028 = vrot.slane %v2935, 1
      %v3029 = vrot.slane %v2936, 1
      %v3030 = vrot.slane %v2937, 1
      %v3031 = vrot.slane %v2938, 1
      %v3032 = vrot.slane %v2939, 1
      %v3033 = vrot.slane %v2940, 1
      %v3034 = vrot.slane %v2941, 1
      %v3035 = vrot.slane %v2942, 1
      %v3036 = vrot.slane %v2943, 1
      %v3037 = vrot.slane %v2944, 1
      %v3038 = vrot.slane %v2945, 1
      %v3039 = vrot.slane %v2946, 1
      %v3040 = vsel %vm303, %v3038, %v3039
      %v3041 = vsel %vm303, %v3037, %v3038
      %v3042 = vsel %vm303, %v3036, %v3037
      %v3043 = vsel %vm303, %v3035, %v3036
      %v3044 = vsel %vm303, %v3034, %v3035
      %v3045 = vsel %vm303, %v3033, %v3034
      %v3046 = vsel %vm303, %v3032, %v3033
      %v3047 = vsel %vm303, %v3031, %v3032
      %v3048 = vsel %vm303, %v3030, %v3031
      %v3049 = vsel %vm303, %v3029, %v3030
      %v3050 = vsel %vm303, %v3028, %v3029
      %v3051 = vsel %vm303, %v3027, %v3028
      %v3052 = vsel %vm303, %v3026, %v3027
      %v3053 = vsel %vm303, %v3025, %v3026
      %v3054 = vsel %vm303, %v3024, %v3025
      %v3055 = vsel %vm303, %v3023, %v3024
      %v3056 = vsel %vm303, %v3022, %v3023
      %v3057 = vsel %vm303, %v3021, %v3022
      %v3058 = vsel %vm303, %v3020, %v3021
      %v3059 = vsel %vm303, %v3019, %v3020
      %v3060 = vsel %vm303, %v3018, %v3019
      %v3061 = vsel %vm303, %v3017, %v3018
      %v3062 = vsel %vm303, %v3016, %v3017
      %v3063 = vsel %vm303, %v3015, %v3016
      %v3064 = vsel %vm303, %v3014, %v3015
      %v3065 = vsel %vm303, %v3011, %v3014
      %v3066 = vsel %vm303, %v3010, %v3011
      %v3067 = vsel %vm303, %v3013, %v3010
      %v3068 = vsel %vm303, %v3012, %v3013
      %v3069 = vsel %vm303, %v3011, %v3012
      %v3070 = vsel %vm303, %v3039, %v3010
      %v3071 = vsel %vm207, %v3066, %v3009
      %v3072 = vsel %vm208, %v3069, %v3005
      %v3073 = vsel %vm207, %v3068, %v3008
      %v3074 = vsel %vm208, %v3067, %v3007
      %v3075 = vsel %vm207, %v3066, %v3006
      %v3076 = vsel %vm208, %v3065, %v3005
      %v3077 = vsel %vm207, %v3064, %v3004
      %v3078 = vsel %vm208, %v3063, %v3003
      %v3079 = vsel %vm207, %v3062, %v3002
      %v3080 = vsel %vm208, %v3061, %v3001
      %v3081 = vsel %vm207, %v3060, %v3000
      %v3082 = vsel %vm208, %v3059, %v2999
      %v3083 = vsel %vm207, %v3058, %v2998
      %v3084 = vsel %vm208, %v3057, %v2997
      %v3085 = vsel %vm207, %v3056, %v2996
      %v3086 = vsel %vm208, %v3055, %v2995
      %v3087 = vsel %vm207, %v3054, %v2994
      %v3088 = vsel %vm208, %v3053, %v2993
      %v3089 = vsel %vm207, %v3052, %v2992
      %v3090 = vsel %vm208, %v3051, %v2991
      %v3091 = vsel %vm207, %v3050, %v2990
      %v3092 = vsel %vm208, %v3049, %v2989
      %v3093 = vsel %vm207, %v3048, %v2988
      %v3094 = vsel %vm208, %v3047, %v2987
      %v3095 = vsel %vm207, %v3046, %v2986
      %v3096 = vsel %vm208, %v3045, %v2985
      %v3097 = vsel %vm207, %v3044, %v2984
      %v3098 = vsel %vm208, %v3043, %v2983
      %v3099 = vsel %vm207, %v3042, %v2982
      %v3100 = vsel %vm208, %v3041, %v2981
      %v3101 = vsel %vm207, %v3040, %v2980
      %v3102 = vsel %vm208, %v3070, %v2979
      %v3103 = vsel %vm209, %v3009, %v3066
      %v3104 = vsel %vm210, %v3005, %v3069
      %v3105 = vsel %vm209, %v3008, %v3068
      %v3106 = vsel %vm210, %v3007, %v3067
      %v3107 = vsel %vm209, %v3006, %v3066
      %v3108 = vsel %vm210, %v3005, %v3065
      %v3109 = vsel %vm209, %v3004, %v3064
      %v3110 = vsel %vm210, %v3003, %v3063
      %v3111 = vsel %vm209, %v3002, %v3062
      %v3112 = vsel %vm210, %v3001, %v3061
      %v3113 = vsel %vm209, %v3000, %v3060
      %v3114 = vsel %vm210, %v2999, %v3059
      %v3115 = vsel %vm209, %v2998, %v3058
      %v3116 = vsel %vm210, %v2997, %v3057
      %v3117 = vsel %vm209, %v2996, %v3056
      %v3118 = vsel %vm210, %v2995, %v3055
      %v3119 = vsel %vm209, %v2994, %v3054
      %v3120 = vsel %vm210, %v2993, %v3053
      %v3121 = vsel %vm209, %v2992, %v3052
      %v3122 = vsel %vm210, %v2991, %v3051
      %v3123 = vsel %vm209, %v2990, %v3050
      %v3124 = vsel %vm210, %v2989, %v3049
      %v3125 = vsel %vm209, %v2988, %v3048
      %v3126 = vsel %vm210, %v2987, %v3047
      %v3127 = vsel %vm209, %v2986, %v3046
      %v3128 = vsel %vm210, %v2985, %v3045
      %v3129 = vsel %vm209, %v2984, %v3044
      %v3130 = vsel %vm210, %v2983, %v3043
      %v3131 = vsel %vm209, %v2982, %v3042
      %v3132 = vsel %vm210, %v2981, %v3041
      %v3133 = vsel %vm209, %v2980, %v3040
      %v3134 = vsel %vm210, %v2979, %v3070
      %v3135 = vpack.c.bf16 %v3072, %v3071
      %v3136 = vpack.c.bf16 %v3074, %v3073
      %v3137 = vpack.c.bf16 %v3076, %v3075
      %v3138 = vpack.c.bf16 %v3078, %v3077
      %v3139 = vpack.c.bf16 %v3080, %v3079
      %v3140 = vpack.c.bf16 %v3082, %v3081
      %v3141 = vpack.c.bf16 %v3084, %v3083
      %v3142 = vpack.c.bf16 %v3086, %v3085
      %v3143 = vpack.c.bf16 %v3088, %v3087
      %v3144 = vpack.c.bf16 %v3090, %v3089
      %v3145 = vpack.c.bf16 %v3092, %v3091
      %v3146 = vpack.c.bf16 %v3094, %v3093
      %v3147 = vpack.c.bf16 %v3096, %v3095
      %v3148 = vpack.c.bf16 %v3098, %v3097
      %v3149 = vpack.c.bf16 %v3100, %v3099
      %v3150 = vpack.c.bf16 %v3102, %v3101
      %v3151 = vld [vmem:[%s2] sm:$0xf]
      %v3152 = vld [vmem:[%s2 + $0x4] sm:$0xf]
      %v3153 = vld [vmem:[%s2 + $0x8] sm:$0xf]
      %v3154 = vld [vmem:[%s2 + $0xc] sm:$0xf]
      %v3155 = vld [vmem:[%s2 + $0x10] sm:$0xf]
      %v3156 = vld [vmem:[%s2 + $0x14] sm:$0xf]
      %v3157 = vld [vmem:[%s2 + $0x18] sm:$0xf]
      %v3158 = vld [vmem:[%s2 + $0x1c] sm:$0xf]
      %v3159 = vld [vmem:[%s2 + $0x20] sm:$0xf]
      %v3160 = vld [vmem:[%s2 + $0x24] sm:$0xf]
      %v3161 = vld [vmem:[%s2 + $0x28] sm:$0xf]
      %v3162 = vld [vmem:[%s2 + $0x2c] sm:$0xf]
      %v3163 = vld [vmem:[%s2 + $0x30] sm:$0xf]
      %v3164 = vld [vmem:[%s2 + $0x34] sm:$0xf]
      %v3165 = vld [vmem:[%s2 + $0x38] sm:$0xf]
      %v3166 = vld [vmem:[%s2 + $0x3c] sm:$0xf]
      %v3167 = vpack.c.bf16 %v2920, %v2919
      %v3168 = vpack.c.bf16 %v2918, %v2917
      %v3169 = vpack.c.bf16 %v2922, %v2921
      %v3170 = vpack.c.bf16 %v2924, %v2923
      %v3171 = vpack.c.bf16 %v2926, %v2925
      %v3172 = vpack.c.bf16 %v2928, %v2927
      %v3173 = vpack.c.bf16 %v2930, %v2929
      %v3174 = vpack.c.bf16 %v2932, %v2931
      %v3175 = vpack.c.bf16 %v2934, %v2933
      %v3176 = vpack.c.bf16 %v2936, %v2935
      %v3177 = vpack.c.bf16 %v2938, %v2937
      %v3178 = vpack.c.bf16 %v2940, %v2939
      %v3179 = vpack.c.bf16 %v2942, %v2941
      %v3180 = vpack.c.bf16 %v2944, %v2943
      %v3181 = vpack.c.bf16 %v2946, %v2945
      %s3182 = scalar_lea.vmem %s2, 64
      %v3183 = vld [vmem:[%s3182] sm:$0xf]
      %v3184 = vld [vmem:[%s3182 + $0x4] sm:$0xf]
      %v3185 = vld [vmem:[%s3182 + $0x8] sm:$0xf]
      %v3186 = vld [vmem:[%s3182 + $0xc] sm:$0xf]
      %v3187 = vld [vmem:[%s3182 + $0x10] sm:$0xf]
      %v3188 = vld [vmem:[%s3182 + $0x14] sm:$0xf]
      %v3189 = vld [vmem:[%s3182 + $0x18] sm:$0xf]
      %v3190 = vld [vmem:[%s3182 + $0x1c] sm:$0xf]
      %v3191 = vld [vmem:[%s3182 + $0x20] sm:$0xf]
      %v3192 = vld [vmem:[%s3182 + $0x24] sm:$0xf]
      %v3193 = vld [vmem:[%s3182 + $0x28] sm:$0xf]
      %v3194 = vld [vmem:[%s3182 + $0x2c] sm:$0xf]
      %v3195 = vld [vmem:[%s3182 + $0x30] sm:$0xf]
      %v3196 = vld [vmem:[%s3182 + $0x34] sm:$0xf]
      %v3197 = vld [vmem:[%s3182 + $0x38] sm:$0xf]
      %v3198 = vld [vmem:[%s3182 + $0x3c] sm:$0xf]
      %v3215 = vunpack.c.l.b16 %v3183
      %v3216 = vunpack.c.l.b16 %v3184
      %v3217 = vunpack.c.l.b16 %v3185
      %v3218 = vunpack.c.l.b16 %v3186
      %v3219 = vunpack.c.l.b16 %v3187
      %v3220 = vunpack.c.l.b16 %v3188
      %v3221 = vunpack.c.l.b16 %v3189
      %v3222 = vunpack.c.l.b16 %v3190
      %v3223 = vunpack.c.l.b16 %v3191
      %v3224 = vunpack.c.l.b16 %v3192
      %v3225 = vunpack.c.l.b16 %v3193
      %v3226 = vunpack.c.l.b16 %v3194
      %v3227 = vunpack.c.l.b16 %v3195
      %v3228 = vunpack.c.l.b16 %v3196
      %v3229 = vunpack.c.l.b16 %v3197
      %v3230 = vunpack.c.l.b16 %v3198
      %v3231 = vpack.c.b16 %v3216, %v3215
      %v3232 = vpack.c.b16 %v3218, %v3217
      %v3233 = vpack.c.b16 %v3220, %v3219
      %v3234 = vpack.c.b16 %v3222, %v3221
      %v3235 = vpack.c.b16 %v3224, %v3223
      %v3236 = vpack.c.b16 %v3226, %v3225
      %v3237 = vpack.c.b16 %v3228, %v3227
      %v3238 = vpack.c.b16 %v3230, %v3229
      %3247 = vmatprep.subr.bf16.mxu0 0
      %3248 = vmatpush1.bf16.msra.mxu0 %v3231
      %3249 = vmatprep.subr.bf16.mxu0 0
      %3250 = vmatpush1.bf16.msra.mxu0 %v3232
      %3251 = vmatprep.subr.bf16.mxu0 0
      %3252 = vmatpush1.bf16.msra.mxu0 %v3233
      %3253 = vmatprep.subr.bf16.mxu0 0
      %3254 = vmatpush1.bf16.msra.mxu0 %v3234
      %3255 = vmatprep.subr.bf16.mxu0 0
      %3256 = vmatpush1.bf16.msra.mxu0 %v3235
      %3257 = vmatprep.subr.bf16.mxu0 0
      %3258 = vmatpush1.bf16.msra.mxu0 %v3236
      %3259 = vmatprep.subr.bf16.mxu0 0
      %3260 = vmatpush1.bf16.msra.mxu0 %v3237
      %3261 = vmatprep.subr.bf16.mxu0 0
      %3262 = vmatpush1.bf16.msra.mxu0 %v3238
      %3263 = vmatprep.subr.bf16.mxu0 0
      %3264 = vmatpush1.bf16.msra.mxu0 0
      %3265 = vmatprep.subr.bf16.mxu0 0
      %3266 = vmatpush1.bf16.msra.mxu0 0
      %3267 = vmatprep.subr.bf16.mxu0 0
      %3268 = vmatpush1.bf16.msra.mxu0 0
      %3269 = vmatprep.subr.bf16.mxu0 0
      %3270 = vmatpush1.bf16.msra.mxu0 0
      %3271 = vmatprep.subr.bf16.mxu0 0
      %3272 = vmatpush1.bf16.msra.mxu0 0
      %3273 = vmatprep.subr.bf16.mxu0 0
      %3274 = vmatpush1.bf16.msra.mxu0 0
      %3275 = vmatprep.subr.bf16.mxu0 0
      %3276 = vmatpush1.bf16.msra.mxu0 0
      %3277 = vmatprep.subr.bf16.mxu0 0
      %3278 = vmatpush1.bf16.msra.mxu0 0
      %3279 = vmatprep.mubr.bf16.mxu0 0
      %3280 = vmatmul.mubr.bf16.gmra.mrb[0].mxu0 %v3167
      %v3281 = vpop.f32.mrb[0].mxu0
      %v3282 = vadd.f32 0.0, %v3281
      %v3283 = vpop.f32.mrb[0].mxu0
      %v3284 = vpop.f32.mrb[0].mxu0
      %v3285 = vadd.f32 0.0, %v3284
      %v3286 = vpop.f32.mrb[0].mxu0
      %3287 = vmatprep.mubr.bf16.mxu0 0
      %3288 = vmatmul.mubr.bf16.gmra.mrb[0].mxu0 %v3168
      %v3289 = vpop.f32.mrb[0].mxu0
      %v3290 = vadd.f32 0.0, %v3289
      %v3291 = vpop.f32.mrb[0].mxu0
      %v3292 = vpop.f32.mrb[0].mxu0
      %v3293 = vadd.f32 0.0, %v3292
      %v3294 = vpop.f32.mrb[0].mxu0
      %3295 = vmatprep.mubr.bf16.mxu0 0
      %3296 = vmatmul.mubr.bf16.gmra.mrb[0].mxu0 %v3167
      %v3297 = vpop.f32.mrb[0].mxu0
      %v3298 = vadd.f32 0.0, %v3297
      %v3299 = vpop.f32.mrb[0].mxu0
      %v3300 = vpop.f32.mrb[0].mxu0
      %v3301 = vadd.f32 0.0, %v3300
      %v3302 = vpop.f32.mrb[0].mxu0
      %3303 = vmatprep.mubr.bf16.mxu0 0
      %3304 = vmatmul.mubr.bf16.gmra.mrb[0].mxu0 %v3169
      %v3305 = vpop.f32.mrb[0].mxu0
      %v3306 = vadd.f32 0.0, %v3305
      %v3307 = vpop.f32.mrb[0].mxu0
      %v3308 = vpop.f32.mrb[0].mxu0
      %v3309 = vadd.f32 0.0, %v3308
      %v3310 = vpop.f32.mrb[0].mxu0
      %3311 = vmatprep.mubr.bf16.mxu0 0
      %3312 = vmatmul.mubr.bf16.gmra.mrb[0].mxu0 %v3170
      %v3313 = vpop.f32.mrb[0].mxu0
      %v3314 = vadd.f32 0.0, %v3313
      %v3315 = vpop.f32.mrb[0].mxu0
      %v3316 = vpop.f32.mrb[0].mxu0
      %v3317 = vadd.f32 0.0, %v3316
      %v3318 = vpop.f32.mrb[0].mxu0
      %3319 = vmatprep.mubr.bf16.mxu0 0
      %3320 = vmatmul.mubr.bf16.gmra.mrb[0].mxu0 %v3171
      %v3321 = vpop.f32.mrb[0].mxu0
      %v3322 = vadd.f32 0.0, %v3321
      %v3323 = vpop.f32.mrb[0].mxu0
      %v3324 = vpop.f32.mrb[0].mxu0
      %v3325 = vadd.f32 0.0, %v3324
      %v3326 = vpop.f32.mrb[0].mxu0
      %3327 = vmatprep.mubr.bf16.mxu0 0
      %3328 = vmatmul.mubr.bf16.gmra.mrb[0].mxu0 %v3172
      %v3329 = vpop.f32.mrb[0].mxu0
      %v3330 = vadd.f32 0.0, %v3329
      %v3331 = vpop.f32.mrb[0].mxu0
      %v3332 = vpop.f32.mrb[0].mxu0
      %v3333 = vadd.f32 0.0, %v3332
      %v3334 = vpop.f32.mrb[0].mxu0
      %3335 = vmatprep.mubr.bf16.mxu0 0
      %3336 = vmatmul.mubr.bf16.gmra.mrb[0].mxu0 %v3173
      %v3337 = vpop.f32.mrb[0].mxu0
      %v3338 = vadd.f32 0.0, %v3337
      %v3339 = vpop.f32.mrb[0].mxu0
      %v3340 = vpop.f32.mrb[0].mxu0
      %v3341 = vadd.f32 0.0, %v3340
      %v3342 = vpop.f32.mrb[0].mxu0
      %3343 = vmatprep.mubr.bf16.mxu0 0
      %3344 = vmatmul.mubr.bf16.gmra.mrb[0].mxu0 %v3174
      %v3345 = vpop.f32.mrb[0].mxu0
      %v3346 = vadd.f32 0.0, %v3345
      %v3347 = vpop.f32.mrb[0].mxu0
      %v3348 = vpop.f32.mrb[0].mxu0
      %v3349 = vadd.f32 0.0, %v3348
      %v3350 = vpop.f32.mrb[0].mxu0
      %3351 = vmatprep.mubr.bf16.mxu0 0
      %3352 = vmatmul.mubr.bf16.gmra.mrb[0].mxu0 %v3175
      %v3353 = vpop.f32.mrb[0].mxu0
      %v3354 = vadd.f32 0.0, %v3353
      %v3355 = vpop.f32.mrb[0].mxu0
      %v3356 = vpop.f32.mrb[0].mxu0
      %v3357 = vadd.f32 0.0, %v3356
      %v3358 = vpop.f32.mrb[0].mxu0
      %3359 = vmatprep.mubr.bf16.mxu0 0
      %3360 = vmatmul.mubr.bf16.gmra.mrb[0].mxu0 %v3176
      %v3361 = vpop.f32.mrb[0].mxu0
      %v3362 = vadd.f32 0.0, %v3361
      %v3363 = vpop.f32.mrb[0].mxu0
      %v3364 = vpop.f32.mrb[0].mxu0
      %v3365 = vadd.f32 0.0, %v3364
      %v3366 = vpop.f32.mrb[0].mxu0
      %3367 = vmatprep.mubr.bf16.mxu0 0
      %3368 = vmatmul.mubr.bf16.gmra.mrb[0].mxu0 %v3177
      %v3369 = vpop.f32.mrb[0].mxu0
      %v3370 = vadd.f32 0.0, %v3369
      %v3371 = vpop.f32.mrb[0].mxu0
      %v3372 = vpop.f32.mrb[0].mxu0
      %v3373 = vadd.f32 0.0, %v3372
      %v3374 = vpop.f32.mrb[0].mxu0
      %3375 = vmatprep.mubr.bf16.mxu0 0
      %3376 = vmatmul.mubr.bf16.gmra.mrb[0].mxu0 %v3178
      %v3377 = vpop.f32.mrb[0].mxu0
      %v3378 = vadd.f32 0.0, %v3377
      %v3379 = vpop.f32.mrb[0].mxu0
      %v3380 = vpop.f32.mrb[0].mxu0
      %v3381 = vadd.f32 0.0, %v3380
      %v3382 = vpop.f32.mrb[0].mxu0
      %3383 = vmatprep.mubr.bf16.mxu0 0
      %3384 = vmatmul.mubr.bf16.gmra.mrb[0].mxu0 %v3179
      %v3385 = vpop.f32.mrb[0].mxu0
      %v3386 = vadd.f32 0.0, %v3385
      %v3387 = vpop.f32.mrb[0].mxu0
      %v3388 = vpop.f32.mrb[0].mxu0
      %v3389 = vadd.f32 0.0, %v3388
      %v3390 = vpop.f32.mrb[0].mxu0
      %3391 = vmatprep.mubr.bf16.mxu0 0
      %3392 = vmatmul.mubr.bf16.gmra.mrb[0].mxu0 %v3180
      %v3393 = vpop.f32.mrb[0].mxu0
      %v3394 = vadd.f32 0.0, %v3393
      %v3395 = vpop.f32.mrb[0].mxu0
      %v3396 = vpop.f32.mrb[0].mxu0
      %v3397 = vadd.f32 0.0, %v3396
      %v3398 = vpop.f32.mrb[0].mxu0
      %3399 = vmatprep.mubr.bf16.mxu0 0
      %3400 = vmatmul.mubr.bf16.gmra.mrb[0].mxu0 %v3181
      %v3401 = vpop.f32.mrb[0].mxu0
      %v3402 = vadd.f32 0.0, %v3401
      %v3403 = vpop.f32.mrb[0].mxu0
      %v3404 = vpop.f32.mrb[0].mxu0
      %v3405 = vadd.f32 0.0, %v3404
      %v3406 = vpop.f32.mrb[0].mxu0
      %3407 = vdwg.mxu0
      %v3424 = vunpack.c.l.b16 %v3151
      %v3425 = vunpack.c.l.b16 %v3152
      %v3426 = vunpack.c.l.b16 %v3153
      %v3427 = vunpack.c.l.b16 %v3154
      %v3428 = vunpack.c.l.b16 %v3155
      %v3429 = vunpack.c.l.b16 %v3156
      %v3430 = vunpack.c.l.b16 %v3157
      %v3431 = vunpack.c.l.b16 %v3158
      %v3432 = vunpack.c.l.b16 %v3159
      %v3433 = vunpack.c.l.b16 %v3160
      %v3434 = vunpack.c.l.b16 %v3161
      %v3435 = vunpack.c.l.b16 %v3162
      %v3436 = vunpack.c.l.b16 %v3163
      %v3437 = vunpack.c.l.b16 %v3164
      %v3438 = vunpack.c.l.b16 %v3165
      %v3439 = vunpack.c.l.b16 %v3166
      %v3440 = vpack.c.b16 %v3425, %v3424
      %v3441 = vpack.c.b16 %v3427, %v3426
      %v3442 = vpack.c.b16 %v3429, %v3428
      %v3443 = vpack.c.b16 %v3431, %v3430
      %v3444 = vpack.c.b16 %v3433, %v3432
      %v3445 = vpack.c.b16 %v3435, %v3434
      %v3446 = vpack.c.b16 %v3437, %v3436
      %v3447 = vpack.c.b16 %v3439, %v3438
      %3456 = vmatprep.subr.bf16.mxu0 0
      %3457 = vmatpush1.bf16.msra.mxu0 %v3440
      %3458 = vmatprep.subr.bf16.mxu0 0
      %3459 = vmatpush1.bf16.msra.mxu0 %v3441
      %3460 = vmatprep.subr.bf16.mxu0 0
      %3461 = vmatpush1.bf16.msra.mxu0 %v3442
      %3462 = vmatprep.subr.bf16.mxu0 0
      %3463 = vmatpush1.bf16.msra.mxu0 %v3443
      %3464 = vmatprep.subr.bf16.mxu0 0
      %3465 = vmatpush1.bf16.msra.mxu0 %v3444
      %3466 = vmatprep.subr.bf16.mxu0 0
      %3467 = vmatpush1.bf16.msra.mxu0 %v3445
      %3468 = vmatprep.subr.bf16.mxu0 0
      %3469 = vmatpush1.bf16.msra.mxu0 %v3446
      %3470 = vmatprep.subr.bf16.mxu0 0
      %3471 = vmatpush1.bf16.msra.mxu0 %v3447
      %3472 = vmatprep.subr.bf16.mxu0 0
      %3473 = vmatpush1.bf16.msra.mxu0 0
      %3474 = vmatprep.subr.bf16.mxu0 0
      %3475 = vmatpush1.bf16.msra.mxu0 0
      %3476 = vmatprep.subr.bf16.mxu0 0
      %3477 = vmatpush1.bf16.msra.mxu0 0
      %3478 = vmatprep.subr.bf16.mxu0 0
      %3479 = vmatpush1.bf16.msra.mxu0 0
      %3480 = vmatprep.subr.bf16.mxu0 0
      %3481 = vmatpush1.bf16.msra.mxu0 0
      %3482 = vmatprep.subr.bf16.mxu0 0
      %3483 = vmatpush1.bf16.msra.mxu0 0
      %3484 = vmatprep.subr.bf16.mxu0 0
      %3485 = vmatpush1.bf16.msra.mxu0 0
      %3486 = vmatprep.subr.bf16.mxu0 0
      %3487 = vmatpush1.bf16.msra.mxu0 0
      %3488 = vmatprep.mubr.bf16.mxu0 0
      %3489 = vmatmul.mubr.bf16.gmra.mrb[0].mxu0 %v3135
      %v3490 = vpop.f32.mrb[0].mxu0
      %v3491 = vadd.f32 %v3282, %v3490
      %v3492 = vpop.f32.mrb[0].mxu0
      %v3493 = vpop.f32.mrb[0].mxu0
      %v3494 = vadd.f32 %v3285, %v3493
      %v3495 = vpop.f32.mrb[0].mxu0
      %3496 = vmatprep.mubr.bf16.mxu0 0
      %3497 = vmatmul.mubr.bf16.gmra.mrb[0].mxu0 %v3136
      %v3498 = vpop.f32.mrb[0].mxu0
      %v3499 = vadd.f32 %v3290, %v3498
      %v3500 = vpop.f32.mrb[0].mxu0
      %v3501 = vpop.f32.mrb[0].mxu0
      %v3502 = vadd.f32 %v3293, %v3501
      %v3503 = vpop.f32.mrb[0].mxu0
      %3504 = vmatprep.mubr.bf16.mxu0 0
      %3505 = vmatmul.mubr.bf16.gmra.mrb[0].mxu0 %v3137
      %v3506 = vpop.f32.mrb[0].mxu0
      %v3507 = vadd.f32 %v3298, %v3506
      %v3508 = vpop.f32.mrb[0].mxu0
      %v3509 = vpop.f32.mrb[0].mxu0
      %v3510 = vadd.f32 %v3301, %v3509
      %v3511 = vpop.f32.mrb[0].mxu0
      %3512 = vmatprep.mubr.bf16.mxu0 0
      %3513 = vmatmul.mubr.bf16.gmra.mrb[0].mxu0 %v3138
      %v3514 = vpop.f32.mrb[0].mxu0
      %v3515 = vadd.f32 %v3306, %v3514
      %v3516 = vpop.f32.mrb[0].mxu0
      %v3517 = vpop.f32.mrb[0].mxu0
      %v3518 = vadd.f32 %v3309, %v3517
      %v3519 = vpop.f32.mrb[0].mxu0
      %3520 = vmatprep.mubr.bf16.mxu0 0
      %3521 = vmatmul.mubr.bf16.gmra.mrb[0].mxu0 %v3139
      %v3522 = vpop.f32.mrb[0].mxu0
      %v3523 = vadd.f32 %v3314, %v3522
      %v3524 = vpop.f32.mrb[0].mxu0
      %v3525 = vpop.f32.mrb[0].mxu0
      %v3526 = vadd.f32 %v3317, %v3525
      %v3527 = vpop.f32.mrb[0].mxu0
      %3528 = vmatprep.mubr.bf16.mxu0 0
      %3529 = vmatmul.mubr.bf16.gmra.mrb[0].mxu0 %v3140
      %v3530 = vpop.f32.mrb[0].mxu0
      %v3531 = vadd.f32 %v3322, %v3530
      %v3532 = vpop.f32.mrb[0].mxu0
      %v3533 = vpop.f32.mrb[0].mxu0
      %v3534 = vadd.f32 %v3325, %v3533
      %v3535 = vpop.f32.mrb[0].mxu0
      %3536 = vmatprep.mubr.bf16.mxu0 0
      %3537 = vmatmul.mubr.bf16.gmra.mrb[0].mxu0 %v3141
      %v3538 = vpop.f32.mrb[0].mxu0
      %v3539 = vadd.f32 %v3330, %v3538
      %v3540 = vpop.f32.mrb[0].mxu0
      %v3541 = vpop.f32.mrb[0].mxu0
      %v3542 = vadd.f32 %v3333, %v3541
      %v3543 = vpop.f32.mrb[0].mxu0
      %3544 = vmatprep.mubr.bf16.mxu0 0
      %3545 = vmatmul.mubr.bf16.gmra.mrb[0].mxu0 %v3142
      %v3546 = vpop.f32.mrb[0].mxu0
      %v3547 = vadd.f32 %v3338, %v3546
      %v3548 = vpop.f32.mrb[0].mxu0
      %v3549 = vpop.f32.mrb[0].mxu0
      %v3550 = vadd.f32 %v3341, %v3549
      %v3551 = vpop.f32.mrb[0].mxu0
      %3552 = vmatprep.mubr.bf16.mxu0 0
      %3553 = vmatmul.mubr.bf16.gmra.mrb[0].mxu0 %v3143
      %v3554 = vpop.f32.mrb[0].mxu0
      %v3555 = vadd.f32 %v3346, %v3554
      %v3556 = vpop.f32.mrb[0].mxu0
      %v3557 = vpop.f32.mrb[0].mxu0
      %v3558 = vadd.f32 %v3349, %v3557
      %v3559 = vpop.f32.mrb[0].mxu0
      %3560 = vmatprep.mubr.bf16.mxu0 0
      %3561 = vmatmul.mubr.bf16.gmra.mrb[0].mxu0 %v3144
      %v3562 = vpop.f32.mrb[0].mxu0
      %v3563 = vadd.f32 %v3354, %v3562
      %v3564 = vpop.f32.mrb[0].mxu0
      %v3565 = vpop.f32.mrb[0].mxu0
      %v3566 = vadd.f32 %v3357, %v3565
      %v3567 = vpop.f32.mrb[0].mxu0
      %3568 = vmatprep.mubr.bf16.mxu0 0
      %3569 = vmatmul.mubr.bf16.gmra.mrb[0].mxu0 %v3145
      %v3570 = vpop.f32.mrb[0].mxu0
      %v3571 = vadd.f32 %v3362, %v3570
      %v3572 = vpop.f32.mrb[0].mxu0
      %v3573 = vpop.f32.mrb[0].mxu0
      %v3574 = vadd.f32 %v3365, %v3573
      %v3575 = vpop.f32.mrb[0].mxu0
      %3576 = vmatprep.mubr.bf16.mxu0 0
      %3577 = vmatmul.mubr.bf16.gmra.mrb[0].mxu0 %v3146
      %v3578 = vpop.f32.mrb[0].mxu0
      %v3579 = vadd.f32 %v3370, %v3578
      %v3580 = vpop.f32.mrb[0].mxu0
      %v3581 = vpop.f32.mrb[0].mxu0
      %v3582 = vadd.f32 %v3373, %v3581
      %v3583 = vpop.f32.mrb[0].mxu0
      %3584 = vmatprep.mubr.bf16.mxu0 0
      %3585 = vmatmul.mubr.bf16.gmra.mrb[0].mxu0 %v3147
      %v3586 = vpop.f32.mrb[0].mxu0
      %v3587 = vadd.f32 %v3378, %v3586
      %v3588 = vpop.f32.mrb[0].mxu0
      %v3589 = vpop.f32.mrb[0].mxu0
      %v3590 = vadd.f32 %v3381, %v3589
      %v3591 = vpop.f32.mrb[0].mxu0
      %3592 = vmatprep.mubr.bf16.mxu0 0
      %3593 = vmatmul.mubr.bf16.gmra.mrb[0].mxu0 %v3148
      %v3594 = vpop.f32.mrb[0].mxu0
      %v3595 = vadd.f32 %v3386, %v3594
      %v3596 = vpop.f32.mrb[0].mxu0
      %v3597 = vpop.f32.mrb[0].mxu0
      %v3598 = vadd.f32 %v3389, %v3597
      %v3599 = vpop.f32.mrb[0].mxu0
      %3600 = vmatprep.mubr.bf16.mxu0 0
      %3601 = vmatmul.mubr.bf16.gmra.mrb[0].mxu0 %v3149
      %v3602 = vpop.f32.mrb[0].mxu0
      %v3603 = vadd.f32 %v3394, %v3602
      %v3604 = vpop.f32.mrb[0].mxu0
      %v3605 = vpop.f32.mrb[0].mxu0
      %v3606 = vadd.f32 %v3397, %v3605
      %v3607 = vpop.f32.mrb[0].mxu0
      %3608 = vmatprep.mubr.bf16.mxu0 0
      %3609 = vmatmul.mubr.bf16.gmra.mrb[0].mxu0 %v3150
      %v3610 = vpop.f32.mrb[0].mxu0
      %v3611 = vadd.f32 %v3402, %v3610
      %v3612 = vpop.f32.mrb[0].mxu0
      %v3613 = vpop.f32.mrb[0].mxu0
      %v3614 = vadd.f32 %v3405, %v3613
      %v3615 = vpop.f32.mrb[0].mxu0
      %3616 = vdwg.mxu0
      %v3617 = vpack.c.bf16 %v3104, %v3103
      %v3618 = vpack.c.bf16 %v3106, %v3105
      %v3619 = vpack.c.bf16 %v3108, %v3107
      %v3620 = vpack.c.bf16 %v3110, %v3109
      %v3621 = vpack.c.bf16 %v3112, %v3111
      %v3622 = vpack.c.bf16 %v3114, %v3113
      %v3623 = vpack.c.bf16 %v3116, %v3115
      %v3624 = vpack.c.bf16 %v3118, %v3117
      %v3625 = vpack.c.bf16 %v3120, %v3119
      %v3626 = vpack.c.bf16 %v3122, %v3121
      %v3627 = vpack.c.bf16 %v3124, %v3123
      %v3628 = vpack.c.bf16 %v3126, %v3125
      %v3629 = vpack.c.bf16 %v3128, %v3127
      %v3630 = vpack.c.bf16 %v3130, %v3129
      %v3631 = vpack.c.bf16 %v3132, %v3131
      %v3632 = vpack.c.bf16 %v3134, %v3133
      %s3633 = scalar_lea.vmem %s2, 128
      %v3634 = vld [vmem:[%s3633] sm:$0xf]
      %v3635 = vld [vmem:[%s3633 + $0x4] sm:$0xf]
      %v3636 = vld [vmem:[%s3633 + $0x8] sm:$0xf]
      %v3637 = vld [vmem:[%s3633 + $0xc] sm:$0xf]
      %v3638 = vld [vmem:[%s3633 + $0x10] sm:$0xf]
      %v3639 = vld [vmem:[%s3633 + $0x14] sm:$0xf]
      %v3640 = vld [vmem:[%s3633 + $0x18] sm:$0xf]
      %v3641 = vld [vmem:[%s3633 + $0x1c] sm:$0xf]
      %v3642 = vld [vmem:[%s3633 + $0x20] sm:$0xf]
      %v3643 = vld [vmem:[%s3633 + $0x24] sm:$0xf]
      %v3644 = vld [vmem:[%s3633 + $0x28] sm:$0xf]
      %v3645 = vld [vmem:[%s3633 + $0x2c] sm:$0xf]
      %v3646 = vld [vmem:[%s3633 + $0x30] sm:$0xf]
      %v3647 = vld [vmem:[%s3633 + $0x34] sm:$0xf]
      %v3648 = vld [vmem:[%s3633 + $0x38] sm:$0xf]
      %v3649 = vld [vmem:[%s3633 + $0x3c] sm:$0xf]
      %v3666 = vunpack.c.l.b16 %v3634
      %v3667 = vunpack.c.l.b16 %v3635
      %v3668 = vunpack.c.l.b16 %v3636
      %v3669 = vunpack.c.l.b16 %v3637
      %v3670 = vunpack.c.l.b16 %v3638
      %v3671 = vunpack.c.l.b16 %v3639
      %v3672 = vunpack.c.l.b16 %v3640
      %v3673 = vunpack.c.l.b16 %v3641
      %v3674 = vunpack.c.l.b16 %v3642
      %v3675 = vunpack.c.l.b16 %v3643
      %v3676 = vunpack.c.l.b16 %v3644
      %v3677 = vunpack.c.l.b16 %v3645
      %v3678 = vunpack.c.l.b16 %v3646
      %v3679 = vunpack.c.l.b16 %v3647
      %v3680 = vunpack.c.l.b16 %v3648
      %v3681 = vunpack.c.l.b16 %v3649
      %v3682 = vpack.c.b16 %v3667, %v3666
      %v3683 = vpack.c.b16 %v3669, %v3668
      %v3684 = vpack.c.b16 %v3671, %v3670
      %v3685 = vpack.c.b16 %v3673, %v3672
      %v3686 = vpack.c.b16 %v3675, %v3674
      %v3687 = vpack.c.b16 %v3677, %v3676
      %v3688 = vpack.c.b16 %v3679, %v3678
      %v3689 = vpack.c.b16 %v3681, %v3680
      %3698 = vmatprep.subr.bf16.mxu0 0
      %3699 = vmatpush1.bf16.msra.mxu0 %v3682
      %3700 = vmatprep.subr.bf16.mxu0 0
      %3701 = vmatpush1.bf16.msra.mxu0 %v3683
      %3702 = vmatprep.subr.bf16.mxu0 0
      %3703 = vmatpush1.bf16.msra.mxu0 %v3684
      %3704 = vmatprep.subr.bf16.mxu0 0
      %3705 = vmatpush1.bf16.msra.mxu0 %v3685
      %3706 = vmatprep.subr.bf16.mxu0 0
      %3707 = vmatpush1.bf16.msra.mxu0 %v3686
      %3708 = vmatprep.subr.bf16.mxu0 0
      %3709 = vmatpush1.bf16.msra.mxu0 %v3687
      %3710 = vmatprep.subr.bf16.mxu0 0
      %3711 = vmatpush1.bf16.msra.mxu0 %v3688
      %3712 = vmatprep.subr.bf16.mxu0 0
      %3713 = vmatpush1.bf16.msra.mxu0 %v3689
      %3714 = vmatprep.subr.bf16.mxu0 0
      %3715 = vmatpush1.bf16.msra.mxu0 0
      %3716 = vmatprep.subr.bf16.mxu0 0
      %3717 = vmatpush1.bf16.msra.mxu0 0
      %3718 = vmatprep.subr.bf16.mxu0 0
      %3719 = vmatpush1.bf16.msra.mxu0 0
      %3720 = vmatprep.subr.bf16.mxu0 0
      %3721 = vmatpush1.bf16.msra.mxu0 0
      %3722 = vmatprep.subr.bf16.mxu0 0
      %3723 = vmatpush1.bf16.msra.mxu0 0
      %3724 = vmatprep.subr.bf16.mxu0 0
      %3725 = vmatpush1.bf16.msra.mxu0 0
      %3726 = vmatprep.subr.bf16.mxu0 0
      %3727 = vmatpush1.bf16.msra.mxu0 0
      %3728 = vmatprep.subr.bf16.mxu0 0
      %3729 = vmatpush1.bf16.msra.mxu0 0
      %3730 = vmatprep.mubr.bf16.mxu0 0
      %3731 = vmatmul.mubr.bf16.gmra.mrb[0].mxu0 %v3617
      %v3732 = vpop.f32.mrb[0].mxu0
      %v3733 = vadd.f32 0.0, %v3732
      %v3734 = vpop.f32.mrb[0].mxu0
      %v3735 = vpop.f32.mrb[0].mxu0
      %v3736 = vadd.f32 0.0, %v3735
      %v3737 = vpop.f32.mrb[0].mxu0
      %3738 = vmatprep.mubr.bf16.mxu0 0
      %3739 = vmatmul.mubr.bf16.gmra.mrb[0].mxu0 %v3618
      %v3740 = vpop.f32.mrb[0].mxu0
      %v3741 = vadd.f32 0.0, %v3740
      %v3742 = vpop.f32.mrb[0].mxu0
      %v3743 = vpop.f32.mrb[0].mxu0
      %v3744 = vadd.f32 0.0, %v3743
      %v3745 = vpop.f32.mrb[0].mxu0
      %3746 = vmatprep.mubr.bf16.mxu0 0
      %3747 = vmatmul.mubr.bf16.gmra.mrb[0].mxu0 %v3619
      %v3748 = vpop.f32.mrb[0].mxu0
      %v3749 = vadd.f32 0.0, %v3748
      %v3750 = vpop.f32.mrb[0].mxu0
      %v3751 = vpop.f32.mrb[0].mxu0
      %v3752 = vadd.f32 0.0, %v3751
      %v3753 = vpop.f32.mrb[0].mxu0
      %3754 = vmatprep.mubr.bf16.mxu0 0
      %3755 = vmatmul.mubr.bf16.gmra.mrb[0].mxu0 %v3620
      %v3756 = vpop.f32.mrb[0].mxu0
      %v3757 = vadd.f32 0.0, %v3756
      %v3758 = vpop.f32.mrb[0].mxu0
      %v3759 = vpop.f32.mrb[0].mxu0
      %v3760 = vadd.f32 0.0, %v3759
      %v3761 = vpop.f32.mrb[0].mxu0
      %3762 = vmatprep.mubr.bf16.mxu0 0
      %3763 = vmatmul.mubr.bf16.gmra.mrb[0].mxu0 %v3621
      %v3764 = vpop.f32.mrb[0].mxu0
      %v3765 = vadd.f32 0.0, %v3764
      %v3766 = vpop.f32.mrb[0].mxu0
      %v3767 = vpop.f32.mrb[0].mxu0
      %v3768 = vadd.f32 0.0, %v3767
      %v3769 = vpop.f32.mrb[0].mxu0
      %3770 = vmatprep.mubr.bf16.mxu0 0
      %3771 = vmatmul.mubr.bf16.gmra.mrb[0].mxu0 %v3622
      %v3772 = vpop.f32.mrb[0].mxu0
      %v3773 = vadd.f32 0.0, %v3772
      %v3774 = vpop.f32.mrb[0].mxu0
      %v3775 = vpop.f32.mrb[0].mxu0
      %v3776 = vadd.f32 0.0, %v3775
      %v3777 = vpop.f32.mrb[0].mxu0
      %3778 = vmatprep.mubr.bf16.mxu0 0
      %3779 = vmatmul.mubr.bf16.gmra.mrb[0].mxu0 %v3623
      %v3780 = vpop.f32.mrb[0].mxu0
      %v3781 = vadd.f32 0.0, %v3780
      %v3782 = vpop.f32.mrb[0].mxu0
      %v3783 = vpop.f32.mrb[0].mxu0
      %v3784 = vadd.f32 0.0, %v3783
      %v3785 = vpop.f32.mrb[0].mxu0
      %3786 = vmatprep.mubr.bf16.mxu0 0
      %3787 = vmatmul.mubr.bf16.gmra.mrb[0].mxu0 %v3624
      %v3788 = vpop.f32.mrb[0].mxu0
      %v3789 = vadd.f32 0.0, %v3788
      %v3790 = vpop.f32.mrb[0].mxu0
      %v3791 = vpop.f32.mrb[0].mxu0
      %v3792 = vadd.f32 0.0, %v3791
      %v3793 = vpop.f32.mrb[0].mxu0
      %3794 = vmatprep.mubr.bf16.mxu0 0
      %3795 = vmatmul.mubr.bf16.gmra.mrb[0].mxu0 %v3625
      %v3796 = vpop.f32.mrb[0].mxu0
      %v3797 = vadd.f32 0.0, %v3796
      %v3798 = vpop.f32.mrb[0].mxu0
      %v3799 = vpop.f32.mrb[0].mxu0
      %v3800 = vadd.f32 0.0, %v3799
      %v3801 = vpop.f32.mrb[0].mxu0
      %3802 = vmatprep.mubr.bf16.mxu0 0
      %3803 = vmatmul.mubr.bf16.gmra.mrb[0].mxu0 %v3626
      %v3804 = vpop.f32.mrb[0].mxu0
      %v3805 = vadd.f32 0.0, %v3804
      %v3806 = vpop.f32.mrb[0].mxu0
      %v3807 = vpop.f32.mrb[0].mxu0
      %v3808 = vadd.f32 0.0, %v3807
      %v3809 = vpop.f32.mrb[0].mxu0
      %3810 = vmatprep.mubr.bf16.mxu0 0
      %3811 = vmatmul.mubr.bf16.gmra.mrb[0].mxu0 %v3627
      %v3812 = vpop.f32.mrb[0].mxu0
      %v3813 = vadd.f32 0.0, %v3812
      %v3814 = vpop.f32.mrb[0].mxu0
      %v3815 = vpop.f32.mrb[0].mxu0
      %v3816 = vadd.f32 0.0, %v3815
      %v3817 = vpop.f32.mrb[0].mxu0
      %3818 = vmatprep.mubr.bf16.mxu0 0
      %3819 = vmatmul.mubr.bf16.gmra.mrb[0].mxu0 %v3628
      %v3820 = vpop.f32.mrb[0].mxu0
      %v3821 = vadd.f32 0.0, %v3820
      %v3822 = vpop.f32.mrb[0].mxu0
      %v3823 = vpop.f32.mrb[0].mxu0
      %v3824 = vadd.f32 0.0, %v3823
      %v3825 = vpop.f32.mrb[0].mxu0
      %3826 = vmatprep.mubr.bf16.mxu0 0
      %3827 = vmatmul.mubr.bf16.gmra.mrb[0].mxu0 %v3629
      %v3828 = vpop.f32.mrb[0].mxu0
      %v3829 = vadd.f32 0.0, %v3828
      %v3830 = vpop.f32.mrb[0].mxu0
      %v3831 = vpop.f32.mrb[0].mxu0
      %v3832 = vadd.f32 0.0, %v3831
      %v3833 = vpop.f32.mrb[0].mxu0
      %3834 = vmatprep.mubr.bf16.mxu0 0
      %3835 = vmatmul.mubr.bf16.gmra.mrb[0].mxu0 %v3630
      %v3836 = vpop.f32.mrb[0].mxu0
      %v3837 = vadd.f32 0.0, %v3836
      %v3838 = vpop.f32.mrb[0].mxu0
      %v3839 = vpop.f32.mrb[0].mxu0
      %v3840 = vadd.f32 0.0, %v3839
      %v3841 = vpop.f32.mrb[0].mxu0
      %3842 = vmatprep.mubr.bf16.mxu0 0
      %3843 = vmatmul.mubr.bf16.gmra.mrb[0].mxu0 %v3631
      %v3844 = vpop.f32.mrb[0].mxu0
      %v3845 = vadd.f32 0.0, %v3844
      %v3846 = vpop.f32.mrb[0].mxu0
      %v3847 = vpop.f32.mrb[0].mxu0
      %v3848 = vadd.f32 0.0, %v3847
      %v3849 = vpop.f32.mrb[0].mxu0
      %3850 = vmatprep.mubr.bf16.mxu0 0
      %3851 = vmatmul.mubr.bf16.gmra.mrb[0].mxu0 %v3632
      %v3852 = vpop.f32.mrb[0].mxu0
      %v3853 = vadd.f32 0.0, %v3852
      %v3854 = vpop.f32.mrb[0].mxu0
      %v3855 = vpop.f32.mrb[0].mxu0
      %v3856 = vadd.f32 0.0, %v3855
      %v3857 = vpop.f32.mrb[0].mxu0
      %3858 = vdwg.mxu0
      %v3859 = vadd.f32 %v3491, %v3733
      %v3860 = vadd.f32 %v3494, %v3736
      %v3861 = vadd.f32 %v3499, %v3741
      %v3862 = vadd.f32 %v3502, %v3744
      %v3863 = vadd.f32 %v3507, %v3749
      %v3864 = vadd.f32 %v3510, %v3752
      %v3865 = vadd.f32 %v3515, %v3757
      %v3866 = vadd.f32 %v3518, %v3760
      %v3867 = vadd.f32 %v3523, %v3765
      %v3868 = vadd.f32 %v3526, %v3768
      %v3869 = vadd.f32 %v3531, %v3773
      %v3870 = vadd.f32 %v3534, %v3776
      %v3871 = vadd.f32 %v3539, %v3781
      %v3872 = vadd.f32 %v3542, %v3784
      %v3873 = vadd.f32 %v3547, %v3789
      %v3874 = vadd.f32 %v3550, %v3792
      %v3875 = vadd.f32 %v3555, %v3797
      %v3876 = vadd.f32 %v3558, %v3800
      %v3877 = vadd.f32 %v3563, %v3805
      %v3878 = vadd.f32 %v3566, %v3808
      %v3879 = vadd.f32 %v3571, %v3813
      %v3880 = vadd.f32 %v3574, %v3816
      %v3881 = vadd.f32 %v3579, %v3821
      %v3882 = vadd.f32 %v3582, %v3824
      %v3883 = vadd.f32 %v3587, %v3829
      %v3884 = vadd.f32 %v3590, %v3832
      %v3885 = vadd.f32 %v3595, %v3837
      %v3886 = vadd.f32 %v3598, %v3840
      %v3887 = vadd.f32 %v3603, %v3845
      %v3888 = vadd.f32 %v3606, %v3848
      %v3889 = vadd.f32 %v3611, %v3853
      %v3890 = vadd.f32 %v3614, %v3856
      %v3891 = vrot.slane %v2947, 7
      %v3892 = vrot.slane %v2948, 7
      %v3893 = vsel %vm241, %v3891, %v3892
      %v3894 = vsel %vm241, %v2978, %v3891
      %v3895 = vsel %vm241, %v3892, %v2951
      %v3896 = vrot.slane %v2947, 1
      %v3897 = vrot.slane %v2948, 1
      %v3898 = vsel %vm303, %v3896, %v3897
      %v3899 = vsel %vm303, %v3039, %v3896
      %v3900 = vsel %vm303, %v3897, %v3012
      %v3901 = vsel %vm207, %v3068, %v3895
      %v3902 = vsel %vm208, %v3899, %v2979
      %v3903 = vsel %vm207, %v3898, %v3894
      %v3904 = vsel %vm208, %v3900, %v3893
      %v3905 = vsel %vm209, %v3895, %v3068
      %v3906 = vsel %vm210, %v2979, %v3899
      %v3907 = vsel %vm209, %v3894, %v3898
      %v3908 = vsel %vm210, %v3893, %v3900
      %v3909 = vpack.c.bf16 %v3074, %v3901
      %v3910 = vpack.c.bf16 %v3902, %v3101
      %v3911 = vpack.c.bf16 %v3904, %v3903
      %s3912 = scalar_lea.vmem %s2, 192
      %v3913 = vld [vmem:[%s3912] sm:$0xf]
      %v3914 = vld [vmem:[%s3912 + $0x4] sm:$0xf]
      %v3915 = vld [vmem:[%s3912 + $0x8] sm:$0xf]
      %v3916 = vld [vmem:[%s3912 + $0xc] sm:$0xf]
      %v3917 = vld [vmem:[%s3912 + $0x10] sm:$0xf]
      %v3918 = vld [vmem:[%s3912 + $0x14] sm:$0xf]
      %v3919 = vld [vmem:[%s3912 + $0x18] sm:$0xf]
      %v3920 = vld [vmem:[%s3912 + $0x1c] sm:$0xf]
      %v3921 = vld [vmem:[%s3912 + $0x20] sm:$0xf]
      %v3922 = vld [vmem:[%s3912 + $0x24] sm:$0xf]
      %v3923 = vld [vmem:[%s3912 + $0x28] sm:$0xf]
      %v3924 = vld [vmem:[%s3912 + $0x2c] sm:$0xf]
      %v3925 = vld [vmem:[%s3912 + $0x30] sm:$0xf]
      %v3926 = vld [vmem:[%s3912 + $0x34] sm:$0xf]
      %v3927 = vld [vmem:[%s3912 + $0x38] sm:$0xf]
      %v3928 = vld [vmem:[%s3912 + $0x3c] sm:$0xf]
      %v3945 = vunpack.c.l.b16 %v3913
      %v3946 = vunpack.c.l.b16 %v3914
      %v3947 = vunpack.c.l.b16 %v3915
      %v3948 = vunpack.c.l.b16 %v3916
      %v3949 = vunpack.c.l.b16 %v3917
      %v3950 = vunpack.c.l.b16 %v3918
      %v3951 = vunpack.c.l.b16 %v3919
      %v3952 = vunpack.c.l.b16 %v3920
      %v3953 = vunpack.c.l.b16 %v3921
      %v3954 = vunpack.c.l.b16 %v3922
      %v3955 = vunpack.c.l.b16 %v3923
      %v3956 = vunpack.c.l.b16 %v3924
      %v3957 = vunpack.c.l.b16 %v3925
      %v3958 = vunpack.c.l.b16 %v3926
      %v3959 = vunpack.c.l.b16 %v3927
      %v3960 = vunpack.c.l.b16 %v3928
      %v3961 = vpack.c.b16 %v3946, %v3945
      %v3962 = vpack.c.b16 %v3948, %v3947
      %v3963 = vpack.c.b16 %v3950, %v3949
      %v3964 = vpack.c.b16 %v3952, %v3951
      %v3965 = vpack.c.b16 %v3954, %v3953
      %v3966 = vpack.c.b16 %v3956, %v3955
      %v3967 = vpack.c.b16 %v3958, %v3957
      %v3968 = vpack.c.b16 %v3960, %v3959
      %3977 = vmatprep.subr.bf16.mxu0 0
      %3978 = vmatpush1.bf16.msra.mxu0 %v3961
      %3979 = vmatprep.subr.bf16.mxu0 0
      %3980 = vmatpush1.bf16.msra.mxu0 %v3962
      %3981 = vmatprep.subr.bf16.mxu0 0
      %3982 = vmatpush1.bf16.msra.mxu0 %v3963
      %3983 = vmatprep.subr.bf16.mxu0 0
      %3984 = vmatpush1.bf16.msra.mxu0 %v3964
      %3985 = vmatprep.subr.bf16.mxu0 0
      %3986 = vmatpush1.bf16.msra.mxu0 %v3965
      %3987 = vmatprep.subr.bf16.mxu0 0
      %3988 = vmatpush1.bf16.msra.mxu0 %v3966
      %3989 = vmatprep.subr.bf16.mxu0 0
      %3990 = vmatpush1.bf16.msra.mxu0 %v3967
      %3991 = vmatprep.subr.bf16.mxu0 0
      %3992 = vmatpush1.bf16.msra.mxu0 %v3968
      %3993 = vmatprep.subr.bf16.mxu0 0
      %3994 = vmatpush1.bf16.msra.mxu0 0
      %3995 = vmatprep.subr.bf16.mxu0 0
      %3996 = vmatpush1.bf16.msra.mxu0 0
      %3997 = vmatprep.subr.bf16.mxu0 0
      %3998 = vmatpush1.bf16.msra.mxu0 0
      %3999 = vmatprep.subr.bf16.mxu0 0
      %4000 = vmatpush1.bf16.msra.mxu0 0
      %4001 = vmatprep.subr.bf16.mxu0 0
      %4002 = vmatpush1.bf16.msra.mxu0 0
      %4003 = vmatprep.subr.bf16.mxu0 0
      %4004 = vmatpush1.bf16.msra.mxu0 0
      %4005 = vmatprep.subr.bf16.mxu0 0
      %4006 = vmatpush1.bf16.msra.mxu0 0
      %4007 = vmatprep.subr.bf16.mxu0 0
      %4008 = vmatpush1.bf16.msra.mxu0 0
      %4009 = vmatprep.mubr.bf16.mxu0 0
      %4010 = vmatmul.mubr.bf16.gmra.mrb[0].mxu0 %v3909
      %v4011 = vpop.f32.mrb[0].mxu0
      %v4012 = vadd.f32 0.0, %v4011
      %v4013 = vpop.f32.mrb[0].mxu0
      %v4014 = vpop.f32.mrb[0].mxu0
      %v4015 = vadd.f32 0.0, %v4014
      %v4016 = vpop.f32.mrb[0].mxu0
      %4017 = vmatprep.mubr.bf16.mxu0 0
      %4018 = vmatmul.mubr.bf16.gmra.mrb[0].mxu0 %v3137
      %v4019 = vpop.f32.mrb[0].mxu0
      %v4020 = vadd.f32 0.0, %v4019
      %v4021 = vpop.f32.mrb[0].mxu0
      %v4022 = vpop.f32.mrb[0].mxu0
      %v4023 = vadd.f32 0.0, %v4022
      %v4024 = vpop.f32.mrb[0].mxu0
      %4025 = vmatprep.mubr.bf16.mxu0 0
      %4026 = vmatmul.mubr.bf16.gmra.mrb[0].mxu0 %v3138
      %v4027 = vpop.f32.mrb[0].mxu0
      %v4028 = vadd.f32 0.0, %v4027
      %v4029 = vpop.f32.mrb[0].mxu0
      %v4030 = vpop.f32.mrb[0].mxu0
      %v4031 = vadd.f32 0.0, %v4030
      %v4032 = vpop.f32.mrb[0].mxu0
      %4033 = vmatprep.mubr.bf16.mxu0 0
      %4034 = vmatmul.mubr.bf16.gmra.mrb[0].mxu0 %v3139
      %v4035 = vpop.f32.mrb[0].mxu0
      %v4036 = vadd.f32 0.0, %v4035
      %v4037 = vpop.f32.mrb[0].mxu0
      %v4038 = vpop.f32.mrb[0].mxu0
      %v4039 = vadd.f32 0.0, %v4038
      %v4040 = vpop.f32.mrb[0].mxu0
      %4041 = vmatprep.mubr.bf16.mxu0 0
      %4042 = vmatmul.mubr.bf16.gmra.mrb[0].mxu0 %v3140
      %v4043 = vpop.f32.mrb[0].mxu0
      %v4044 = vadd.f32 0.0, %v4043
      %v4045 = vpop.f32.mrb[0].mxu0
      %v4046 = vpop.f32.mrb[0].mxu0
      %v4047 = vadd.f32 0.0, %v4046
      %v4048 = vpop.f32.mrb[0].mxu0
      %4049 = vmatprep.mubr.bf16.mxu0 0
      %4050 = vmatmul.mubr.bf16.gmra.mrb[0].mxu0 %v3141
      %v4051 = vpop.f32.mrb[0].mxu0
      %v4052 = vadd.f32 0.0, %v4051
      %v4053 = vpop.f32.mrb[0].mxu0
      %v4054 = vpop.f32.mrb[0].mxu0
      %v4055 = vadd.f32 0.0, %v4054
      %v4056 = vpop.f32.mrb[0].mxu0
      %4057 = vmatprep.mubr.bf16.mxu0 0
      %4058 = vmatmul.mubr.bf16.gmra.mrb[0].mxu0 %v3142
      %v4059 = vpop.f32.mrb[0].mxu0
      %v4060 = vadd.f32 0.0, %v4059
      %v4061 = vpop.f32.mrb[0].mxu0
      %v4062 = vpop.f32.mrb[0].mxu0
      %v4063 = vadd.f32 0.0, %v4062
      %v4064 = vpop.f32.mrb[0].mxu0
      %4065 = vmatprep.mubr.bf16.mxu0 0
      %4066 = vmatmul.mubr.bf16.gmra.mrb[0].mxu0 %v3143
      %v4067 = vpop.f32.mrb[0].mxu0
      %v4068 = vadd.f32 0.0, %v4067
      %v4069 = vpop.f32.mrb[0].mxu0
      %v4070 = vpop.f32.mrb[0].mxu0
      %v4071 = vadd.f32 0.0, %v4070
      %v4072 = vpop.f32.mrb[0].mxu0
      %4073 = vmatprep.mubr.bf16.mxu0 0
      %4074 = vmatmul.mubr.bf16.gmra.mrb[0].mxu0 %v3144
      %v4075 = vpop.f32.mrb[0].mxu0
      %v4076 = vadd.f32 0.0, %v4075
      %v4077 = vpop.f32.mrb[0].mxu0
      %v4078 = vpop.f32.mrb[0].mxu0
      %v4079 = vadd.f32 0.0, %v4078
      %v4080 = vpop.f32.mrb[0].mxu0
      %4081 = vmatprep.mubr.bf16.mxu0 0
      %4082 = vmatmul.mubr.bf16.gmra.mrb[0].mxu0 %v3145
      %v4083 = vpop.f32.mrb[0].mxu0
      %v4084 = vadd.f32 0.0, %v4083
      %v4085 = vpop.f32.mrb[0].mxu0
      %v4086 = vpop.f32.mrb[0].mxu0
      %v4087 = vadd.f32 0.0, %v4086
      %v4088 = vpop.f32.mrb[0].mxu0
      %4089 = vmatprep.mubr.bf16.mxu0 0
      %4090 = vmatmul.mubr.bf16.gmra.mrb[0].mxu0 %v3146
      %v4091 = vpop.f32.mrb[0].mxu0
      %v4092 = vadd.f32 0.0, %v4091
      %v4093 = vpop.f32.mrb[0].mxu0
      %v4094 = vpop.f32.mrb[0].mxu0
      %v4095 = vadd.f32 0.0, %v4094
      %v4096 = vpop.f32.mrb[0].mxu0
      %4097 = vmatprep.mubr.bf16.mxu0 0
      %4098 = vmatmul.mubr.bf16.gmra.mrb[0].mxu0 %v3147
      %v4099 = vpop.f32.mrb[0].mxu0
      %v4100 = vadd.f32 0.0, %v4099
      %v4101 = vpop.f32.mrb[0].mxu0
      %v4102 = vpop.f32.mrb[0].mxu0
      %v4103 = vadd.f32 0.0, %v4102
      %v4104 = vpop.f32.mrb[0].mxu0
      %4105 = vmatprep.mubr.bf16.mxu0 0
      %4106 = vmatmul.mubr.bf16.gmra.mrb[0].mxu0 %v3148
      %v4107 = vpop.f32.mrb[0].mxu0
      %v4108 = vadd.f32 0.0, %v4107
      %v4109 = vpop.f32.mrb[0].mxu0
      %v4110 = vpop.f32.mrb[0].mxu0
      %v4111 = vadd.f32 0.0, %v4110
      %v4112 = vpop.f32.mrb[0].mxu0
      %4113 = vmatprep.mubr.bf16.mxu0 0
      %4114 = vmatmul.mubr.bf16.gmra.mrb[0].mxu0 %v3149
      %v4115 = vpop.f32.mrb[0].mxu0
      %v4116 = vadd.f32 0.0, %v4115
      %v4117 = vpop.f32.mrb[0].mxu0
      %v4118 = vpop.f32.mrb[0].mxu0
      %v4119 = vadd.f32 0.0, %v4118
      %v4120 = vpop.f32.mrb[0].mxu0
      %4121 = vmatprep.mubr.bf16.mxu0 0
      %4122 = vmatmul.mubr.bf16.gmra.mrb[0].mxu0 %v3910
      %v4123 = vpop.f32.mrb[0].mxu0
      %v4124 = vadd.f32 0.0, %v4123
      %v4125 = vpop.f32.mrb[0].mxu0
      %v4126 = vpop.f32.mrb[0].mxu0
      %v4127 = vadd.f32 0.0, %v4126
      %v4128 = vpop.f32.mrb[0].mxu0
      %4129 = vmatprep.mubr.bf16.mxu0 0
      %4130 = vmatmul.mubr.bf16.gmra.mrb[0].mxu0 %v3911
      %v4131 = vpop.f32.mrb[0].mxu0
      %v4132 = vadd.f32 0.0, %v4131
      %v4133 = vpop.f32.mrb[0].mxu0
      %v4134 = vpop.f32.mrb[0].mxu0
      %v4135 = vadd.f32 0.0, %v4134
      %v4136 = vpop.f32.mrb[0].mxu0
      %4137 = vdwg.mxu0
      %v4138 = vadd.f32 %v3859, %v4012
      %v4139 = vadd.f32 %v3860, %v4015
      %v4140 = vadd.f32 %v3861, %v4020
      %v4141 = vadd.f32 %v3862, %v4023
      %v4142 = vadd.f32 %v3863, %v4028
      %v4143 = vadd.f32 %v3864, %v4031
      %v4144 = vadd.f32 %v3865, %v4036
      %v4145 = vadd.f32 %v3866, %v4039
      %v4146 = vadd.f32 %v3867, %v4044
      %v4147 = vadd.f32 %v3868, %v4047
      %v4148 = vadd.f32 %v3869, %v4052
      %v4149 = vadd.f32 %v3870, %v4055
      %v4150 = vadd.f32 %v3871, %v4060
      %v4151 = vadd.f32 %v3872, %v4063
      %v4152 = vadd.f32 %v3873, %v4068
      %v4153 = vadd.f32 %v3874, %v4071
      %v4154 = vadd.f32 %v3875, %v4076
      %v4155 = vadd.f32 %v3876, %v4079
      %v4156 = vadd.f32 %v3877, %v4084
      %v4157 = vadd.f32 %v3878, %v4087
      %v4158 = vadd.f32 %v3879, %v4092
      %v4159 = vadd.f32 %v3880, %v4095
      %v4160 = vadd.f32 %v3881, %v4100
      %v4161 = vadd.f32 %v3882, %v4103
      %v4162 = vadd.f32 %v3883, %v4108
      %v4163 = vadd.f32 %v3884, %v4111
      %v4164 = vadd.f32 %v3885, %v4116
      %v4165 = vadd.f32 %v3886, %v4119
      %v4166 = vadd.f32 %v3887, %v4124
      %v4167 = vadd.f32 %v3888, %v4127
      %v4168 = vadd.f32 %v3889, %v4132
      %v4169 = vadd.f32 %v3890, %v4135
      %v4170 = vpack.c.bf16 %v2948, %v2947
      %s4171 = scalar_lea.vmem %s2, 256
      %v4172 = vld [vmem:[%s4171] sm:$0xf]
      %v4173 = vld [vmem:[%s4171 + $0x4] sm:$0xf]
      %v4174 = vld [vmem:[%s4171 + $0x8] sm:$0xf]
      %v4175 = vld [vmem:[%s4171 + $0xc] sm:$0xf]
      %v4176 = vld [vmem:[%s4171 + $0x10] sm:$0xf]
      %v4177 = vld [vmem:[%s4171 + $0x14] sm:$0xf]
      %v4178 = vld [vmem:[%s4171 + $0x18] sm:$0xf]
      %v4179 = vld [vmem:[%s4171 + $0x1c] sm:$0xf]
      %v4180 = vld [vmem:[%s4171 + $0x20] sm:$0xf]
      %v4181 = vld [vmem:[%s4171 + $0x24] sm:$0xf]
      %v4182 = vld [vmem:[%s4171 + $0x28] sm:$0xf]
      %v4183 = vld [vmem:[%s4171 + $0x2c] sm:$0xf]
      %v4184 = vld [vmem:[%s4171 + $0x30] sm:$0xf]
      %v4185 = vld [vmem:[%s4171 + $0x34] sm:$0xf]
      %v4186 = vld [vmem:[%s4171 + $0x38] sm:$0xf]
      %v4187 = vld [vmem:[%s4171 + $0x3c] sm:$0xf]
      %v4204 = vunpack.c.l.b16 %v4172
      %v4205 = vunpack.c.l.b16 %v4173
      %v4206 = vunpack.c.l.b16 %v4174
      %v4207 = vunpack.c.l.b16 %v4175
      %v4208 = vunpack.c.l.b16 %v4176
      %v4209 = vunpack.c.l.b16 %v4177
      %v4210 = vunpack.c.l.b16 %v4178
      %v4211 = vunpack.c.l.b16 %v4179
      %v4212 = vunpack.c.l.b16 %v4180
      %v4213 = vunpack.c.l.b16 %v4181
      %v4214 = vunpack.c.l.b16 %v4182
      %v4215 = vunpack.c.l.b16 %v4183
      %v4216 = vunpack.c.l.b16 %v4184
      %v4217 = vunpack.c.l.b16 %v4185
      %v4218 = vunpack.c.l.b16 %v4186
      %v4219 = vunpack.c.l.b16 %v4187
      %v4220 = vpack.c.b16 %v4205, %v4204
      %v4221 = vpack.c.b16 %v4207, %v4206
      %v4222 = vpack.c.b16 %v4209, %v4208
      %v4223 = vpack.c.b16 %v4211, %v4210
      %v4224 = vpack.c.b16 %v4213, %v4212
      %v4225 = vpack.c.b16 %v4215, %v4214
      %v4226 = vpack.c.b16 %v4217, %v4216
      %v4227 = vpack.c.b16 %v4219, %v4218
      %4236 = vmatprep.subr.bf16.mxu0 0
      %4237 = vmatpush1.bf16.msra.mxu0 %v4220
      %4238 = vmatprep.subr.bf16.mxu0 0
      %4239 = vmatpush1.bf16.msra.mxu0 %v4221
      %4240 = vmatprep.subr.bf16.mxu0 0
      %4241 = vmatpush1.bf16.msra.mxu0 %v4222
      %4242 = vmatprep.subr.bf16.mxu0 0
      %4243 = vmatpush1.bf16.msra.mxu0 %v4223
      %4244 = vmatprep.subr.bf16.mxu0 0
      %4245 = vmatpush1.bf16.msra.mxu0 %v4224
      %4246 = vmatprep.subr.bf16.mxu0 0
      %4247 = vmatpush1.bf16.msra.mxu0 %v4225
      %4248 = vmatprep.subr.bf16.mxu0 0
      %4249 = vmatpush1.bf16.msra.mxu0 %v4226
      %4250 = vmatprep.subr.bf16.mxu0 0
      %4251 = vmatpush1.bf16.msra.mxu0 %v4227
      %4252 = vmatprep.subr.bf16.mxu0 0
      %4253 = vmatpush1.bf16.msra.mxu0 0
      %4254 = vmatprep.subr.bf16.mxu0 0
      %4255 = vmatpush1.bf16.msra.mxu0 0
      %4256 = vmatprep.subr.bf16.mxu0 0
      %4257 = vmatpush1.bf16.msra.mxu0 0
      %4258 = vmatprep.subr.bf16.mxu0 0
      %4259 = vmatpush1.bf16.msra.mxu0 0
      %4260 = vmatprep.subr.bf16.mxu0 0
      %4261 = vmatpush1.bf16.msra.mxu0 0
      %4262 = vmatprep.subr.bf16.mxu0 0
      %4263 = vmatpush1.bf16.msra.mxu0 0
      %4264 = vmatprep.subr.bf16.mxu0 0
      %4265 = vmatpush1.bf16.msra.mxu0 0
      %4266 = vmatprep.subr.bf16.mxu0 0
      %4267 = vmatpush1.bf16.msra.mxu0 0
      %4268 = vmatprep.mubr.bf16.mxu0 0
      %4269 = vmatmul.mubr.bf16.gmra.mrb[0].mxu0 %v3168
      %v4270 = vpop.f32.mrb[0].mxu0
      %v4271 = vadd.f32 0.0, %v4270
      %v4272 = vpop.f32.mrb[0].mxu0
      %v4273 = vpop.f32.mrb[0].mxu0
      %v4274 = vadd.f32 0.0, %v4273
      %v4275 = vpop.f32.mrb[0].mxu0
      %4276 = vmatprep.mubr.bf16.mxu0 0
      %4277 = vmatmul.mubr.bf16.gmra.mrb[0].mxu0 %v3167
      %v4278 = vpop.f32.mrb[0].mxu0
      %v4279 = vadd.f32 0.0, %v4278
      %v4280 = vpop.f32.mrb[0].mxu0
      %v4281 = vpop.f32.mrb[0].mxu0
      %v4282 = vadd.f32 0.0, %v4281
      %v4283 = vpop.f32.mrb[0].mxu0
      %4284 = vmatprep.mubr.bf16.mxu0 0
      %4285 = vmatmul.mubr.bf16.gmra.mrb[0].mxu0 %v3169
      %v4286 = vpop.f32.mrb[0].mxu0
      %v4287 = vadd.f32 0.0, %v4286
      %v4288 = vpop.f32.mrb[0].mxu0
      %v4289 = vpop.f32.mrb[0].mxu0
      %v4290 = vadd.f32 0.0, %v4289
      %v4291 = vpop.f32.mrb[0].mxu0
      %4292 = vmatprep.mubr.bf16.mxu0 0
      %4293 = vmatmul.mubr.bf16.gmra.mrb[0].mxu0 %v3170
      %v4294 = vpop.f32.mrb[0].mxu0
      %v4295 = vadd.f32 0.0, %v4294
      %v4296 = vpop.f32.mrb[0].mxu0
      %v4297 = vpop.f32.mrb[0].mxu0
      %v4298 = vadd.f32 0.0, %v4297
      %v4299 = vpop.f32.mrb[0].mxu0
      %4300 = vmatprep.mubr.bf16.mxu0 0
      %4301 = vmatmul.mubr.bf16.gmra.mrb[0].mxu0 %v3171
      %v4302 = vpop.f32.mrb[0].mxu0
      %v4303 = vadd.f32 0.0, %v4302
      %v4304 = vpop.f32.mrb[0].mxu0
      %v4305 = vpop.f32.mrb[0].mxu0
      %v4306 = vadd.f32 0.0, %v4305
      %v4307 = vpop.f32.mrb[0].mxu0
      %4308 = vmatprep.mubr.bf16.mxu0 0
      %4309 = vmatmul.mubr.bf16.gmra.mrb[0].mxu0 %v3172
      %v4310 = vpop.f32.mrb[0].mxu0
      %v4311 = vadd.f32 0.0, %v4310
      %v4312 = vpop.f32.mrb[0].mxu0
      %v4313 = vpop.f32.mrb[0].mxu0
      %v4314 = vadd.f32 0.0, %v4313
      %v4315 = vpop.f32.mrb[0].mxu0
      %4316 = vmatprep.mubr.bf16.mxu0 0
      %4317 = vmatmul.mubr.bf16.gmra.mrb[0].mxu0 %v3173
      %v4318 = vpop.f32.mrb[0].mxu0
      %v4319 = vadd.f32 0.0, %v4318
      %v4320 = vpop.f32.mrb[0].mxu0
      %v4321 = vpop.f32.mrb[0].mxu0
      %v4322 = vadd.f32 0.0, %v4321
      %v4323 = vpop.f32.mrb[0].mxu0
      %4324 = vmatprep.mubr.bf16.mxu0 0
      %4325 = vmatmul.mubr.bf16.gmra.mrb[0].mxu0 %v3174
      %v4326 = vpop.f32.mrb[0].mxu0
      %v4327 = vadd.f32 0.0, %v4326
      %v4328 = vpop.f32.mrb[0].mxu0
      %v4329 = vpop.f32.mrb[0].mxu0
      %v4330 = vadd.f32 0.0, %v4329
      %v4331 = vpop.f32.mrb[0].mxu0
      %4332 = vmatprep.mubr.bf16.mxu0 0
      %4333 = vmatmul.mubr.bf16.gmra.mrb[0].mxu0 %v3175
      %v4334 = vpop.f32.mrb[0].mxu0
      %v4335 = vadd.f32 0.0, %v4334
      %v4336 = vpop.f32.mrb[0].mxu0
      %v4337 = vpop.f32.mrb[0].mxu0
      %v4338 = vadd.f32 0.0, %v4337
      %v4339 = vpop.f32.mrb[0].mxu0
      %4340 = vmatprep.mubr.bf16.mxu0 0
      %4341 = vmatmul.mubr.bf16.gmra.mrb[0].mxu0 %v3176
      %v4342 = vpop.f32.mrb[0].mxu0
      %v4343 = vadd.f32 0.0, %v4342
      %v4344 = vpop.f32.mrb[0].mxu0
      %v4345 = vpop.f32.mrb[0].mxu0
      %v4346 = vadd.f32 0.0, %v4345
      %v4347 = vpop.f32.mrb[0].mxu0
      %4348 = vmatprep.mubr.bf16.mxu0 0
      %4349 = vmatmul.mubr.bf16.gmra.mrb[0].mxu0 %v3177
      %v4350 = vpop.f32.mrb[0].mxu0
      %v4351 = vadd.f32 0.0, %v4350
      %v4352 = vpop.f32.mrb[0].mxu0
      %v4353 = vpop.f32.mrb[0].mxu0
      %v4354 = vadd.f32 0.0, %v4353
      %v4355 = vpop.f32.mrb[0].mxu0
      %4356 = vmatprep.mubr.bf16.mxu0 0
      %4357 = vmatmul.mubr.bf16.gmra.mrb[0].mxu0 %v3178
      %v4358 = vpop.f32.mrb[0].mxu0
      %v4359 = vadd.f32 0.0, %v4358
      %v4360 = vpop.f32.mrb[0].mxu0
      %v4361 = vpop.f32.mrb[0].mxu0
      %v4362 = vadd.f32 0.0, %v4361
      %v4363 = vpop.f32.mrb[0].mxu0
      %4364 = vmatprep.mubr.bf16.mxu0 0
      %4365 = vmatmul.mubr.bf16.gmra.mrb[0].mxu0 %v3179
      %v4366 = vpop.f32.mrb[0].mxu0
      %v4367 = vadd.f32 0.0, %v4366
      %v4368 = vpop.f32.mrb[0].mxu0
      %v4369 = vpop.f32.mrb[0].mxu0
      %v4370 = vadd.f32 0.0, %v4369
      %v4371 = vpop.f32.mrb[0].mxu0
      %4372 = vmatprep.mubr.bf16.mxu0 0
      %4373 = vmatmul.mubr.bf16.gmra.mrb[0].mxu0 %v3180
      %v4374 = vpop.f32.mrb[0].mxu0
      %v4375 = vadd.f32 0.0, %v4374
      %v4376 = vpop.f32.mrb[0].mxu0
      %v4377 = vpop.f32.mrb[0].mxu0
      %v4378 = vadd.f32 0.0, %v4377
      %v4379 = vpop.f32.mrb[0].mxu0
      %4380 = vmatprep.mubr.bf16.mxu0 0
      %4381 = vmatmul.mubr.bf16.gmra.mrb[0].mxu0 %v3181
      %v4382 = vpop.f32.mrb[0].mxu0
      %v4383 = vadd.f32 0.0, %v4382
      %v4384 = vpop.f32.mrb[0].mxu0
      %v4385 = vpop.f32.mrb[0].mxu0
      %v4386 = vadd.f32 0.0, %v4385
      %v4387 = vpop.f32.mrb[0].mxu0
      %4388 = vmatprep.mubr.bf16.mxu0 0
      %4389 = vmatmul.mubr.bf16.gmra.mrb[0].mxu0 %v4170
      %v4390 = vpop.f32.mrb[0].mxu0
      %v4391 = vadd.f32 0.0, %v4390
      %v4392 = vpop.f32.mrb[0].mxu0
      %v4393 = vpop.f32.mrb[0].mxu0
      %v4394 = vadd.f32 0.0, %v4393
      %v4395 = vpop.f32.mrb[0].mxu0
      %4396 = vdwg.mxu0
      %v4397 = vadd.f32 %v4138, %v4271
      %v4398 = vadd.f32 %v4139, %v4274
      %v4399 = vadd.f32 %v4140, %v4279
      %v4400 = vadd.f32 %v4141, %v4282
      %v4401 = vadd.f32 %v4142, %v4287
      %v4402 = vadd.f32 %v4143, %v4290
      %v4403 = vadd.f32 %v4144, %v4295
      %v4404 = vadd.f32 %v4145, %v4298
      %v4405 = vadd.f32 %v4146, %v4303
      %v4406 = vadd.f32 %v4147, %v4306
      %v4407 = vadd.f32 %v4148, %v4311
      %v4408 = vadd.f32 %v4149, %v4314
      %v4409 = vadd.f32 %v4150, %v4319
      %v4410 = vadd.f32 %v4151, %v4322
      %v4411 = vadd.f32 %v4152, %v4327
      %v4412 = vadd.f32 %v4153, %v4330
      %v4413 = vadd.f32 %v4154, %v4335
      %v4414 = vadd.f32 %v4155, %v4338
      %v4415 = vadd.f32 %v4156, %v4343
      %v4416 = vadd.f32 %v4157, %v4346
      %v4417 = vadd.f32 %v4158, %v4351
      %v4418 = vadd.f32 %v4159, %v4354
      %v4419 = vadd.f32 %v4160, %v4359
      %v4420 = vadd.f32 %v4161, %v4362
      %v4421 = vadd.f32 %v4162, %v4367
      %v4422 = vadd.f32 %v4163, %v4370
      %v4423 = vadd.f32 %v4164, %v4375
      %v4424 = vadd.f32 %v4165, %v4378
      %v4425 = vadd.f32 %v4166, %v4383
      %v4426 = vadd.f32 %v4167, %v4386
      %v4427 = vadd.f32 %v4168, %v4391
      %v4428 = vadd.f32 %v4169, %v4394
      %v4429 = vpack.c.bf16 %v3106, %v3905
      %v4430 = vpack.c.bf16 %v3906, %v3133
      %v4431 = vpack.c.bf16 %v3908, %v3907
      %s4432 = scalar_lea.vmem %s2, 320
      %v4433 = vld [vmem:[%s4432] sm:$0xf]
      %v4434 = vld [vmem:[%s4432 + $0x4] sm:$0xf]
      %v4435 = vld [vmem:[%s4432 + $0x8] sm:$0xf]
      %v4436 = vld [vmem:[%s4432 + $0xc] sm:$0xf]
      %v4437 = vld [vmem:[%s4432 + $0x10] sm:$0xf]
      %v4438 = vld [vmem:[%s4432 + $0x14] sm:$0xf]
      %v4439 = vld [vmem:[%s4432 + $0x18] sm:$0xf]
      %v4440 = vld [vmem:[%s4432 + $0x1c] sm:$0xf]
      %v4441 = vld [vmem:[%s4432 + $0x20] sm:$0xf]
      %v4442 = vld [vmem:[%s4432 + $0x24] sm:$0xf]
      %v4443 = vld [vmem:[%s4432 + $0x28] sm:$0xf]
      %v4444 = vld [vmem:[%s4432 + $0x2c] sm:$0xf]
      %v4445 = vld [vmem:[%s4432 + $0x30] sm:$0xf]
      %v4446 = vld [vmem:[%s4432 + $0x34] sm:$0xf]
      %v4447 = vld [vmem:[%s4432 + $0x38] sm:$0xf]
      %v4448 = vld [vmem:[%s4432 + $0x3c] sm:$0xf]
      %v4465 = vunpack.c.l.b16 %v4433
      %v4466 = vunpack.c.l.b16 %v4434
      %v4467 = vunpack.c.l.b16 %v4435
      %v4468 = vunpack.c.l.b16 %v4436
      %v4469 = vunpack.c.l.b16 %v4437
      %v4470 = vunpack.c.l.b16 %v4438
      %v4471 = vunpack.c.l.b16 %v4439
      %v4472 = vunpack.c.l.b16 %v4440
      %v4473 = vunpack.c.l.b16 %v4441
      %v4474 = vunpack.c.l.b16 %v4442
      %v4475 = vunpack.c.l.b16 %v4443
      %v4476 = vunpack.c.l.b16 %v4444
      %v4477 = vunpack.c.l.b16 %v4445
      %v4478 = vunpack.c.l.b16 %v4446
      %v4479 = vunpack.c.l.b16 %v4447
      %v4480 = vunpack.c.l.b16 %v4448
      %v4481 = vpack.c.b16 %v4466, %v4465
      %v4482 = vpack.c.b16 %v4468, %v4467
      %v4483 = vpack.c.b16 %v4470, %v4469
      %v4484 = vpack.c.b16 %v4472, %v4471
      %v4485 = vpack.c.b16 %v4474, %v4473
      %v4486 = vpack.c.b16 %v4476, %v4475
      %v4487 = vpack.c.b16 %v4478, %v4477
      %v4488 = vpack.c.b16 %v4480, %v4479
      %4497 = vmatprep.subr.bf16.mxu0 0
      %4498 = vmatpush1.bf16.msra.mxu0 %v4481
      %4499 = vmatprep.subr.bf16.mxu0 0
      %4500 = vmatpush1.bf16.msra.mxu0 %v4482
      %4501 = vmatprep.subr.bf16.mxu0 0
      %4502 = vmatpush1.bf16.msra.mxu0 %v4483
      %4503 = vmatprep.subr.bf16.mxu0 0
      %4504 = vmatpush1.bf16.msra.mxu0 %v4484
      %4505 = vmatprep.subr.bf16.mxu0 0
      %4506 = vmatpush1.bf16.msra.mxu0 %v4485
      %4507 = vmatprep.subr.bf16.mxu0 0
      %4508 = vmatpush1.bf16.msra.mxu0 %v4486
      %4509 = vmatprep.subr.bf16.mxu0 0
      %4510 = vmatpush1.bf16.msra.mxu0 %v4487
      %4511 = vmatprep.subr.bf16.mxu0 0
      %4512 = vmatpush1.bf16.msra.mxu0 %v4488
      %4513 = vmatprep.subr.bf16.mxu0 0
      %4514 = vmatpush1.bf16.msra.mxu0 0
      %4515 = vmatprep.subr.bf16.mxu0 0
      %4516 = vmatpush1.bf16.msra.mxu0 0
      %4517 = vmatprep.subr.bf16.mxu0 0
      %4518 = vmatpush1.bf16.msra.mxu0 0
      %4519 = vmatprep.subr.bf16.mxu0 0
      %4520 = vmatpush1.bf16.msra.mxu0 0
      %4521 = vmatprep.subr.bf16.mxu0 0
      %4522 = vmatpush1.bf16.msra.mxu0 0
      %4523 = vmatprep.subr.bf16.mxu0 0
      %4524 = vmatpush1.bf16.msra.mxu0 0
      %4525 = vmatprep.subr.bf16.mxu0 0
      %4526 = vmatpush1.bf16.msra.mxu0 0
      %4527 = vmatprep.subr.bf16.mxu0 0
      %4528 = vmatpush1.bf16.msra.mxu0 0
      %4529 = vmatprep.mubr.bf16.mxu0 0
      %4530 = vmatmul.mubr.bf16.gmra.mrb[0].mxu0 %v4429
      %v4531 = vpop.f32.mrb[0].mxu0
      %v4532 = vadd.f32 0.0, %v4531
      %v4533 = vpop.f32.mrb[0].mxu0
      %v4534 = vpop.f32.mrb[0].mxu0
      %v4535 = vadd.f32 0.0, %v4534
      %v4536 = vpop.f32.mrb[0].mxu0
      %4537 = vmatprep.mubr.bf16.mxu0 0
      %4538 = vmatmul.mubr.bf16.gmra.mrb[0].mxu0 %v3619
      %v4539 = vpop.f32.mrb[0].mxu0
      %v4540 = vadd.f32 0.0, %v4539
      %v4541 = vpop.f32.mrb[0].mxu0
      %v4542 = vpop.f32.mrb[0].mxu0
      %v4543 = vadd.f32 0.0, %v4542
      %v4544 = vpop.f32.mrb[0].mxu0
      %4545 = vmatprep.mubr.bf16.mxu0 0
      %4546 = vmatmul.mubr.bf16.gmra.mrb[0].mxu0 %v3620
      %v4547 = vpop.f32.mrb[0].mxu0
      %v4548 = vadd.f32 0.0, %v4547
      %v4549 = vpop.f32.mrb[0].mxu0
      %v4550 = vpop.f32.mrb[0].mxu0
      %v4551 = vadd.f32 0.0, %v4550
      %v4552 = vpop.f32.mrb[0].mxu0
      %4553 = vmatprep.mubr.bf16.mxu0 0
      %4554 = vmatmul.mubr.bf16.gmra.mrb[0].mxu0 %v3621
      %v4555 = vpop.f32.mrb[0].mxu0
      %v4556 = vadd.f32 0.0, %v4555
      %v4557 = vpop.f32.mrb[0].mxu0
      %v4558 = vpop.f32.mrb[0].mxu0
      %v4559 = vadd.f32 0.0, %v4558
      %v4560 = vpop.f32.mrb[0].mxu0
      %4561 = vmatprep.mubr.bf16.mxu0 0
      %4562 = vmatmul.mubr.bf16.gmra.mrb[0].mxu0 %v3622
      %v4563 = vpop.f32.mrb[0].mxu0
      %v4564 = vadd.f32 0.0, %v4563
      %v4565 = vpop.f32.mrb[0].mxu0
      %v4566 = vpop.f32.mrb[0].mxu0
      %v4567 = vadd.f32 0.0, %v4566
      %v4568 = vpop.f32.mrb[0].mxu0
      %4569 = vmatprep.mubr.bf16.mxu0 0
      %4570 = vmatmul.mubr.bf16.gmra.mrb[0].mxu0 %v3623
      %v4571 = vpop.f32.mrb[0].mxu0
      %v4572 = vadd.f32 0.0, %v4571
      %v4573 = vpop.f32.mrb[0].mxu0
      %v4574 = vpop.f32.mrb[0].mxu0
      %v4575 = vadd.f32 0.0, %v4574
      %v4576 = vpop.f32.mrb[0].mxu0
      %4577 = vmatprep.mubr.bf16.mxu0 0
      %4578 = vmatmul.mubr.bf16.gmra.mrb[0].mxu0 %v3624
      %v4579 = vpop.f32.mrb[0].mxu0
      %v4580 = vadd.f32 0.0, %v4579
      %v4581 = vpop.f32.mrb[0].mxu0
      %v4582 = vpop.f32.mrb[0].mxu0
      %v4583 = vadd.f32 0.0, %v4582
      %v4584 = vpop.f32.mrb[0].mxu0
      %4585 = vmatprep.mubr.bf16.mxu0 0
      %4586 = vmatmul.mubr.bf16.gmra.mrb[0].mxu0 %v3625
      %v4587 = vpop.f32.mrb[0].mxu0
      %v4588 = vadd.f32 0.0, %v4587
      %v4589 = vpop.f32.mrb[0].mxu0
      %v4590 = vpop.f32.mrb[0].mxu0
      %v4591 = vadd.f32 0.0, %v4590
      %v4592 = vpop.f32.mrb[0].mxu0
      %4593 = vmatprep.mubr.bf16.mxu0 0
      %4594 = vmatmul.mubr.bf16.gmra.mrb[0].mxu0 %v3626
      %v4595 = vpop.f32.mrb[0].mxu0
      %v4596 = vadd.f32 0.0, %v4595
      %v4597 = vpop.f32.mrb[0].mxu0
      %v4598 = vpop.f32.mrb[0].mxu0
      %v4599 = vadd.f32 0.0, %v4598
      %v4600 = vpop.f32.mrb[0].mxu0
      %4601 = vmatprep.mubr.bf16.mxu0 0
      %4602 = vmatmul.mubr.bf16.gmra.mrb[0].mxu0 %v3627
      %v4603 = vpop.f32.mrb[0].mxu0
      %v4604 = vadd.f32 0.0, %v4603
      %v4605 = vpop.f32.mrb[0].mxu0
      %v4606 = vpop.f32.mrb[0].mxu0
      %v4607 = vadd.f32 0.0, %v4606
      %v4608 = vpop.f32.mrb[0].mxu0
      %4609 = vmatprep.mubr.bf16.mxu0 0
      %4610 = vmatmul.mubr.bf16.gmra.mrb[0].mxu0 %v3628
      %v4611 = vpop.f32.mrb[0].mxu0
      %v4612 = vadd.f32 0.0, %v4611
      %v4613 = vpop.f32.mrb[0].mxu0
      %v4614 = vpop.f32.mrb[0].mxu0
      %v4615 = vadd.f32 0.0, %v4614
      %v4616 = vpop.f32.mrb[0].mxu0
      %4617 = vmatprep.mubr.bf16.mxu0 0
      %4618 = vmatmul.mubr.bf16.gmra.mrb[0].mxu0 %v3629
      %v4619 = vpop.f32.mrb[0].mxu0
      %v4620 = vadd.f32 0.0, %v4619
      %v4621 = vpop.f32.mrb[0].mxu0
      %v4622 = vpop.f32.mrb[0].mxu0
      %v4623 = vadd.f32 0.0, %v4622
      %v4624 = vpop.f32.mrb[0].mxu0
      %4625 = vmatprep.mubr.bf16.mxu0 0
      %4626 = vmatmul.mubr.bf16.gmra.mrb[0].mxu0 %v3630
      %v4627 = vpop.f32.mrb[0].mxu0
      %v4628 = vadd.f32 0.0, %v4627
      %v4629 = vpop.f32.mrb[0].mxu0
      %v4630 = vpop.f32.mrb[0].mxu0
      %v4631 = vadd.f32 0.0, %v4630
      %v4632 = vpop.f32.mrb[0].mxu0
      %4633 = vmatprep.mubr.bf16.mxu0 0
      %4634 = vmatmul.mubr.bf16.gmra.mrb[0].mxu0 %v3631
      %v4635 = vpop.f32.mrb[0].mxu0
      %v4636 = vadd.f32 0.0, %v4635
      %v4637 = vpop.f32.mrb[0].mxu0
      %v4638 = vpop.f32.mrb[0].mxu0
      %v4639 = vadd.f32 0.0, %v4638
      %v4640 = vpop.f32.mrb[0].mxu0
      %4641 = vmatprep.mubr.bf16.mxu0 0
      %4642 = vmatmul.mubr.bf16.gmra.mrb[0].mxu0 %v4430
      %v4643 = vpop.f32.mrb[0].mxu0
      %v4644 = vadd.f32 0.0, %v4643
      %v4645 = vpop.f32.mrb[0].mxu0
      %v4646 = vpop.f32.mrb[0].mxu0
      %v4647 = vadd.f32 0.0, %v4646
      %v4648 = vpop.f32.mrb[0].mxu0
      %4649 = vmatprep.mubr.bf16.mxu0 0
      %4650 = vmatmul.mubr.bf16.gmra.mrb[0].mxu0 %v4431
      %v4651 = vpop.f32.mrb[0].mxu0
      %v4652 = vadd.f32 0.0, %v4651
      %v4653 = vpop.f32.mrb[0].mxu0
      %v4654 = vpop.f32.mrb[0].mxu0
      %v4655 = vadd.f32 0.0, %v4654
      %v4656 = vpop.f32.mrb[0].mxu0
      %4657 = vdwg.mxu0
      %v4658 = vadd.f32 %v4397, %v4532
      %v4659 = vadd.f32 %v4398, %v4535
      %v4660 = vadd.f32 %v4399, %v4540
      %v4661 = vadd.f32 %v4400, %v4543
      %v4662 = vadd.f32 %v4401, %v4548
      %v4663 = vadd.f32 %v4402, %v4551
      %v4664 = vadd.f32 %v4403, %v4556
      %v4665 = vadd.f32 %v4404, %v4559
      %v4666 = vadd.f32 %v4405, %v4564
      %v4667 = vadd.f32 %v4406, %v4567
      %v4668 = vadd.f32 %v4407, %v4572
      %v4669 = vadd.f32 %v4408, %v4575
      %v4670 = vadd.f32 %v4409, %v4580
      %v4671 = vadd.f32 %v4410, %v4583
      %v4672 = vadd.f32 %v4411, %v4588
      %v4673 = vadd.f32 %v4412, %v4591
      %v4674 = vadd.f32 %v4413, %v4596
      %v4675 = vadd.f32 %v4414, %v4599
      %v4676 = vadd.f32 %v4415, %v4604
      %v4677 = vadd.f32 %v4416, %v4607
      %v4678 = vadd.f32 %v4417, %v4612
      %v4679 = vadd.f32 %v4418, %v4615
      %v4680 = vadd.f32 %v4419, %v4620
      %v4681 = vadd.f32 %v4420, %v4623
      %v4682 = vadd.f32 %v4421, %v4628
      %v4683 = vadd.f32 %v4422, %v4631
      %v4684 = vadd.f32 %v4423, %v4636
      %v4685 = vadd.f32 %v4424, %v4639
      %v4686 = vadd.f32 %v4425, %v4644
      %v4687 = vadd.f32 %v4426, %v4647
      %v4688 = vadd.f32 %v4427, %v4652
      %v4689 = vadd.f32 %v4428, %v4655
      %v4690 = vsel %vm241, %v3892, %v2977
      %v4691 = vsel %vm303, %v3897, %v3038
      %v4692 = vsel %vm208, %v4691, %v3893
      %v4693 = vsel %vm207, %v3040, %v4690
      %v4694 = vsel %vm210, %v3893, %v4691
      %v4695 = vsel %vm209, %v4690, %v3040
      %v4696 = vpack.c.bf16 %v3076, %v3071
      %v4697 = vpack.c.bf16 %v4692, %v3903
      %v4698 = vpack.c.bf16 %v3102, %v4693
      %s4699 = scalar_lea.vmem %s2, 384
      %v4700 = vld [vmem:[%s4699] sm:$0xf]
      %v4701 = vld [vmem:[%s4699 + $0x4] sm:$0xf]
      %v4702 = vld [vmem:[%s4699 + $0x8] sm:$0xf]
      %v4703 = vld [vmem:[%s4699 + $0xc] sm:$0xf]
      %v4704 = vld [vmem:[%s4699 + $0x10] sm:$0xf]
      %v4705 = vld [vmem:[%s4699 + $0x14] sm:$0xf]
      %v4706 = vld [vmem:[%s4699 + $0x18] sm:$0xf]
      %v4707 = vld [vmem:[%s4699 + $0x1c] sm:$0xf]
      %v4708 = vld [vmem:[%s4699 + $0x20] sm:$0xf]
      %v4709 = vld [vmem:[%s4699 + $0x24] sm:$0xf]
      %v4710 = vld [vmem:[%s4699 + $0x28] sm:$0xf]
      %v4711 = vld [vmem:[%s4699 + $0x2c] sm:$0xf]
      %v4712 = vld [vmem:[%s4699 + $0x30] sm:$0xf]
      %v4713 = vld [vmem:[%s4699 + $0x34] sm:$0xf]
      %v4714 = vld [vmem:[%s4699 + $0x38] sm:$0xf]
      %v4715 = vld [vmem:[%s4699 + $0x3c] sm:$0xf]
      %v4732 = vunpack.c.l.b16 %v4700
      %v4733 = vunpack.c.l.b16 %v4701
      %v4734 = vunpack.c.l.b16 %v4702
      %v4735 = vunpack.c.l.b16 %v4703
      %v4736 = vunpack.c.l.b16 %v4704
      %v4737 = vunpack.c.l.b16 %v4705
      %v4738 = vunpack.c.l.b16 %v4706
      %v4739 = vunpack.c.l.b16 %v4707
      %v4740 = vunpack.c.l.b16 %v4708
      %v4741 = vunpack.c.l.b16 %v4709
      %v4742 = vunpack.c.l.b16 %v4710
      %v4743 = vunpack.c.l.b16 %v4711
      %v4744 = vunpack.c.l.b16 %v4712
      %v4745 = vunpack.c.l.b16 %v4713
      %v4746 = vunpack.c.l.b16 %v4714
      %v4747 = vunpack.c.l.b16 %v4715
      %v4748 = vpack.c.b16 %v4733, %v4732
      %v4749 = vpack.c.b16 %v4735, %v4734
      %v4750 = vpack.c.b16 %v4737, %v4736
      %v4751 = vpack.c.b16 %v4739, %v4738
      %v4752 = vpack.c.b16 %v4741, %v4740
      %v4753 = vpack.c.b16 %v4743, %v4742
      %v4754 = vpack.c.b16 %v4745, %v4744
      %v4755 = vpack.c.b16 %v4747, %v4746
      %4764 = vmatprep.subr.bf16.mxu0 0
      %4765 = vmatpush1.bf16.msra.mxu0 %v4748
      %4766 = vmatprep.subr.bf16.mxu0 0
      %4767 = vmatpush1.bf16.msra.mxu0 %v4749
      %4768 = vmatprep.subr.bf16.mxu0 0
      %4769 = vmatpush1.bf16.msra.mxu0 %v4750
      %4770 = vmatprep.subr.bf16.mxu0 0
      %4771 = vmatpush1.bf16.msra.mxu0 %v4751
      %4772 = vmatprep.subr.bf16.mxu0 0
      %4773 = vmatpush1.bf16.msra.mxu0 %v4752
      %4774 = vmatprep.subr.bf16.mxu0 0
      %4775 = vmatpush1.bf16.msra.mxu0 %v4753
      %4776 = vmatprep.subr.bf16.mxu0 0
      %4777 = vmatpush1.bf16.msra.mxu0 %v4754
      %4778 = vmatprep.subr.bf16.mxu0 0
      %4779 = vmatpush1.bf16.msra.mxu0 %v4755
      %4780 = vmatprep.subr.bf16.mxu0 0
      %4781 = vmatpush1.bf16.msra.mxu0 0
      %4782 = vmatprep.subr.bf16.mxu0 0
      %4783 = vmatpush1.bf16.msra.mxu0 0
      %4784 = vmatprep.subr.bf16.mxu0 0
      %4785 = vmatpush1.bf16.msra.mxu0 0
      %4786 = vmatprep.subr.bf16.mxu0 0
      %4787 = vmatpush1.bf16.msra.mxu0 0
      %4788 = vmatprep.subr.bf16.mxu0 0
      %4789 = vmatpush1.bf16.msra.mxu0 0
      %4790 = vmatprep.subr.bf16.mxu0 0
      %4791 = vmatpush1.bf16.msra.mxu0 0
      %4792 = vmatprep.subr.bf16.mxu0 0
      %4793 = vmatpush1.bf16.msra.mxu0 0
      %4794 = vmatprep.subr.bf16.mxu0 0
      %4795 = vmatpush1.bf16.msra.mxu0 0
      %4796 = vmatprep.mubr.bf16.mxu0 0
      %4797 = vmatmul.mubr.bf16.gmra.mrb[0].mxu0 %v4696
      %v4798 = vpop.f32.mrb[0].mxu0
      %v4799 = vadd.f32 0.0, %v4798
      %v4800 = vpop.f32.mrb[0].mxu0
      %v4801 = vpop.f32.mrb[0].mxu0
      %v4802 = vadd.f32 0.0, %v4801
      %v4803 = vpop.f32.mrb[0].mxu0
      %4804 = vmatprep.mubr.bf16.mxu0 0
      %4805 = vmatmul.mubr.bf16.gmra.mrb[0].mxu0 %v3138
      %v4806 = vpop.f32.mrb[0].mxu0
      %v4807 = vadd.f32 0.0, %v4806
      %v4808 = vpop.f32.mrb[0].mxu0
      %v4809 = vpop.f32.mrb[0].mxu0
      %v4810 = vadd.f32 0.0, %v4809
      %v4811 = vpop.f32.mrb[0].mxu0
      %4812 = vmatprep.mubr.bf16.mxu0 0
      %4813 = vmatmul.mubr.bf16.gmra.mrb[0].mxu0 %v3139
      %v4814 = vpop.f32.mrb[0].mxu0
      %v4815 = vadd.f32 0.0, %v4814
      %v4816 = vpop.f32.mrb[0].mxu0
      %v4817 = vpop.f32.mrb[0].mxu0
      %v4818 = vadd.f32 0.0, %v4817
      %v4819 = vpop.f32.mrb[0].mxu0
      %4820 = vmatprep.mubr.bf16.mxu0 0
      %4821 = vmatmul.mubr.bf16.gmra.mrb[0].mxu0 %v3140
      %v4822 = vpop.f32.mrb[0].mxu0
      %v4823 = vadd.f32 0.0, %v4822
      %v4824 = vpop.f32.mrb[0].mxu0
      %v4825 = vpop.f32.mrb[0].mxu0
      %v4826 = vadd.f32 0.0, %v4825
      %v4827 = vpop.f32.mrb[0].mxu0
      %4828 = vmatprep.mubr.bf16.mxu0 0
      %4829 = vmatmul.mubr.bf16.gmra.mrb[0].mxu0 %v3141
      %v4830 = vpop.f32.mrb[0].mxu0
      %v4831 = vadd.f32 0.0, %v4830
      %v4832 = vpop.f32.mrb[0].mxu0
      %v4833 = vpop.f32.mrb[0].mxu0
      %v4834 = vadd.f32 0.0, %v4833
      %v4835 = vpop.f32.mrb[0].mxu0
      %4836 = vmatprep.mubr.bf16.mxu0 0
      %4837 = vmatmul.mubr.bf16.gmra.mrb[0].mxu0 %v3142
      %v4838 = vpop.f32.mrb[0].mxu0
      %v4839 = vadd.f32 0.0, %v4838
      %v4840 = vpop.f32.mrb[0].mxu0
      %v4841 = vpop.f32.mrb[0].mxu0
      %v4842 = vadd.f32 0.0, %v4841
      %v4843 = vpop.f32.mrb[0].mxu0
      %4844 = vmatprep.mubr.bf16.mxu0 0
      %4845 = vmatmul.mubr.bf16.gmra.mrb[0].mxu0 %v3143
      %v4846 = vpop.f32.mrb[0].mxu0
      %v4847 = vadd.f32 0.0, %v4846
      %v4848 = vpop.f32.mrb[0].mxu0
      %v4849 = vpop.f32.mrb[0].mxu0
      %v4850 = vadd.f32 0.0, %v4849
      %v4851 = vpop.f32.mrb[0].mxu0
      %4852 = vmatprep.mubr.bf16.mxu0 0
      %4853 = vmatmul.mubr.bf16.gmra.mrb[0].mxu0 %v3144
      %v4854 = vpop.f32.mrb[0].mxu0
      %v4855 = vadd.f32 0.0, %v4854
      %v4856 = vpop.f32.mrb[0].mxu0
      %v4857 = vpop.f32.mrb[0].mxu0
      %v4858 = vadd.f32 0.0, %v4857
      %v4859 = vpop.f32.mrb[0].mxu0
      %4860 = vmatprep.mubr.bf16.mxu0 0
      %4861 = vmatmul.mubr.bf16.gmra.mrb[0].mxu0 %v3145
      %v4862 = vpop.f32.mrb[0].mxu0
      %v4863 = vadd.f32 0.0, %v4862
      %v4864 = vpop.f32.mrb[0].mxu0
      %v4865 = vpop.f32.mrb[0].mxu0
      %v4866 = vadd.f32 0.0, %v4865
      %v4867 = vpop.f32.mrb[0].mxu0
      %4868 = vmatprep.mubr.bf16.mxu0 0
      %4869 = vmatmul.mubr.bf16.gmra.mrb[0].mxu0 %v3146
      %v4870 = vpop.f32.mrb[0].mxu0
      %v4871 = vadd.f32 0.0, %v4870
      %v4872 = vpop.f32.mrb[0].mxu0
      %v4873 = vpop.f32.mrb[0].mxu0
      %v4874 = vadd.f32 0.0, %v4873
      %v4875 = vpop.f32.mrb[0].mxu0
      %4876 = vmatprep.mubr.bf16.mxu0 0
      %4877 = vmatmul.mubr.bf16.gmra.mrb[0].mxu0 %v3147
      %v4878 = vpop.f32.mrb[0].mxu0
      %v4879 = vadd.f32 0.0, %v4878
      %v4880 = vpop.f32.mrb[0].mxu0
      %v4881 = vpop.f32.mrb[0].mxu0
      %v4882 = vadd.f32 0.0, %v4881
      %v4883 = vpop.f32.mrb[0].mxu0
      %4884 = vmatprep.mubr.bf16.mxu0 0
      %4885 = vmatmul.mubr.bf16.gmra.mrb[0].mxu0 %v3148
      %v4886 = vpop.f32.mrb[0].mxu0
      %v4887 = vadd.f32 0.0, %v4886
      %v4888 = vpop.f32.mrb[0].mxu0
      %v4889 = vpop.f32.mrb[0].mxu0
      %v4890 = vadd.f32 0.0, %v4889
      %v4891 = vpop.f32.mrb[0].mxu0
      %4892 = vmatprep.mubr.bf16.mxu0 0
      %4893 = vmatmul.mubr.bf16.gmra.mrb[0].mxu0 %v3149
      %v4894 = vpop.f32.mrb[0].mxu0
      %v4895 = vadd.f32 0.0, %v4894
      %v4896 = vpop.f32.mrb[0].mxu0
      %v4897 = vpop.f32.mrb[0].mxu0
      %v4898 = vadd.f32 0.0, %v4897
      %v4899 = vpop.f32.mrb[0].mxu0
      %4900 = vmatprep.mubr.bf16.mxu0 0
      %4901 = vmatmul.mubr.bf16.gmra.mrb[0].mxu0 %v3910
      %v4902 = vpop.f32.mrb[0].mxu0
      %v4903 = vadd.f32 0.0, %v4902
      %v4904 = vpop.f32.mrb[0].mxu0
      %v4905 = vpop.f32.mrb[0].mxu0
      %v4906 = vadd.f32 0.0, %v4905
      %v4907 = vpop.f32.mrb[0].mxu0
      %4908 = vmatprep.mubr.bf16.mxu0 0
      %4909 = vmatmul.mubr.bf16.gmra.mrb[0].mxu0 %v4697
      %v4910 = vpop.f32.mrb[0].mxu0
      %v4911 = vadd.f32 0.0, %v4910
      %v4912 = vpop.f32.mrb[0].mxu0
      %v4913 = vpop.f32.mrb[0].mxu0
      %v4914 = vadd.f32 0.0, %v4913
      %v4915 = vpop.f32.mrb[0].mxu0
      %4916 = vmatprep.mubr.bf16.mxu0 0
      %4917 = vmatmul.mubr.bf16.gmra.mrb[0].mxu0 %v4698
      %v4918 = vpop.f32.mrb[0].mxu0
      %v4919 = vadd.f32 0.0, %v4918
      %v4920 = vpop.f32.mrb[0].mxu0
      %v4921 = vpop.f32.mrb[0].mxu0
      %v4922 = vadd.f32 0.0, %v4921
      %v4923 = vpop.f32.mrb[0].mxu0
      %4924 = vdwg.mxu0
      %v4925 = vadd.f32 %v4658, %v4799
      %v4926 = vadd.f32 %v4659, %v4802
      %v4927 = vadd.f32 %v4660, %v4807
      %v4928 = vadd.f32 %v4661, %v4810
      %v4929 = vadd.f32 %v4662, %v4815
      %v4930 = vadd.f32 %v4663, %v4818
      %v4931 = vadd.f32 %v4664, %v4823
      %v4932 = vadd.f32 %v4665, %v4826
      %v4933 = vadd.f32 %v4666, %v4831
      %v4934 = vadd.f32 %v4667, %v4834
      %v4935 = vadd.f32 %v4668, %v4839
      %v4936 = vadd.f32 %v4669, %v4842
      %v4937 = vadd.f32 %v4670, %v4847
      %v4938 = vadd.f32 %v4671, %v4850
      %v4939 = vadd.f32 %v4672, %v4855
      %v4940 = vadd.f32 %v4673, %v4858
      %v4941 = vadd.f32 %v4674, %v4863
      %v4942 = vadd.f32 %v4675, %v4866
      %v4943 = vadd.f32 %v4676, %v4871
      %v4944 = vadd.f32 %v4677, %v4874
      %v4945 = vadd.f32 %v4678, %v4879
      %v4946 = vadd.f32 %v4679, %v4882
      %v4947 = vadd.f32 %v4680, %v4887
      %v4948 = vadd.f32 %v4681, %v4890
      %v4949 = vadd.f32 %v4682, %v4895
      %v4950 = vadd.f32 %v4683, %v4898
      %v4951 = vadd.f32 %v4684, %v4903
      %v4952 = vadd.f32 %v4685, %v4906
      %v4953 = vadd.f32 %v4686, %v4911
      %v4954 = vadd.f32 %v4687, %v4914
      %v4955 = vadd.f32 %v4688, %v4919
      %v4956 = vadd.f32 %v4689, %v4922
      %s4957 = scalar_lea.vmem %s2, 448
      %v4958 = vld [vmem:[%s4957] sm:$0xf]
      %v4959 = vld [vmem:[%s4957 + $0x4] sm:$0xf]
      %v4960 = vld [vmem:[%s4957 + $0x8] sm:$0xf]
      %v4961 = vld [vmem:[%s4957 + $0xc] sm:$0xf]
      %v4962 = vld [vmem:[%s4957 + $0x10] sm:$0xf]
      %v4963 = vld [vmem:[%s4957 + $0x14] sm:$0xf]
      %v4964 = vld [vmem:[%s4957 + $0x18] sm:$0xf]
      %v4965 = vld [vmem:[%s4957 + $0x1c] sm:$0xf]
      %v4966 = vld [vmem:[%s4957 + $0x20] sm:$0xf]
      %v4967 = vld [vmem:[%s4957 + $0x24] sm:$0xf]
      %v4968 = vld [vmem:[%s4957 + $0x28] sm:$0xf]
      %v4969 = vld [vmem:[%s4957 + $0x2c] sm:$0xf]
      %v4970 = vld [vmem:[%s4957 + $0x30] sm:$0xf]
      %v4971 = vld [vmem:[%s4957 + $0x34] sm:$0xf]
      %v4972 = vld [vmem:[%s4957 + $0x38] sm:$0xf]
      %v4973 = vld [vmem:[%s4957 + $0x3c] sm:$0xf]
      %v4990 = vunpack.c.l.b16 %v4958
      %v4991 = vunpack.c.l.b16 %v4959
      %v4992 = vunpack.c.l.b16 %v4960
      %v4993 = vunpack.c.l.b16 %v4961
      %v4994 = vunpack.c.l.b16 %v4962
      %v4995 = vunpack.c.l.b16 %v4963
      %v4996 = vunpack.c.l.b16 %v4964
      %v4997 = vunpack.c.l.b16 %v4965
      %v4998 = vunpack.c.l.b16 %v4966
      %v4999 = vunpack.c.l.b16 %v4967
      %v5000 = vunpack.c.l.b16 %v4968
      %v5001 = vunpack.c.l.b16 %v4969
      %v5002 = vunpack.c.l.b16 %v4970
      %v5003 = vunpack.c.l.b16 %v4971
      %v5004 = vunpack.c.l.b16 %v4972
      %v5005 = vunpack.c.l.b16 %v4973
      %v5006 = vpack.c.b16 %v4991, %v4990
      %v5007 = vpack.c.b16 %v4993, %v4992
      %v5008 = vpack.c.b16 %v4995, %v4994
      %v5009 = vpack.c.b16 %v4997, %v4996
      %v5010 = vpack.c.b16 %v4999, %v4998
      %v5011 = vpack.c.b16 %v5001, %v5000
      %v5012 = vpack.c.b16 %v5003, %v5002
      %v5013 = vpack.c.b16 %v5005, %v5004
      %5022 = vmatprep.subr.bf16.mxu0 0
      %5023 = vmatpush1.bf16.msra.mxu0 %v5006
      %5024 = vmatprep.subr.bf16.mxu0 0
      %5025 = vmatpush1.bf16.msra.mxu0 %v5007
      %5026 = vmatprep.subr.bf16.mxu0 0
      %5027 = vmatpush1.bf16.msra.mxu0 %v5008
      %5028 = vmatprep.subr.bf16.mxu0 0
      %5029 = vmatpush1.bf16.msra.mxu0 %v5009
      %5030 = vmatprep.subr.bf16.mxu0 0
      %5031 = vmatpush1.bf16.msra.mxu0 %v5010
      %5032 = vmatprep.subr.bf16.mxu0 0
      %5033 = vmatpush1.bf16.msra.mxu0 %v5011
      %5034 = vmatprep.subr.bf16.mxu0 0
      %5035 = vmatpush1.bf16.msra.mxu0 %v5012
      %5036 = vmatprep.subr.bf16.mxu0 0
      %5037 = vmatpush1.bf16.msra.mxu0 %v5013
      %5038 = vmatprep.subr.bf16.mxu0 0
      %5039 = vmatpush1.bf16.msra.mxu0 0
      %5040 = vmatprep.subr.bf16.mxu0 0
      %5041 = vmatpush1.bf16.msra.mxu0 0
      %5042 = vmatprep.subr.bf16.mxu0 0
      %5043 = vmatpush1.bf16.msra.mxu0 0
      %5044 = vmatprep.subr.bf16.mxu0 0
      %5045 = vmatpush1.bf16.msra.mxu0 0
      %5046 = vmatprep.subr.bf16.mxu0 0
      %5047 = vmatpush1.bf16.msra.mxu0 0
      %5048 = vmatprep.subr.bf16.mxu0 0
      %5049 = vmatpush1.bf16.msra.mxu0 0
      %5050 = vmatprep.subr.bf16.mxu0 0
      %5051 = vmatpush1.bf16.msra.mxu0 0
      %5052 = vmatprep.subr.bf16.mxu0 0
      %5053 = vmatpush1.bf16.msra.mxu0 0
      %5054 = vmatprep.mubr.bf16.mxu0 0
      %5055 = vmatmul.mubr.bf16.gmra.mrb[0].mxu0 %v3167
      %v5056 = vpop.f32.mrb[0].mxu0
      %v5057 = vadd.f32 0.0, %v5056
      %v5058 = vpop.f32.mrb[0].mxu0
      %v5059 = vpop.f32.mrb[0].mxu0
      %v5060 = vadd.f32 0.0, %v5059
      %v5061 = vpop.f32.mrb[0].mxu0
      %5062 = vmatprep.mubr.bf16.mxu0 0
      %5063 = vmatmul.mubr.bf16.gmra.mrb[0].mxu0 %v3169
      %v5064 = vpop.f32.mrb[0].mxu0
      %v5065 = vadd.f32 0.0, %v5064
      %v5066 = vpop.f32.mrb[0].mxu0
      %v5067 = vpop.f32.mrb[0].mxu0
      %v5068 = vadd.f32 0.0, %v5067
      %v5069 = vpop.f32.mrb[0].mxu0
      %5070 = vmatprep.mubr.bf16.mxu0 0
      %5071 = vmatmul.mubr.bf16.gmra.mrb[0].mxu0 %v3170
      %v5072 = vpop.f32.mrb[0].mxu0
      %v5073 = vadd.f32 0.0, %v5072
      %v5074 = vpop.f32.mrb[0].mxu0
      %v5075 = vpop.f32.mrb[0].mxu0
      %v5076 = vadd.f32 0.0, %v5075
      %v5077 = vpop.f32.mrb[0].mxu0
      %5078 = vmatprep.mubr.bf16.mxu0 0
      %5079 = vmatmul.mubr.bf16.gmra.mrb[0].mxu0 %v3171
      %v5080 = vpop.f32.mrb[0].mxu0
      %v5081 = vadd.f32 0.0, %v5080
      %v5082 = vpop.f32.mrb[0].mxu0
      %v5083 = vpop.f32.mrb[0].mxu0
      %v5084 = vadd.f32 0.0, %v5083
      %v5085 = vpop.f32.mrb[0].mxu0
      %5086 = vmatprep.mubr.bf16.mxu0 0
      %5087 = vmatmul.mubr.bf16.gmra.mrb[0].mxu0 %v3172
      %v5088 = vpop.f32.mrb[0].mxu0
      %v5089 = vadd.f32 0.0, %v5088
      %v5090 = vpop.f32.mrb[0].mxu0
      %v5091 = vpop.f32.mrb[0].mxu0
      %v5092 = vadd.f32 0.0, %v5091
      %v5093 = vpop.f32.mrb[0].mxu0
      %5094 = vmatprep.mubr.bf16.mxu0 0
      %5095 = vmatmul.mubr.bf16.gmra.mrb[0].mxu0 %v3173
      %v5096 = vpop.f32.mrb[0].mxu0
      %v5097 = vadd.f32 0.0, %v5096
      %v5098 = vpop.f32.mrb[0].mxu0
      %v5099 = vpop.f32.mrb[0].mxu0
      %v5100 = vadd.f32 0.0, %v5099
      %v5101 = vpop.f32.mrb[0].mxu0
      %5102 = vmatprep.mubr.bf16.mxu0 0
      %5103 = vmatmul.mubr.bf16.gmra.mrb[0].mxu0 %v3174
      %v5104 = vpop.f32.mrb[0].mxu0
      %v5105 = vadd.f32 0.0, %v5104
      %v5106 = vpop.f32.mrb[0].mxu0
      %v5107 = vpop.f32.mrb[0].mxu0
      %v5108 = vadd.f32 0.0, %v5107
      %v5109 = vpop.f32.mrb[0].mxu0
      %5110 = vmatprep.mubr.bf16.mxu0 0
      %5111 = vmatmul.mubr.bf16.gmra.mrb[0].mxu0 %v3175
      %v5112 = vpop.f32.mrb[0].mxu0
      %v5113 = vadd.f32 0.0, %v5112
      %v5114 = vpop.f32.mrb[0].mxu0
      %v5115 = vpop.f32.mrb[0].mxu0
      %v5116 = vadd.f32 0.0, %v5115
      %v5117 = vpop.f32.mrb[0].mxu0
      %5118 = vmatprep.mubr.bf16.mxu0 0
      %5119 = vmatmul.mubr.bf16.gmra.mrb[0].mxu0 %v3176
      %v5120 = vpop.f32.mrb[0].mxu0
      %v5121 = vadd.f32 0.0, %v5120
      %v5122 = vpop.f32.mrb[0].mxu0
      %v5123 = vpop.f32.mrb[0].mxu0
      %v5124 = vadd.f32 0.0, %v5123
      %v5125 = vpop.f32.mrb[0].mxu0
      %5126 = vmatprep.mubr.bf16.mxu0 0
      %5127 = vmatmul.mubr.bf16.gmra.mrb[0].mxu0 %v3177
      %v5128 = vpop.f32.mrb[0].mxu0
      %v5129 = vadd.f32 0.0, %v5128
      %v5130 = vpop.f32.mrb[0].mxu0
      %v5131 = vpop.f32.mrb[0].mxu0
      %v5132 = vadd.f32 0.0, %v5131
      %v5133 = vpop.f32.mrb[0].mxu0
      %5134 = vmatprep.mubr.bf16.mxu0 0
      %5135 = vmatmul.mubr.bf16.gmra.mrb[0].mxu0 %v3178
      %v5136 = vpop.f32.mrb[0].mxu0
      %v5137 = vadd.f32 0.0, %v5136
      %v5138 = vpop.f32.mrb[0].mxu0
      %v5139 = vpop.f32.mrb[0].mxu0
      %v5140 = vadd.f32 0.0, %v5139
      %v5141 = vpop.f32.mrb[0].mxu0
      %5142 = vmatprep.mubr.bf16.mxu0 0
      %5143 = vmatmul.mubr.bf16.gmra.mrb[0].mxu0 %v3179
      %v5144 = vpop.f32.mrb[0].mxu0
      %v5145 = vadd.f32 0.0, %v5144
      %v5146 = vpop.f32.mrb[0].mxu0
      %v5147 = vpop.f32.mrb[0].mxu0
      %v5148 = vadd.f32 0.0, %v5147
      %v5149 = vpop.f32.mrb[0].mxu0
      %5150 = vmatprep.mubr.bf16.mxu0 0
      %5151 = vmatmul.mubr.bf16.gmra.mrb[0].mxu0 %v3180
      %v5152 = vpop.f32.mrb[0].mxu0
      %v5153 = vadd.f32 0.0, %v5152
      %v5154 = vpop.f32.mrb[0].mxu0
      %v5155 = vpop.f32.mrb[0].mxu0
      %v5156 = vadd.f32 0.0, %v5155
      %v5157 = vpop.f32.mrb[0].mxu0
      %5158 = vmatprep.mubr.bf16.mxu0 0
      %5159 = vmatmul.mubr.bf16.gmra.mrb[0].mxu0 %v3181
      %v5160 = vpop.f32.mrb[0].mxu0
      %v5161 = vadd.f32 0.0, %v5160
      %v5162 = vpop.f32.mrb[0].mxu0
      %v5163 = vpop.f32.mrb[0].mxu0
      %v5164 = vadd.f32 0.0, %v5163
      %v5165 = vpop.f32.mrb[0].mxu0
      %5166 = vmatprep.mubr.bf16.mxu0 0
      %5167 = vmatmul.mubr.bf16.gmra.mrb[0].mxu0 %v4170
      %v5168 = vpop.f32.mrb[0].mxu0
      %v5169 = vadd.f32 0.0, %v5168
      %v5170 = vpop.f32.mrb[0].mxu0
      %v5171 = vpop.f32.mrb[0].mxu0
      %v5172 = vadd.f32 0.0, %v5171
      %v5173 = vpop.f32.mrb[0].mxu0
      %5174 = vmatprep.mubr.bf16.mxu0 0
      %5175 = vmatmul.mubr.bf16.gmra.mrb[0].mxu0 %v3181
      %v5176 = vpop.f32.mrb[0].mxu0
      %v5177 = vadd.f32 0.0, %v5176
      %v5178 = vpop.f32.mrb[0].mxu0
      %v5179 = vpop.f32.mrb[0].mxu0
      %v5180 = vadd.f32 0.0, %v5179
      %v5181 = vpop.f32.mrb[0].mxu0
      %5182 = vdwg.mxu0
      %v5183 = vadd.f32 %v4925, %v5057
      %v5184 = vadd.f32 %v4926, %v5060
      %v5185 = vadd.f32 %v4927, %v5065
      %v5186 = vadd.f32 %v4928, %v5068
      %v5187 = vadd.f32 %v4929, %v5073
      %v5188 = vadd.f32 %v4930, %v5076
      %v5189 = vadd.f32 %v4931, %v5081
      %v5190 = vadd.f32 %v4932, %v5084
      %v5191 = vadd.f32 %v4933, %v5089
      %v5192 = vadd.f32 %v4934, %v5092
      %v5193 = vadd.f32 %v4935, %v5097
      %v5194 = vadd.f32 %v4936, %v5100
      %v5195 = vadd.f32 %v4937, %v5105
      %v5196 = vadd.f32 %v4938, %v5108
      %v5197 = vadd.f32 %v4939, %v5113
      %v5198 = vadd.f32 %v4940, %v5116
      %v5199 = vadd.f32 %v4941, %v5121
      %v5200 = vadd.f32 %v4942, %v5124
      %v5201 = vadd.f32 %v4943, %v5129
      %v5202 = vadd.f32 %v4944, %v5132
      %v5203 = vadd.f32 %v4945, %v5137
      %v5204 = vadd.f32 %v4946, %v5140
      %v5205 = vadd.f32 %v4947, %v5145
      %v5206 = vadd.f32 %v4948, %v5148
      %v5207 = vadd.f32 %v4949, %v5153
      %v5208 = vadd.f32 %v4950, %v5156
      %v5209 = vadd.f32 %v4951, %v5161
      %v5210 = vadd.f32 %v4952, %v5164
      %v5211 = vadd.f32 %v4953, %v5169
      %v5212 = vadd.f32 %v4954, %v5172
      %v5213 = vadd.f32 %v4955, %v5177
      %v5214 = vadd.f32 %v4956, %v5180
      %v5215 = vpack.c.bf16 %v3108, %v3103
      %v5216 = vpack.c.bf16 %v4694, %v3907
      %v5217 = vpack.c.bf16 %v3134, %v4695
      %s5218 = scalar_lea.vmem %s2, 512
      %v5219 = vld [vmem:[%s5218] sm:$0xf]
      %v5220 = vld [vmem:[%s5218 + $0x4] sm:$0xf]
      %v5221 = vld [vmem:[%s5218 + $0x8] sm:$0xf]
      %v5222 = vld [vmem:[%s5218 + $0xc] sm:$0xf]
      %v5223 = vld [vmem:[%s5218 + $0x10] sm:$0xf]
      %v5224 = vld [vmem:[%s5218 + $0x14] sm:$0xf]
      %v5225 = vld [vmem:[%s5218 + $0x18] sm:$0xf]
      %v5226 = vld [vmem:[%s5218 + $0x1c] sm:$0xf]
      %v5227 = vld [vmem:[%s5218 + $0x20] sm:$0xf]
      %v5228 = vld [vmem:[%s5218 + $0x24] sm:$0xf]
      %v5229 = vld [vmem:[%s5218 + $0x28] sm:$0xf]
      %v5230 = vld [vmem:[%s5218 + $0x2c] sm:$0xf]
      %v5231 = vld [vmem:[%s5218 + $0x30] sm:$0xf]
      %v5232 = vld [vmem:[%s5218 + $0x34] sm:$0xf]
      %v5233 = vld [vmem:[%s5218 + $0x38] sm:$0xf]
      %v5234 = vld [vmem:[%s5218 + $0x3c] sm:$0xf]
      %v5251 = vunpack.c.l.b16 %v5219
      %v5252 = vunpack.c.l.b16 %v5220
      %v5253 = vunpack.c.l.b16 %v5221
      %v5254 = vunpack.c.l.b16 %v5222
      %v5255 = vunpack.c.l.b16 %v5223
      %v5256 = vunpack.c.l.b16 %v5224
      %v5257 = vunpack.c.l.b16 %v5225
      %v5258 = vunpack.c.l.b16 %v5226
      %v5259 = vunpack.c.l.b16 %v5227
      %v5260 = vunpack.c.l.b16 %v5228
      %v5261 = vunpack.c.l.b16 %v5229
      %v5262 = vunpack.c.l.b16 %v5230
      %v5263 = vunpack.c.l.b16 %v5231
      %v5264 = vunpack.c.l.b16 %v5232
      %v5265 = vunpack.c.l.b16 %v5233
      %v5266 = vunpack.c.l.b16 %v5234
      %v5267 = vpack.c.b16 %v5252, %v5251
      %v5268 = vpack.c.b16 %v5254, %v5253
      %v5269 = vpack.c.b16 %v5256, %v5255
      %v5270 = vpack.c.b16 %v5258, %v5257
      %v5271 = vpack.c.b16 %v5260, %v5259
      %v5272 = vpack.c.b16 %v5262, %v5261
      %v5273 = vpack.c.b16 %v5264, %v5263
      %v5274 = vpack.c.b16 %v5266, %v5265
      %5283 = vmatprep.subr.bf16.mxu0 0
      %5284 = vmatpush1.bf16.msra.mxu0 %v5267
      %5285 = vmatprep.subr.bf16.mxu0 0
      %5286 = vmatpush1.bf16.msra.mxu0 %v5268
      %5287 = vmatprep.subr.bf16.mxu0 0
      %5288 = vmatpush1.bf16.msra.mxu0 %v5269
      %5289 = vmatprep.subr.bf16.mxu0 0
      %5290 = vmatpush1.bf16.msra.mxu0 %v5270
      %5291 = vmatprep.subr.bf16.mxu0 0
      %5292 = vmatpush1.bf16.msra.mxu0 %v5271
      %5293 = vmatprep.subr.bf16.mxu0 0
      %5294 = vmatpush1.bf16.msra.mxu0 %v5272
      %5295 = vmatprep.subr.bf16.mxu0 0
      %5296 = vmatpush1.bf16.msra.mxu0 %v5273
      %5297 = vmatprep.subr.bf16.mxu0 0
      %5298 = vmatpush1.bf16.msra.mxu0 %v5274
      %5299 = vmatprep.subr.bf16.mxu0 0
      %5300 = vmatpush1.bf16.msra.mxu0 0
      %5301 = vmatprep.subr.bf16.mxu0 0
      %5302 = vmatpush1.bf16.msra.mxu0 0
      %5303 = vmatprep.subr.bf16.mxu0 0
      %5304 = vmatpush1.bf16.msra.mxu0 0
      %5305 = vmatprep.subr.bf16.mxu0 0
      %5306 = vmatpush1.bf16.msra.mxu0 0
      %5307 = vmatprep.subr.bf16.mxu0 0
      %5308 = vmatpush1.bf16.msra.mxu0 0
      %5309 = vmatprep.subr.bf16.mxu0 0
      %5310 = vmatpush1.bf16.msra.mxu0 0
      %5311 = vmatprep.subr.bf16.mxu0 0
      %5312 = vmatpush1.bf16.msra.mxu0 0
      %5313 = vmatprep.subr.bf16.mxu0 0
      %5314 = vmatpush1.bf16.msra.mxu0 0
      %5315 = vmatprep.mubr.bf16.mxu0 0
      %5316 = vmatmul.mubr.bf16.gmra.mrb[0].mxu0 %v5215
      %v5317 = vpop.f32.mrb[0].mxu0
      %v5318 = vadd.f32 0.0, %v5317
      %v5319 = vpop.f32.mrb[0].mxu0
      %v5320 = vpop.f32.mrb[0].mxu0
      %v5321 = vadd.f32 0.0, %v5320
      %v5322 = vpop.f32.mrb[0].mxu0
      %5323 = vmatprep.mubr.bf16.mxu0 0
      %5324 = vmatmul.mubr.bf16.gmra.mrb[0].mxu0 %v3620
      %v5325 = vpop.f32.mrb[0].mxu0
      %v5326 = vadd.f32 0.0, %v5325
      %v5327 = vpop.f32.mrb[0].mxu0
      %v5328 = vpop.f32.mrb[0].mxu0
      %v5329 = vadd.f32 0.0, %v5328
      %v5330 = vpop.f32.mrb[0].mxu0
      %5331 = vmatprep.mubr.bf16.mxu0 0
      %5332 = vmatmul.mubr.bf16.gmra.mrb[0].mxu0 %v3621
      %v5333 = vpop.f32.mrb[0].mxu0
      %v5334 = vadd.f32 0.0, %v5333
      %v5335 = vpop.f32.mrb[0].mxu0
      %v5336 = vpop.f32.mrb[0].mxu0
      %v5337 = vadd.f32 0.0, %v5336
      %v5338 = vpop.f32.mrb[0].mxu0
      %5339 = vmatprep.mubr.bf16.mxu0 0
      %5340 = vmatmul.mubr.bf16.gmra.mrb[0].mxu0 %v3622
      %v5341 = vpop.f32.mrb[0].mxu0
      %v5342 = vadd.f32 0.0, %v5341
      %v5343 = vpop.f32.mrb[0].mxu0
      %v5344 = vpop.f32.mrb[0].mxu0
      %v5345 = vadd.f32 0.0, %v5344
      %v5346 = vpop.f32.mrb[0].mxu0
      %5347 = vmatprep.mubr.bf16.mxu0 0
      %5348 = vmatmul.mubr.bf16.gmra.mrb[0].mxu0 %v3623
      %v5349 = vpop.f32.mrb[0].mxu0
      %v5350 = vadd.f32 0.0, %v5349
      %v5351 = vpop.f32.mrb[0].mxu0
      %v5352 = vpop.f32.mrb[0].mxu0
      %v5353 = vadd.f32 0.0, %v5352
      %v5354 = vpop.f32.mrb[0].mxu0
      %5355 = vmatprep.mubr.bf16.mxu0 0
      %5356 = vmatmul.mubr.bf16.gmra.mrb[0].mxu0 %v3624
      %v5357 = vpop.f32.mrb[0].mxu0
      %v5358 = vadd.f32 0.0, %v5357
      %v5359 = vpop.f32.mrb[0].mxu0
      %v5360 = vpop.f32.mrb[0].mxu0
      %v5361 = vadd.f32 0.0, %v5360
      %v5362 = vpop.f32.mrb[0].mxu0
      %5363 = vmatprep.mubr.bf16.mxu0 0
      %5364 = vmatmul.mubr.bf16.gmra.mrb[0].mxu0 %v3625
      %v5365 = vpop.f32.mrb[0].mxu0
      %v5366 = vadd.f32 0.0, %v5365
      %v5367 = vpop.f32.mrb[0].mxu0
      %v5368 = vpop.f32.mrb[0].mxu0
      %v5369 = vadd.f32 0.0, %v5368
      %v5370 = vpop.f32.mrb[0].mxu0
      %5371 = vmatprep.mubr.bf16.mxu0 0
      %5372 = vmatmul.mubr.bf16.gmra.mrb[0].mxu0 %v3626
      %v5373 = vpop.f32.mrb[0].mxu0
      %v5374 = vadd.f32 0.0, %v5373
      %v5375 = vpop.f32.mrb[0].mxu0
      %v5376 = vpop.f32.mrb[0].mxu0
      %v5377 = vadd.f32 0.0, %v5376
      %v5378 = vpop.f32.mrb[0].mxu0
      %5379 = vmatprep.mubr.bf16.mxu0 0
      %5380 = vmatmul.mubr.bf16.gmra.mrb[0].mxu0 %v3627
      %v5381 = vpop.f32.mrb[0].mxu0
      %v5382 = vadd.f32 0.0, %v5381
      %v5383 = vpop.f32.mrb[0].mxu0
      %v5384 = vpop.f32.mrb[0].mxu0
      %v5385 = vadd.f32 0.0, %v5384
      %v5386 = vpop.f32.mrb[0].mxu0
      %5387 = vmatprep.mubr.bf16.mxu0 0
      %5388 = vmatmul.mubr.bf16.gmra.mrb[0].mxu0 %v3628
      %v5389 = vpop.f32.mrb[0].mxu0
      %v5390 = vadd.f32 0.0, %v5389
      %v5391 = vpop.f32.mrb[0].mxu0
      %v5392 = vpop.f32.mrb[0].mxu0
      %v5393 = vadd.f32 0.0, %v5392
      %v5394 = vpop.f32.mrb[0].mxu0
      %5395 = vmatprep.mubr.bf16.mxu0 0
      %5396 = vmatmul.mubr.bf16.gmra.mrb[0].mxu0 %v3629
      %v5397 = vpop.f32.mrb[0].mxu0
      %v5398 = vadd.f32 0.0, %v5397
      %v5399 = vpop.f32.mrb[0].mxu0
      %v5400 = vpop.f32.mrb[0].mxu0
      %v5401 = vadd.f32 0.0, %v5400
      %v5402 = vpop.f32.mrb[0].mxu0
      %5403 = vmatprep.mubr.bf16.mxu0 0
      %5404 = vmatmul.mubr.bf16.gmra.mrb[0].mxu0 %v3630
      %v5405 = vpop.f32.mrb[0].mxu0
      %v5406 = vadd.f32 0.0, %v5405
      %v5407 = vpop.f32.mrb[0].mxu0
      %v5408 = vpop.f32.mrb[0].mxu0
      %v5409 = vadd.f32 0.0, %v5408
      %v5410 = vpop.f32.mrb[0].mxu0
      %5411 = vmatprep.mubr.bf16.mxu0 0
      %5412 = vmatmul.mubr.bf16.gmra.mrb[0].mxu0 %v3631
      %v5413 = vpop.f32.mrb[0].mxu0
      %v5414 = vadd.f32 0.0, %v5413
      %v5415 = vpop.f32.mrb[0].mxu0
      %v5416 = vpop.f32.mrb[0].mxu0
      %v5417 = vadd.f32 0.0, %v5416
      %v5418 = vpop.f32.mrb[0].mxu0
      %5419 = vmatprep.mubr.bf16.mxu0 0
      %5420 = vmatmul.mubr.bf16.gmra.mrb[0].mxu0 %v4430
      %v5421 = vpop.f32.mrb[0].mxu0
      %v5422 = vadd.f32 0.0, %v5421
      %v5423 = vpop.f32.mrb[0].mxu0
      %v5424 = vpop.f32.mrb[0].mxu0
      %v5425 = vadd.f32 0.0, %v5424
      %v5426 = vpop.f32.mrb[0].mxu0
      %5427 = vmatprep.mubr.bf16.mxu0 0
      %5428 = vmatmul.mubr.bf16.gmra.mrb[0].mxu0 %v5216
      %v5429 = vpop.f32.mrb[0].mxu0
      %v5430 = vadd.f32 0.0, %v5429
      %v5431 = vpop.f32.mrb[0].mxu0
      %v5432 = vpop.f32.mrb[0].mxu0
      %v5433 = vadd.f32 0.0, %v5432
      %v5434 = vpop.f32.mrb[0].mxu0
      %5435 = vmatprep.mubr.bf16.mxu0 0
      %5436 = vmatmul.mubr.bf16.gmra.mrb[0].mxu0 %v5217
      %v5437 = vpop.f32.mrb[0].mxu0
      %v5438 = vadd.f32 0.0, %v5437
      %v5439 = vpop.f32.mrb[0].mxu0
      %v5440 = vpop.f32.mrb[0].mxu0
      %v5441 = vadd.f32 0.0, %v5440
      %v5442 = vpop.f32.mrb[0].mxu0
      %5443 = vdwg.mxu0
      %v5444 = vadd.f32 %v5183, %v5318
      %v5445 = vadd.f32 %v5184, %v5321
      %v5446 = vadd.f32 %v5185, %v5326
      %v5447 = vadd.f32 %v5186, %v5329
      %v5448 = vadd.f32 %v5187, %v5334
      %v5449 = vadd.f32 %v5188, %v5337
      %v5450 = vadd.f32 %v5189, %v5342
      %v5451 = vadd.f32 %v5190, %v5345
      %v5452 = vadd.f32 %v5191, %v5350
      %v5453 = vadd.f32 %v5192, %v5353
      %v5454 = vadd.f32 %v5193, %v5358
      %v5455 = vadd.f32 %v5194, %v5361
      %v5456 = vadd.f32 %v5195, %v5366
      %v5457 = vadd.f32 %v5196, %v5369
      %v5458 = vadd.f32 %v5197, %v5374
      %v5459 = vadd.f32 %v5198, %v5377
      %v5460 = vadd.f32 %v5199, %v5382
      %v5461 = vadd.f32 %v5200, %v5385
      %v5462 = vadd.f32 %v5201, %v5390
      %v5463 = vadd.f32 %v5202, %v5393
      %v5464 = vadd.f32 %v5203, %v5398
      %v5465 = vadd.f32 %v5204, %v5401
      %v5466 = vadd.f32 %v5205, %v5406
      %v5467 = vadd.f32 %v5206, %v5409
      %v5468 = vadd.f32 %v5207, %v5414
      %v5469 = vadd.f32 %v5208, %v5417
      %v5470 = vadd.f32 %v5209, %v5422
      %v5471 = vadd.f32 %v5210, %v5425
      %v5472 = vadd.f32 %v5211, %v5430
      %v5473 = vadd.f32 %v5212, %v5433
      %v5474 = vadd.f32 %v5213, %v5438
      %v5475 = vadd.f32 %v5214, %v5441
      %v5476 = vadd.f32 %v5444, %v5445
      %v5477 = vadd.f32 %v5476, %v5446
      %v5478 = vadd.f32 %v5477, %v5447
      %v5479 = vadd.f32 %v5478, %v5448
      %v5480 = vadd.f32 %v5479, %v5449
      %v5481 = vadd.f32 %v5480, %v5450
      %v5482 = vadd.f32 %v5481, %v5451
      %v5483 = vadd.f32 %v5482, %v5452
      %v5484 = vadd.f32 %v5483, %v5453
      %v5485 = vadd.f32 %v5484, %v5454
      %v5486 = vadd.f32 %v5485, %v5455
      %v5487 = vadd.f32 %v5486, %v5456
      %v5488 = vadd.f32 %v5487, %v5457
      %v5489 = vadd.f32 %v5488, %v5458
      %v5490 = vadd.f32 %v5489, %v5459
      %v5491 = vadd.f32 %v5490, %v5460
      %v5492 = vadd.f32 %v5491, %v5461
      %v5493 = vadd.f32 %v5492, %v5462
      %v5494 = vadd.f32 %v5493, %v5463
      %v5495 = vadd.f32 %v5494, %v5464
      %v5496 = vadd.f32 %v5495, %v5465
      %v5497 = vadd.f32 %v5496, %v5466
      %v5498 = vadd.f32 %v5497, %v5467
      %v5499 = vadd.f32 %v5498, %v5468
      %v5500 = vadd.f32 %v5499, %v5469
      %v5501 = vadd.f32 %v5500, %v5470
      %v5502 = vadd.f32 %v5501, %v5471
      %v5503 = vadd.f32 %v5502, %v5472
      %v5504 = vadd.f32 %v5503, %v5473
      %v5505 = vadd.f32 %v5504, %v5474
      %v5506 = vadd.f32 %v5505, %v5475
      %v5507 = vrot.slane %v5506, 4
      %v5508 = vadd.f32 %v5506, %v5507
      %v5509 = vrot.slane %v5508, 2
      %v5510 = vadd.f32 %v5508, %v5509
      %v5511 = vrot.slane %v5510, 1
      %v5512 = vadd.f32 %v5510, %v5511
      %v5513 = vmul.f32 %v5512, 0.00390625
      %v5514 = vmul.f32 %v5444, %v5444
      %v5515 = vmul.f32 %v5445, %v5445
      %v5516 = vmul.f32 %v5446, %v5446
      %v5517 = vmul.f32 %v5447, %v5447
      %v5518 = vmul.f32 %v5448, %v5448
      %v5519 = vmul.f32 %v5449, %v5449
      %v5520 = vmul.f32 %v5450, %v5450
      %v5521 = vmul.f32 %v5451, %v5451
      %v5522 = vmul.f32 %v5452, %v5452
      %v5523 = vmul.f32 %v5453, %v5453
      %v5524 = vmul.f32 %v5454, %v5454
      %v5525 = vmul.f32 %v5455, %v5455
      %v5526 = vmul.f32 %v5456, %v5456
      %v5527 = vmul.f32 %v5457, %v5457
      %v5528 = vmul.f32 %v5458, %v5458
      %v5529 = vmul.f32 %v5459, %v5459
      %v5530 = vmul.f32 %v5460, %v5460
      %v5531 = vmul.f32 %v5461, %v5461
      %v5532 = vmul.f32 %v5462, %v5462
      %v5533 = vmul.f32 %v5463, %v5463
      %v5534 = vmul.f32 %v5464, %v5464
      %v5535 = vmul.f32 %v5465, %v5465
      %v5536 = vmul.f32 %v5466, %v5466
      %v5537 = vmul.f32 %v5467, %v5467
      %v5538 = vmul.f32 %v5468, %v5468
      %v5539 = vmul.f32 %v5469, %v5469
      %v5540 = vmul.f32 %v5470, %v5470
      %v5541 = vmul.f32 %v5471, %v5471
      %v5542 = vmul.f32 %v5472, %v5472
      %v5543 = vmul.f32 %v5473, %v5473
      %v5544 = vmul.f32 %v5474, %v5474
      %v5545 = vmul.f32 %v5475, %v5475
      %v5546 = vadd.f32 %v5514, %v5515
      %v5547 = vadd.f32 %v5546, %v5516
      %v5548 = vadd.f32 %v5547, %v5517
      %v5549 = vadd.f32 %v5548, %v5518
      %v5550 = vadd.f32 %v5549, %v5519
      %v5551 = vadd.f32 %v5550, %v5520
      %v5552 = vadd.f32 %v5551, %v5521
      %v5553 = vadd.f32 %v5552, %v5522
      %v5554 = vadd.f32 %v5553, %v5523
      %v5555 = vadd.f32 %v5554, %v5524
      %v5556 = vadd.f32 %v5555, %v5525
      %v5557 = vadd.f32 %v5556, %v5526
      %v5558 = vadd.f32 %v5557, %v5527
      %v5559 = vadd.f32 %v5558, %v5528
      %v5560 = vadd.f32 %v5559, %v5529
      %v5561 = vadd.f32 %v5560, %v5530
      %v5562 = vadd.f32 %v5561, %v5531
      %v5563 = vadd.f32 %v5562, %v5532
      %v5564 = vadd.f32 %v5563, %v5533
      %v5565 = vadd.f32 %v5564, %v5534
      %v5566 = vadd.f32 %v5565, %v5535
      %v5567 = vadd.f32 %v5566, %v5536
      %v5568 = vadd.f32 %v5567, %v5537
      %v5569 = vadd.f32 %v5568, %v5538
      %v5570 = vadd.f32 %v5569, %v5539
      %v5571 = vadd.f32 %v5570, %v5540
      %v5572 = vadd.f32 %v5571, %v5541
      %v5573 = vadd.f32 %v5572, %v5542
      %v5574 = vadd.f32 %v5573, %v5543
      %v5575 = vadd.f32 %v5574, %v5544
      %v5576 = vadd.f32 %v5575, %v5545
      %v5577 = vrot.slane %v5576, 4
      %v5578 = vadd.f32 %v5576, %v5577
      %v5579 = vrot.slane %v5578, 2
      %v5580 = vadd.f32 %v5578, %v5579
      %v5581 = vrot.slane %v5580, 1
      %v5582 = vadd.f32 %v5580, %v5581
      %v5583 = vmul.f32 %v5582, 0.00390625
      %v5584 = vmul.f32 %v5513, %v5513
      %v5585 = vsub.f32 %v5583, %v5584
      %v5586 = vmax.f32 %v5585, 0.0
      %v5587 = vsub.f32 %v5444, %v5513
      %v5588 = vsub.f32 %v5445, %v5513
      %v5589 = vsub.f32 %v5446, %v5513
      %v5590 = vsub.f32 %v5447, %v5513
      %v5591 = vsub.f32 %v5448, %v5513
      %v5592 = vsub.f32 %v5449, %v5513
      %v5593 = vsub.f32 %v5450, %v5513
      %v5594 = vsub.f32 %v5451, %v5513
      %v5595 = vsub.f32 %v5452, %v5513
      %v5596 = vsub.f32 %v5453, %v5513
      %v5597 = vsub.f32 %v5454, %v5513
      %v5598 = vsub.f32 %v5455, %v5513
      %v5599 = vsub.f32 %v5456, %v5513
      %v5600 = vsub.f32 %v5457, %v5513
      %v5601 = vsub.f32 %v5458, %v5513
      %v5602 = vsub.f32 %v5459, %v5513
      %v5603 = vsub.f32 %v5460, %v5513
      %v5604 = vsub.f32 %v5461, %v5513
      %v5605 = vsub.f32 %v5462, %v5513
      %v5606 = vsub.f32 %v5463, %v5513
      %v5607 = vsub.f32 %v5464, %v5513
      %v5608 = vsub.f32 %v5465, %v5513
      %v5609 = vsub.f32 %v5466, %v5513
      %v5610 = vsub.f32 %v5467, %v5513
      %v5611 = vsub.f32 %v5468, %v5513
      %v5612 = vsub.f32 %v5469, %v5513
      %v5613 = vsub.f32 %v5470, %v5513
      %v5614 = vsub.f32 %v5471, %v5513
      %v5615 = vsub.f32 %v5472, %v5513
      %v5616 = vsub.f32 %v5473, %v5513
      %v5617 = vsub.f32 %v5474, %v5513
      %v5618 = vsub.f32 %v5475, %v5513
      %v5619 = vadd.f32 %v5586, 1e-05
      %v5620 = vrsqrt.pop %v5619
      %v5621 = vmul.f32 %v5587, %v5620
      %v5622 = vmul.f32 %v5588, %v5620
      %v5623 = vmul.f32 %v5589, %v5620
      %v5624 = vmul.f32 %v5590, %v5620
      %v5625 = vmul.f32 %v5591, %v5620
      %v5626 = vmul.f32 %v5592, %v5620
      %v5627 = vmul.f32 %v5593, %v5620
      %v5628 = vmul.f32 %v5594, %v5620
      %v5629 = vmul.f32 %v5595, %v5620
      %v5630 = vmul.f32 %v5596, %v5620
      %v5631 = vmul.f32 %v5597, %v5620
      %v5632 = vmul.f32 %v5598, %v5620
      %v5633 = vmul.f32 %v5599, %v5620
      %v5634 = vmul.f32 %v5600, %v5620
      %v5635 = vmul.f32 %v5601, %v5620
      %v5636 = vmul.f32 %v5602, %v5620
      %v5637 = vmul.f32 %v5603, %v5620
      %v5638 = vmul.f32 %v5604, %v5620
      %v5639 = vmul.f32 %v5605, %v5620
      %v5640 = vmul.f32 %v5606, %v5620
      %v5641 = vmul.f32 %v5607, %v5620
      %v5642 = vmul.f32 %v5608, %v5620
      %v5643 = vmul.f32 %v5609, %v5620
      %v5644 = vmul.f32 %v5610, %v5620
      %v5645 = vmul.f32 %v5611, %v5620
      %v5646 = vmul.f32 %v5612, %v5620
      %v5647 = vmul.f32 %v5613, %v5620
      %v5648 = vmul.f32 %v5614, %v5620
      %v5649 = vmul.f32 %v5615, %v5620
      %v5650 = vmul.f32 %v5616, %v5620
      %v5651 = vmul.f32 %v5617, %v5620
      %v5652 = vmul.f32 %v5618, %v5620
      %v5653 = vadd.f32 %v172, %v5621
      %v5654 = vadd.f32 %v173, %v5622
      %v5655 = vadd.f32 %v174, %v5623
      %v5656 = vadd.f32 %v175, %v5624
      %v5657 = vadd.f32 %v176, %v5625
      %v5658 = vadd.f32 %v177, %v5626
      %v5659 = vadd.f32 %v178, %v5627
      %v5660 = vadd.f32 %v179, %v5628
      %v5661 = vadd.f32 %v180, %v5629
      %v5662 = vadd.f32 %v181, %v5630
      %v5663 = vadd.f32 %v182, %v5631
      %v5664 = vadd.f32 %v183, %v5632
      %v5665 = vadd.f32 %v184, %v5633
      %v5666 = vadd.f32 %v185, %v5634
      %v5667 = vadd.f32 %v186, %v5635
      %v5668 = vadd.f32 %v187, %v5636
      %v5669 = vadd.f32 %v188, %v5637
      %v5670 = vadd.f32 %v189, %v5638
      %v5671 = vadd.f32 %v190, %v5639
      %v5672 = vadd.f32 %v191, %v5640
      %v5673 = vadd.f32 %v192, %v5641
      %v5674 = vadd.f32 %v193, %v5642
      %v5675 = vadd.f32 %v194, %v5643
      %v5676 = vadd.f32 %v195, %v5644
      %v5677 = vadd.f32 %v196, %v5645
      %v5678 = vadd.f32 %v197, %v5646
      %v5679 = vadd.f32 %v198, %v5647
      %v5680 = vadd.f32 %v199, %v5648
      %v5681 = vadd.f32 %v200, %v5649
      %v5682 = vadd.f32 %v201, %v5650
      %v5683 = vadd.f32 %v202, %v5651
      %v5684 = vadd.f32 %v203, %v5652
      %5685 = vst [vmem:[%s170] sm:$0xff] %v5653
      %5686 = vst [vmem:[%s170 + $0x8] sm:$0xff] %v5654
      %5687 = vst [vmem:[%s170 + $0x10] sm:$0xff] %v5655
      %5688 = vst [vmem:[%s170 + $0x18] sm:$0xff] %v5656
      %5689 = vst [vmem:[%s170 + $0x20] sm:$0xff] %v5657
      %5690 = vst [vmem:[%s170 + $0x28] sm:$0xff] %v5658
      %5691 = vst [vmem:[%s170 + $0x30] sm:$0xff] %v5659
      %5692 = vst [vmem:[%s170 + $0x38] sm:$0xff] %v5660
      %5693 = vst [vmem:[%s170 + $0x40] sm:$0xff] %v5661
      %5694 = vst [vmem:[%s170 + $0x48] sm:$0xff] %v5662
      %5695 = vst [vmem:[%s170 + $0x50] sm:$0xff] %v5663
      %5696 = vst [vmem:[%s170 + $0x58] sm:$0xff] %v5664
      %5697 = vst [vmem:[%s170 + $0x60] sm:$0xff] %v5665
      %5698 = vst [vmem:[%s170 + $0x68] sm:$0xff] %v5666
      %5699 = vst [vmem:[%s170 + $0x70] sm:$0xff] %v5667
      %5700 = vst [vmem:[%s170 + $0x78] sm:$0xff] %v5668
      %5701 = vst [vmem:[%s170 + $0x80] sm:$0xff] %v5669
      %5702 = vst [vmem:[%s170 + $0x88] sm:$0xff] %v5670
      %5703 = vst [vmem:[%s170 + $0x90] sm:$0xff] %v5671
      %5704 = vst [vmem:[%s170 + $0x98] sm:$0xff] %v5672
      %5705 = vst [vmem:[%s170 + $0xa0] sm:$0xff] %v5673
      %5706 = vst [vmem:[%s170 + $0xa8] sm:$0xff] %v5674
      %5707 = vst [vmem:[%s170 + $0xb0] sm:$0xff] %v5675
      %5708 = vst [vmem:[%s170 + $0xb8] sm:$0xff] %v5676
      %5709 = vst [vmem:[%s170 + $0xc0] sm:$0xff] %v5677
      %5710 = vst [vmem:[%s170 + $0xc8] sm:$0xff] %v5678
      %5711 = vst [vmem:[%s170 + $0xd0] sm:$0xff] %v5679
      %5712 = vst [vmem:[%s170 + $0xd8] sm:$0xff] %v5680
      %5713 = vst [vmem:[%s170 + $0xe0] sm:$0xff] %v5681
      %5714 = vst [vmem:[%s170 + $0xe8] sm:$0xff] %v5682
      %5715 = vst [vmem:[%s170 + $0xf0] sm:$0xff] %v5683
      %5716 = vst [vmem:[%s170 + $0xf8] sm:$0xff] %v5684
      %p5717 = scmp.lt.s32.totalorder %s14, 1
      %s5718 = scalar_select %p5717, %s14, 1
      %s5719 = smul.addr %s5718, 32
      %s5720 = smul.addr %s5719, 8
      %s5721 = scalar_lea.vmem %s3, %s5720
      // Predicated region
      $region33: #{resnet_block_forward.1} parent=31 // pred_check
        %p5722 = pneg %p100
      $region34: #{resnet_block_forward.1} parent=31 // pred_check_branch
        %5724 = sbr.rel (%p5722) target = $region36
      $region35: #{resnet_block_forward.1} parent=31 // pred_region
        _
      $region36: #{resnet_block_forward.1} parent=31 // pred_fallthru
        _
    $region32: #{resnet_block_forward.1} parent=5 // pred_fallthru
      _
    %p5725 = scmp.le.s32.totalorder 2, %s9
    // Predicated region
    $region37: #{resnet_block_forward.1} parent=5 // pred_check
      %p5726 = pneg %p5725
    $region38: #{resnet_block_forward.1} parent=5 // pred_check_branch
      %5728 = sbr.rel (%p5726) target = $region40
    $region39: #{resnet_block_forward.1} parent=5 // pred_region
      %s5729 = ssub.s32 %s9, 2
      // Predicated region
      $region41: #{resnet_block_forward.1} parent=39 // pred_check
        %p5730 = pneg %p106
      $region42: #{resnet_block_forward.1} parent=39 // pred_check_branch
        %5732 = sbr.rel (%p5730) target = $region44
      $region43: #{resnet_block_forward.1} parent=39 // pred_region
        %p5733 = scmp.lt.s32.totalorder %s15, 1
        %s5734 = scalar_select %p5733, %s15, 1
        %s5735 = smul.addr %s5734, 32
        %s5736 = smul.addr %s5735, 8
        %s5737 = scalar_lea.vmem %s3, %s5736
      $region44: #{resnet_block_forward.1} parent=39 // pred_fallthru
        _
    $region40: #{resnet_block_forward.1} parent=5 // pred_fallthru
      _
  $region6: #{resnet_block_forward.1} parent=0 // loop_footer
    %s13 = sadd.s32 1, %s9
  $region7: #{resnet_block_forward.1} parent=0 // loop_footer_branch
    %8 = sbr.rel target = $region3
  $region8: #{resnet_block_forward.1} parent=0 // loop_exit
    _

</llo_original>
